<compile_context>
chip_gen: v7x
topology: tpu7x:2x2x1
jax: 0.10.0
libtpu: 0.0.40
codegen_flags: <defaults>
</compile_context>

<pallas_src>
import jax
import jax.numpy as jnp
from jax import lax
from jax.experimental import pallas as pl
from jax.experimental.pallas import tpu as pltpu

# ----------------------------- small CLIP-like config ------------------------------
BATCH = 2
CHANNELS = 3
IMAGE = 32
PATCH = 8
HIDDEN = 64          # stands in for CLIP's 768
HEADS = 4
HEAD_DIM = HIDDEN // HEADS
LAYERS = 2           # stands in for CLIP's 12
MLP = 128            # stands in for CLIP's 3072
NUM_CLASSES = 10
NUM_PATCHES = (IMAGE // PATCH) ** 2    # 16
SEQ = NUM_PATCHES + 1                  # 17 real tokens
SEQ_PAD = 24                           # padded to a multiple of 8 sublanes
TOKENS_PAD = BATCH * SEQ_PAD           # 48
PATCH_DIM = CHANNELS * PATCH * PATCH   # 192
HEAD_PAD = 128                         # lane-dense padded class dimension
LN_EPS = 1e-5
NEG_INF = -1e30

MATMUL_DTYPE = jnp.bfloat16            # MXU operand dtype; accumulation stays f32


# --------------------------- in-kernel helper functions ----------------------------
def _mm(x, w):
    """bf16 MXU matmul with f32 accumulation."""
    return jnp.dot(x.astype(MATMUL_DTYPE), w.astype(MATMUL_DTYPE),
                   preferred_element_type=jnp.float32)


def _ln(x, g, b):
    """LayerNorm over the last axis, f32 math."""
    x = x.astype(jnp.float32)
    mu = jnp.mean(x, axis=-1, keepdims=True)
    xc = x - mu
    var = jnp.mean(xc * xc, axis=-1, keepdims=True)
    return xc * lax.rsqrt(var + LN_EPS) * g + b


def _mha(qkv, kbias):
    """Multi-head attention on the fused (TOKENS_PAD, 3*HIDDEN) QKV block.

    q/k/v are cast to bf16 once and reshaped (free row split) to (BATCH, SEQ_PAD, HIDDEN);
    each head is a batched dot_general over the batch axis (no transposes, no per-batch
    slicing).  Pad keys are masked with an additive NEG_INF bias.  Softmax in f32.
    """
    scale = HEAD_DIM ** -0.5
    q = qkv[:, 0 * HIDDEN:1 * HIDDEN].reshape(BATCH, SEQ_PAD, HIDDEN).astype(MATMUL_DTYPE)
    k = qkv[:, 1 * HIDDEN:2 * HIDDEN].reshape(BATCH, SEQ_PAD, HIDDEN).astype(MATMUL_DTYPE)
    v = qkv[:, 2 * HIDDEN:3 * HIDDEN].reshape(BATCH, SEQ_PAD, HIDDEN).astype(MATMUL_DTYPE)

    outs = []
    for hd in range(HEADS):
        c0 = hd * HEAD_DIM
        qh = q[:, :, c0:c0 + HEAD_DIM]
        kh = k[:, :, c0:c0 + HEAD_DIM]
        vh = v[:, :, c0:c0 + HEAD_DIM]
        # scores: contract on head_dim, batch over BATCH -> (BATCH, SEQ_PAD, SEQ_PAD)
        s = lax.dot_general(qh, kh, (((2,), (2,)), ((0,), (0,))),
                            preferred_element_type=jnp.float32) * scale + kbias
        m = jnp.max(s, axis=-1, keepdims=True)
        p = jnp.exp(s - m)
        p = p * pl.reciprocal(jnp.sum(p, axis=-1, keepdims=True), approx=True)
        # PV: contract keys, batch over BATCH -> (BATCH, SEQ_PAD, HEAD_DIM)
        outs.append(lax.dot_general(p.astype(MATMUL_DTYPE), vh,
                                    (((2,), (1,)), ((0,), (0,))),
                                    preferred_element_type=jnp.float32))
    return jnp.concatenate(outs, axis=-1).reshape(TOKENS_PAD, HIDDEN)


# ------------------------------- fused forward kernel ------------------------------
def _fused_kernel(
    patches_ref, patch_w_ref, cls_pos_ref, pre_g_ref, pre_b_ref,
    ln1_g_ref, ln1_b_ref, qkv_w_ref, qkv_b_ref, o_w_ref, o_b_ref,
    ln2_g_ref, ln2_b_ref, fc1_w_ref, fc1_b_ref, fc2_w_ref, fc2_b_ref,
    post_g_ref, post_b_ref, head_w_ref, head_b_ref,
    probs_ref, h_ref,
):
    # ---- CLIP vision embeddings: patch conv as matmul (no bias), scatter into padded buffer ----
    emb = _mm(patches_ref[...], patch_w_ref[...])          # (B*NUM_PATCHES, HIDDEN)
    cls_row = cls_pos_ref[0:1, :]                          # (1, HIDDEN)  = cls + pos[0]
    pos_rest = cls_pos_ref[1:, :]                          # (NUM_PATCHES, HIDDEN)
    h_ref[...] = jnp.zeros((TOKENS_PAD, HIDDEN), jnp.float32)
    for b in range(BATCH):
        r0 = b * SEQ_PAD                                   # 8-aligned batch row offset
        h_ref[pl.ds(r0, 1), :] = cls_row
        h_ref[pl.ds(r0 + 1, NUM_PATCHES), :] = (
            emb[b * NUM_PATCHES:(b + 1) * NUM_PATCHES, :] + pos_rest)

    h = _ln(h_ref[...], pre_g_ref[...], pre_b_ref[...])    # CLIP pre_layrnorm, (48, HIDDEN)

    # additive key-padding bias: pad key positions (>= SEQ) get NEG_INF
    key_ids = lax.broadcasted_iota(jnp.int32, (1, SEQ_PAD), 1)
    kbias = jnp.where(key_ids < SEQ, 0.0, NEG_INF).astype(jnp.float32).reshape(1, 1, SEQ_PAD)

    # ---- transformer encoder: static layer loop, activation stays in VMEM/vregs ----
    for l in range(LAYERS):
        xn = _ln(h, ln1_g_ref[l], ln1_b_ref[l])
        qkv = _mm(xn, qkv_w_ref[l]) + qkv_b_ref[l]          # fused Q|K|V, 3*HIDDEN wide
        attn = _mha(qkv, kbias)
        h = h + _mm(attn, o_w_ref[l]) + o_b_ref[l]
        xn = _ln(h, ln2_g_ref[l], ln2_b_ref[l])
        ff = _mm(xn, fc1_w_ref[l]) + fc1_b_ref[l]
        ff = ff * jax.nn.sigmoid(1.702 * ff)                # CLIP quick_gelu
        h = h + _mm(ff, fc2_w_ref[l]) + fc2_b_ref[l]

    # ---- head: pooler_output = post_LN(CLS), Dropout(identity) -> Linear -> Softmax ----
    h_ref[...] = h
    pooled = h_ref[pl.ds(0, BATCH, stride=SEQ_PAD), :]      # strided CLS gather, (B, HIDDEN)
    pooled = _ln(pooled, post_g_ref[...], post_b_ref[...])
    # padded logits: pad-lane bias is NEG_INF so their softmax weight is exactly 0
    logits = _mm(pooled, head_w_ref[...]) + head_b_ref[...] # (B, HEAD_PAD)
    m = jnp.max(logits, axis=-1, keepdims=True)
    e = jnp.exp(logits - m)
    probs_ref[...] = (e * pl.reciprocal(jnp.sum(e, axis=-1, keepdims=True),
                                        approx=True)).astype(probs_ref.dtype)


def _fused_forward(*args):
    # Grid-less call: every operand is tiny and lives whole in VMEM; the entire forward
    # is one kernel invocation (no per-layer dispatch, no HBM round-trips, no
    # double-buffering of layer-invariant inputs).
    return pl.pallas_call(
        _fused_kernel,
        out_shape=jax.ShapeDtypeStruct((BATCH, HEAD_PAD), jnp.float32),
        scratch_shapes=[pltpu.VMEM((TOKENS_PAD, HIDDEN), jnp.float32)],
    )(*args)


# ------------------------------------ glue (JAX) -----------------------------------
def patchify(x):
    """NCHW image -> (B, num_patches, C*P*P); equivalent to stride=P conv im2col."""
    B, C, H, W = x.shape
    p = PATCH
    x = x.reshape(B, C, H // p, p, W // p, p)
    x = x.transpose(0, 2, 4, 1, 3, 5)  # (B, H//p, W//p, C, p, p)
    return x.reshape(B, (H // p) * (W // p), C * p * p)


def init_params(key):
    def norm(k, shape, scale=0.02):
        return scale * jax.random.normal(k, shape, dtype=jnp.float32)

    keys = iter(jax.random.split(key, 6 * LAYERS + 8))

    patch_w = norm(next(keys), (PATCH_DIM, HIDDEN))
    cls = norm(next(keys), (HIDDEN,))
    pos = norm(next(keys), (SEQ, HIDDEN))
    cls_pos = pos.at[0, :].add(cls)          # row 0 = cls + pos[0], rows 1: = pos[1:]

    head_w = norm(next(keys), (HIDDEN, NUM_CLASSES))
    head_b = jnp.zeros((NUM_CLASSES,), jnp.float32)
    head_w_pad = jnp.zeros((HIDDEN, HEAD_PAD), jnp.float32).at[:, :NUM_CLASSES].set(head_w)
    head_b_pad = jnp.full((1, HEAD_PAD), NEG_INF, jnp.float32).at[0, :NUM_CLASSES].set(head_b)

    ln1_g, ln1_b, qkv_w, qkv_b = [], [], [], []
    o_w, o_b, ln2_g, ln2_b = [], [], [], []
    fc1_w, fc1_b, fc2_w, fc2_b = [], [], [], []
    for _ in range(LAYERS):
        ln1_g.append(jnp.ones((1, HIDDEN), jnp.float32))
        ln1_b.append(jnp.zeros((1, HIDDEN), jnp.float32))
        qw = norm(next(keys), (HIDDEN, HIDDEN))
        kw = norm(next(keys), (HIDDEN, HIDDEN))
        vw = norm(next(keys), (HIDDEN, HIDDEN))
        qkv_w.append(jnp.concatenate([qw, kw, vw], axis=1))       # (HIDDEN, 3*HIDDEN)
        qkv_b.append(jnp.zeros((1, 3 * HIDDEN), jnp.float32))
        o_w.append(norm(next(keys), (HIDDEN, HIDDEN)))
        o_b.append(jnp.zeros((1, HIDDEN), jnp.float32))
        ln2_g.append(jnp.ones((1, HIDDEN), jnp.float32))
        ln2_b.append(jnp.zeros((1, HIDDEN), jnp.float32))
        fc1_w.append(norm(next(keys), (HIDDEN, MLP)))
        fc1_b.append(jnp.zeros((1, MLP), jnp.float32))
        fc2_w.append(norm(next(keys), (MLP, HIDDEN)))
        fc2_b.append(jnp.zeros((1, HIDDEN), jnp.float32))

    stack = lambda xs: jnp.stack(xs, axis=0)
    to_mxu = lambda a: a.astype(MATMUL_DTYPE)     # matmul weights stored in bf16

    return {
        "patch_w": to_mxu(patch_w),
        "cls_pos": cls_pos,
        "pre_ln_g": jnp.ones((1, HIDDEN), jnp.float32),
        "pre_ln_b": jnp.zeros((1, HIDDEN), jnp.float32),
        "ln1_g": stack(ln1_g), "ln1_b": stack(ln1_b),
        "qkv_w": to_mxu(stack(qkv_w)), "qkv_b": stack(qkv_b),
        "o_w": to_mxu(stack(o_w)), "o_b": stack(o_b),
        "ln2_g": stack(ln2_g), "ln2_b": stack(ln2_b),
        "fc1_w": to_mxu(stack(fc1_w)), "fc1_b": stack(fc1_b),
        "fc2_w": to_mxu(stack(fc2_w)), "fc2_b": stack(fc2_b),
        "post_ln_g": jnp.ones((1, HIDDEN), jnp.float32),
        "post_ln_b": jnp.zeros((1, HIDDEN), jnp.float32),
        "head_w": to_mxu(head_w_pad),
        "head_b": head_b_pad,
    }


def aesclip_forward(params, x):
    # Dropout(p=0.1) in the head is identity at inference time.
    patches = patchify(x).reshape(BATCH * NUM_PATCHES, PATCH_DIM)
    probs_pad = _fused_forward(
        patches, params["patch_w"], params["cls_pos"],
        params["pre_ln_g"], params["pre_ln_b"],
        params["ln1_g"], params["ln1_b"], params["qkv_w"], params["qkv_b"],
        params["o_w"], params["o_b"], params["ln2_g"], params["ln2_b"],
        params["fc1_w"], params["fc1_b"], params["fc2_w"], params["fc2_b"],
        params["post_ln_g"], params["post_ln_b"],
        params["head_w"], params["head_b"],
    )
    return probs_pad[:, :NUM_CLASSES]


if __name__ == "__main__":
    key = jax.random.PRNGKey(0)
    pkey, xkey = jax.random.split(key)
    params = init_params(pkey)
    # TODO(synk): pretrained 'openai/clip-vit-base-patch32' weights cannot be loaded
    # in-script; weights are deterministically random-initialized at reduced size.
    x = jax.random.normal(xkey, (BATCH, CHANNELS, IMAGE, IMAGE), dtype=jnp.float32)

    out = jax.jit(aesclip_forward)(params, x)
    out = jax.block_until_ready(out)

    assert out.shape == (BATCH, NUM_CLASSES)
    # rows of the softmax output must sum to 1 (approx-reciprocal normalization)
    assert jnp.allclose(jnp.sum(out, axis=-1), 1.0, atol=1e-2)
    print("KERNEL_OK")
</pallas_src>

<mosaic_0001>
module attributes {stable_mosaic.version = 11 : i64} {
  func.func @_fused_kernel(%arg0: memref<32x192xf32, #tpu.memory_space<vmem>>, %arg1: memref<192x64xbf16, #tpu.memory_space<vmem>>, %arg2: memref<17x64xf32, #tpu.memory_space<vmem>>, %arg3: memref<1x64xf32, #tpu.memory_space<vmem>>, %arg4: memref<1x64xf32, #tpu.memory_space<vmem>>, %arg5: memref<2x1x64xf32, #tpu.memory_space<vmem>>, %arg6: memref<2x1x64xf32, #tpu.memory_space<vmem>>, %arg7: memref<2x64x192xbf16, #tpu.memory_space<vmem>>, %arg8: memref<2x1x192xf32, #tpu.memory_space<vmem>>, %arg9: memref<2x64x64xbf16, #tpu.memory_space<vmem>>, %arg10: memref<2x1x64xf32, #tpu.memory_space<vmem>>, %arg11: memref<2x1x64xf32, #tpu.memory_space<vmem>>, %arg12: memref<2x1x64xf32, #tpu.memory_space<vmem>>, %arg13: memref<2x64x128xbf16, #tpu.memory_space<vmem>>, %arg14: memref<2x1x128xf32, #tpu.memory_space<vmem>>, %arg15: memref<2x128x64xbf16, #tpu.memory_space<vmem>>, %arg16: memref<2x1x64xf32, #tpu.memory_space<vmem>>, %arg17: memref<1x64xf32, #tpu.memory_space<vmem>>, %arg18: memref<1x64xf32, #tpu.memory_space<vmem>>, %arg19: memref<64x128xbf16, #tpu.memory_space<vmem>>, %arg20: memref<1x128xf32, #tpu.memory_space<vmem>>, %arg21: memref<2x128xf32, #tpu.memory_space<vmem>>, %arg22: memref<48x64xf32, #tpu.memory_space<vmem>>) attributes {dimension_semantics = [], scalar_prefetch = 0 : i64, scratch_operands = 1 : i64, tpu.core_type = #tpu.core_type<tc>} {
    %c0 = arith.constant 0 : index
    %c0_0 = arith.constant 0 : index
    %0 = vector.load %arg0[%c0, %c0_0] : memref<32x192xf32, #tpu.memory_space<vmem>>, vector<32x192xf32>
    %c0_1 = arith.constant 0 : index
    %c0_2 = arith.constant 0 : index
    %1 = vector.load %arg1[%c0_1, %c0_2] : memref<192x64xbf16, #tpu.memory_space<vmem>>, vector<192x64xbf16>
    %2 = arith.truncf %0 : vector<32x192xf32> to vector<32x192xbf16>
    %cst = arith.constant dense<0.000000e+00> : vector<32x64xf32>
    %3 = tpu.matmul %2, %1, %cst {dimension_numbers = #tpu.dot_dimension_numbers<[1], [0], [0], [1], [0, 0, 1, 1], [], []>} : vector<32x192xbf16>, vector<192x64xbf16>, vector<32x64xf32> -> vector<32x64xf32>
    %c0_3 = arith.constant 0 : index
    %c0_4 = arith.constant 0 : index
    %4 = vector.load %arg2[%c0_3, %c0_4] : memref<17x64xf32, #tpu.memory_space<vmem>>, vector<1x64xf32>
    %c1 = arith.constant 1 : index
    %c0_5 = arith.constant 0 : index
    %5 = vector.load %arg2[%c1, %c0_5] : memref<17x64xf32, #tpu.memory_space<vmem>>, vector<16x64xf32>
    %cst_6 = arith.constant 0.000000e+00 : f32
    %6 = vector.broadcast %cst_6 : f32 to vector<48x64xf32>
    %c0_7 = arith.constant 0 : index
    %c0_8 = arith.constant 0 : index
    %7 = vector.load %arg22[%c0_7, %c0_8] : memref<48x64xf32, #tpu.memory_space<vmem>>, vector<48x64xf32>
    tpu.vector_store %arg22[%c0_7, %c0_8], %6 {strides = array<i32>} : memref<48x64xf32, #tpu.memory_space<vmem>>, vector<48x64xf32>,
    %c0_9 = arith.constant 0 : index
    %c0_10 = arith.constant 0 : index
    %8 = vector.load %arg22[%c0_9, %c0_10] : memref<48x64xf32, #tpu.memory_space<vmem>>, vector<1x64xf32>
    tpu.vector_store %arg22[%c0_9, %c0_10], %4 {strides = array<i32>} : memref<48x64xf32, #tpu.memory_space<vmem>>, vector<1x64xf32>,
    %9 = vector.extract_strided_slice %3 {offsets = [0, 0], sizes = [16, 64], strides = [1, 1]} : vector<32x64xf32> to vector<16x64xf32>
    %10 = arith.addf %9, %5 : vector<16x64xf32>
    %c1_11 = arith.constant 1 : index
    %c0_12 = arith.constant 0 : index
    %11 = vector.load %arg22[%c1_11, %c0_12] : memref<48x64xf32, #tpu.memory_space<vmem>>, vector<16x64xf32>
    tpu.vector_store %arg22[%c1_11, %c0_12], %10 {strides = array<i32>} : memref<48x64xf32, #tpu.memory_space<vmem>>, vector<16x64xf32>,
    %c24 = arith.constant 24 : index
    %c0_13 = arith.constant 0 : index
    %12 = vector.load %arg22[%c24, %c0_13] : memref<48x64xf32, #tpu.memory_space<vmem>>, vector<1x64xf32>
    tpu.vector_store %arg22[%c24, %c0_13], %4 {strides = array<i32>} : memref<48x64xf32, #tpu.memory_space<vmem>>, vector<1x64xf32>,
    %13 = vector.extract_strided_slice %3 {offsets = [16, 0], sizes = [16, 64], strides = [1, 1]} : vector<32x64xf32> to vector<16x64xf32>
    %14 = arith.addf %13, %5 : vector<16x64xf32>
    %c25 = arith.constant 25 : index
    %c0_14 = arith.constant 0 : index
    %15 = vector.load %arg22[%c25, %c0_14] : memref<48x64xf32, #tpu.memory_space<vmem>>, vector<16x64xf32>
    tpu.vector_store %arg22[%c25, %c0_14], %14 {strides = array<i32>} : memref<48x64xf32, #tpu.memory_space<vmem>>, vector<16x64xf32>,
    %c0_15 = arith.constant 0 : index
    %c0_16 = arith.constant 0 : index
    %16 = vector.load %arg22[%c0_15, %c0_16] : memref<48x64xf32, #tpu.memory_space<vmem>>, vector<48x64xf32>
    %c0_17 = arith.constant 0 : index
    %c0_18 = arith.constant 0 : index
    %17 = vector.load %arg3[%c0_17, %c0_18] : memref<1x64xf32, #tpu.memory_space<vmem>>, vector<1x64xf32>
    %c0_19 = arith.constant 0 : index
    %c0_20 = arith.constant 0 : index
    %18 = vector.load %arg4[%c0_19, %c0_20] : memref<1x64xf32, #tpu.memory_space<vmem>>, vector<1x64xf32>
    %cst_21 = arith.constant dense<0.000000e+00> : vector<48xf32>
    %19 = vector.multi_reduction <add>, %16, %cst_21 [1] : vector<48x64xf32> to vector<48xf32>
    %20 = vector.shape_cast %19 : vector<48xf32> to vector<48x1xf32>
    %cst_22 = arith.constant 6.400000e+01 : f32
    %21 = vector.broadcast %cst_22 : f32 to vector<48x1xf32>
    %22 = arith.divf %20, %21 : vector<48x1xf32>
    %23 = vector.broadcast %22 : vector<48x1xf32> to vector<48x64xf32>
    %24 = arith.subf %16, %23 : vector<48x64xf32>
    %25 = arith.mulf %24, %24 : vector<48x64xf32>
    %cst_23 = arith.constant dense<0.000000e+00> : vector<48xf32>
    %26 = vector.multi_reduction <add>, %25, %cst_23 [1] : vector<48x64xf32> to vector<48xf32>
    %27 = vector.shape_cast %26 : vector<48xf32> to vector<48x1xf32>
    %cst_24 = arith.constant 6.400000e+01 : f32
    %28 = vector.broadcast %cst_24 : f32 to vector<48x1xf32>
    %29 = arith.divf %27, %28 : vector<48x1xf32>
    %cst_25 = arith.constant 9.99999974E-6 : f32
    %30 = vector.broadcast %cst_25 : f32 to vector<48x1xf32>
    %31 = arith.addf %29, %30 : vector<48x1xf32>
    %32 = math.rsqrt %31 : vector<48x1xf32>
    %33 = vector.broadcast %32 : vector<48x1xf32> to vector<48x64xf32>
    %34 = arith.mulf %24, %33 : vector<48x64xf32>
    %35 = vector.broadcast %17 : vector<1x64xf32> to vector<48x64xf32>
    %36 = arith.mulf %34, %35 : vector<48x64xf32>
    %37 = vector.broadcast %18 : vector<1x64xf32> to vector<48x64xf32>
    %38 = arith.addf %36, %37 : vector<48x64xf32>
    %39 = tpu.iota {dimensions = array<i32: 1>} : vector<1x24xi32>
    %c17_i32 = arith.constant 17 : i32
    %40 = vector.broadcast %c17_i32 : i32 to vector<1x24xi32>
    %41 = arith.cmpi slt, %39, %40 : vector<1x24xi32>
    %cst_26 = arith.constant 0.000000e+00 : f32
    %cst_27 = arith.constant -1.000000e+30 : f32
    %42 = vector.broadcast %cst_26 : f32 to vector<1x24xf32>
    %43 = vector.broadcast %cst_27 : f32 to vector<1x24xf32>
    %44 = arith.select %41, %42, %43 : vector<1x24xi1>, vector<1x24xf32>
    %45 = vector.shape_cast %44 : vector<1x24xf32> to vector<1x1x24xf32>
    %c0_28 = arith.constant 0 : index
    %c0_29 = arith.constant 0 : index
    %c0_30 = arith.constant 0 : index
    %46 = vector.load %arg5[%c0_28, %c0_29, %c0_30] : memref<2x1x64xf32, #tpu.memory_space<vmem>>, vector<1x1x64xf32>
    %47 = vector.shape_cast %46 : vector<1x1x64xf32> to vector<1x64xf32>
    %c0_31 = arith.constant 0 : index
    %c0_32 = arith.constant 0 : index
    %c0_33 = arith.constant 0 : index
    %48 = vector.load %arg6[%c0_31, %c0_32, %c0_33] : memref<2x1x64xf32, #tpu.memory_space<vmem>>, vector<1x1x64xf32>
    %49 = vector.shape_cast %48 : vector<1x1x64xf32> to vector<1x64xf32>
    %cst_34 = arith.constant dense<0.000000e+00> : vector<48xf32>
    %50 = vector.multi_reduction <add>, %38, %cst_34 [1] : vector<48x64xf32> to vector<48xf32>
    %51 = vector.shape_cast %50 : vector<48xf32> to vector<48x1xf32>
    %cst_35 = arith.constant 6.400000e+01 : f32
    %52 = vector.broadcast %cst_35 : f32 to vector<48x1xf32>
    %53 = arith.divf %51, %52 : vector<48x1xf32>
    %54 = vector.broadcast %53 : vector<48x1xf32> to vector<48x64xf32>
    %55 = arith.subf %38, %54 : vector<48x64xf32>
    %56 = arith.mulf %55, %55 : vector<48x64xf32>
    %cst_36 = arith.constant dense<0.000000e+00> : vector<48xf32>
    %57 = vector.multi_reduction <add>, %56, %cst_36 [1] : vector<48x64xf32> to vector<48xf32>
    %58 = vector.shape_cast %57 : vector<48xf32> to vector<48x1xf32>
    %cst_37 = arith.constant 6.400000e+01 : f32
    %59 = vector.broadcast %cst_37 : f32 to vector<48x1xf32>
    %60 = arith.divf %58, %59 : vector<48x1xf32>
    %cst_38 = arith.constant 9.99999974E-6 : f32
    %61 = vector.broadcast %cst_38 : f32 to vector<48x1xf32>
    %62 = arith.addf %60, %61 : vector<48x1xf32>
    %63 = math.rsqrt %62 : vector<48x1xf32>
    %64 = vector.broadcast %63 : vector<48x1xf32> to vector<48x64xf32>
    %65 = arith.mulf %55, %64 : vector<48x64xf32>
    %66 = vector.broadcast %47 : vector<1x64xf32> to vector<48x64xf32>
    %67 = arith.mulf %65, %66 : vector<48x64xf32>
    %68 = vector.broadcast %49 : vector<1x64xf32> to vector<48x64xf32>
    %69 = arith.addf %67, %68 : vector<48x64xf32>
    %c0_39 = arith.constant 0 : index
    %c0_40 = arith.constant 0 : index
    %c0_41 = arith.constant 0 : index
    %70 = vector.load %arg7[%c0_39, %c0_40, %c0_41] : memref<2x64x192xbf16, #tpu.memory_space<vmem>>, vector<1x64x192xbf16>
    %71 = vector.shape_cast %70 : vector<1x64x192xbf16> to vector<64x192xbf16>
    %72 = arith.truncf %69 : vector<48x64xf32> to vector<48x64xbf16>
    %cst_42 = arith.constant dense<0.000000e+00> : vector<48x192xf32>
    %73 = tpu.matmul %72, %71, %cst_42 {dimension_numbers = #tpu.dot_dimension_numbers<[1], [0], [0], [1], [0, 0, 1, 1], [], []>} : vector<48x64xbf16>, vector<64x192xbf16>, vector<48x192xf32> -> vector<48x192xf32>
    %c0_43 = arith.constant 0 : index
    %c0_44 = arith.constant 0 : index
    %c0_45 = arith.constant 0 : index
    %74 = vector.load %arg8[%c0_43, %c0_44, %c0_45] : memref<2x1x192xf32, #tpu.memory_space<vmem>>, vector<1x1x192xf32>
    %75 = vector.shape_cast %74 : vector<1x1x192xf32> to vector<1x192xf32>
    %76 = vector.broadcast %75 : vector<1x192xf32> to vector<48x192xf32>
    %77 = arith.addf %73, %76 : vector<48x192xf32>
    %78 = vector.extract_strided_slice %77 {offsets = [0, 0], sizes = [48, 64], strides = [1, 1]} : vector<48x192xf32> to vector<48x64xf32>
    %79 = vector.shape_cast %78 : vector<48x64xf32> to vector<2x24x64xf32>
    %80 = arith.truncf %79 : vector<2x24x64xf32> to vector<2x24x64xbf16>
    %81 = vector.extract_strided_slice %77 {offsets = [0, 64], sizes = [48, 64], strides = [1, 1]} : vector<48x192xf32> to vector<48x64xf32>
    %82 = vector.shape_cast %81 : vector<48x64xf32> to vector<2x24x64xf32>
    %83 = arith.truncf %82 : vector<2x24x64xf32> to vector<2x24x64xbf16>
    %84 = vector.extract_strided_slice %77 {offsets = [0, 128], sizes = [48, 64], strides = [1, 1]} : vector<48x192xf32> to vector<48x64xf32>
    %85 = vector.shape_cast %84 : vector<48x64xf32> to vector<2x24x64xf32>
    %86 = arith.truncf %85 : vector<2x24x64xf32> to vector<2x24x64xbf16>
    %87 = vector.extract_strided_slice %80 {offsets = [0, 0, 0], sizes = [2, 24, 16], strides = [1, 1, 1]} : vector<2x24x64xbf16> to vector<2x24x16xbf16>
    %88 = vector.extract_strided_slice %83 {offsets = [0, 0, 0], sizes = [2, 24, 16], strides = [1, 1, 1]} : vector<2x24x64xbf16> to vector<2x24x16xbf16>
    %89 = vector.extract_strided_slice %86 {offsets = [0, 0, 0], sizes = [2, 24, 16], strides = [1, 1, 1]} : vector<2x24x64xbf16> to vector<2x24x16xbf16>
    %cst_46 = arith.constant dense<0.000000e+00> : vector<2x24x24xf32>
    %90 = tpu.matmul %87, %88, %cst_46 {dimension_numbers = #tpu.dot_dimension_numbers<[2], [2], [1], [1], [0, 0, 0, 1, 1, 1], [0], [0]>} : vector<2x24x16xbf16>, vector<2x24x16xbf16>, vector<2x24x24xf32> -> vector<2x24x24xf32>
    %cst_47 = arith.constant 2.500000e-01 : f32
    %91 = vector.broadcast %cst_47 : f32 to vector<2x24x24xf32>
    %92 = arith.mulf %90, %91 : vector<2x24x24xf32>
    %93 = vector.broadcast %45 : vector<1x1x24xf32> to vector<2x24x24xf32>
    %94 = arith.addf %92, %93 : vector<2x24x24xf32>
    %cst_48 = arith.constant dense<0xFF800000> : vector<2x24xf32>
    %95 = vector.multi_reduction <maximumf>, %94, %cst_48 [2] : vector<2x24x24xf32> to vector<2x24xf32>
    %96 = vector.shape_cast %95 : vector<2x24xf32> to vector<2x24x1xf32>
    %97 = vector.broadcast %96 : vector<2x24x1xf32> to vector<2x24x24xf32>
    %98 = arith.subf %94, %97 : vector<2x24x24xf32>
    %99 = math.exp %98 : vector<2x24x24xf32>
    %cst_49 = arith.constant dense<0.000000e+00> : vector<2x24xf32>
    %100 = vector.multi_reduction <add>, %99, %cst_49 [2] : vector<2x24x24xf32> to vector<2x24xf32>
    %101 = vector.shape_cast %100 : vector<2x24xf32> to vector<2x24x1xf32>
    %102 = tpu.reciprocal %101 {approx = true} : vector<2x24x1xf32> -> vector<2x24x1xf32>
    %103 = vector.broadcast %102 : vector<2x24x1xf32> to vector<2x24x24xf32>
    %104 = arith.mulf %99, %103 : vector<2x24x24xf32>
    %105 = arith.truncf %104 : vector<2x24x24xf32> to vector<2x24x24xbf16>
    %cst_50 = arith.constant dense<0.000000e+00> : vector<2x24x16xf32>
    %106 = tpu.matmul %105, %89, %cst_50 {dimension_numbers = #tpu.dot_dimension_numbers<[2], [1], [1], [2], [0, 0, 0, 1, 1, 2], [0], [0]>} : vector<2x24x24xbf16>, vector<2x24x16xbf16>, vector<2x24x16xf32> -> vector<2x24x16xf32>
    %107 = vector.extract_strided_slice %80 {offsets = [0, 0, 16], sizes = [2, 24, 16], strides = [1, 1, 1]} : vector<2x24x64xbf16> to vector<2x24x16xbf16>
    %108 = vector.extract_strided_slice %83 {offsets = [0, 0, 16], sizes = [2, 24, 16], strides = [1, 1, 1]} : vector<2x24x64xbf16> to vector<2x24x16xbf16>
    %109 = vector.extract_strided_slice %86 {offsets = [0, 0, 16], sizes = [2, 24, 16], strides = [1, 1, 1]} : vector<2x24x64xbf16> to vector<2x24x16xbf16>
    %cst_51 = arith.constant dense<0.000000e+00> : vector<2x24x24xf32>
    %110 = tpu.matmul %107, %108, %cst_51 {dimension_numbers = #tpu.dot_dimension_numbers<[2], [2], [1], [1], [0, 0, 0, 1, 1, 1], [0], [0]>} : vector<2x24x16xbf16>, vector<2x24x16xbf16>, vector<2x24x24xf32> -> vector<2x24x24xf32>
    %cst_52 = arith.constant 2.500000e-01 : f32
    %111 = vector.broadcast %cst_52 : f32 to vector<2x24x24xf32>
    %112 = arith.mulf %110, %111 : vector<2x24x24xf32>
    %113 = vector.broadcast %45 : vector<1x1x24xf32> to vector<2x24x24xf32>
    %114 = arith.addf %112, %113 : vector<2x24x24xf32>
    %cst_53 = arith.constant dense<0xFF800000> : vector<2x24xf32>
    %115 = vector.multi_reduction <maximumf>, %114, %cst_53 [2] : vector<2x24x24xf32> to vector<2x24xf32>
    %116 = vector.shape_cast %115 : vector<2x24xf32> to vector<2x24x1xf32>
    %117 = vector.broadcast %116 : vector<2x24x1xf32> to vector<2x24x24xf32>
    %118 = arith.subf %114, %117 : vector<2x24x24xf32>
    %119 = math.exp %118 : vector<2x24x24xf32>
    %cst_54 = arith.constant dense<0.000000e+00> : vector<2x24xf32>
    %120 = vector.multi_reduction <add>, %119, %cst_54 [2] : vector<2x24x24xf32> to vector<2x24xf32>
    %121 = vector.shape_cast %120 : vector<2x24xf32> to vector<2x24x1xf32>
    %122 = tpu.reciprocal %121 {approx = true} : vector<2x24x1xf32> -> vector<2x24x1xf32>
    %123 = vector.broadcast %122 : vector<2x24x1xf32> to vector<2x24x24xf32>
    %124 = arith.mulf %119, %123 : vector<2x24x24xf32>
    %125 = arith.truncf %124 : vector<2x24x24xf32> to vector<2x24x24xbf16>
    %cst_55 = arith.constant dense<0.000000e+00> : vector<2x24x16xf32>
    %126 = tpu.matmul %125, %109, %cst_55 {dimension_numbers = #tpu.dot_dimension_numbers<[2], [1], [1], [2], [0, 0, 0, 1, 1, 2], [0], [0]>} : vector<2x24x24xbf16>, vector<2x24x16xbf16>, vector<2x24x16xf32> -> vector<2x24x16xf32>
    %127 = vector.extract_strided_slice %80 {offsets = [0, 0, 32], sizes = [2, 24, 16], strides = [1, 1, 1]} : vector<2x24x64xbf16> to vector<2x24x16xbf16>
    %128 = vector.extract_strided_slice %83 {offsets = [0, 0, 32], sizes = [2, 24, 16], strides = [1, 1, 1]} : vector<2x24x64xbf16> to vector<2x24x16xbf16>
    %129 = vector.extract_strided_slice %86 {offsets = [0, 0, 32], sizes = [2, 24, 16], strides = [1, 1, 1]} : vector<2x24x64xbf16> to vector<2x24x16xbf16>
    %cst_56 = arith.constant dense<0.000000e+00> : vector<2x24x24xf32>
    %130 = tpu.matmul %127, %128, %cst_56 {dimension_numbers = #tpu.dot_dimension_numbers<[2], [2], [1], [1], [0, 0, 0, 1, 1, 1], [0], [0]>} : vector<2x24x16xbf16>, vector<2x24x16xbf16>, vector<2x24x24xf32> -> vector<2x24x24xf32>
    %cst_57 = arith.constant 2.500000e-01 : f32
    %131 = vector.broadcast %cst_57 : f32 to vector<2x24x24xf32>
    %132 = arith.mulf %130, %131 : vector<2x24x24xf32>
    %133 = vector.broadcast %45 : vector<1x1x24xf32> to vector<2x24x24xf32>
    %134 = arith.addf %132, %133 : vector<2x24x24xf32>
    %cst_58 = arith.constant dense<0xFF800000> : vector<2x24xf32>
    %135 = vector.multi_reduction <maximumf>, %134, %cst_58 [2] : vector<2x24x24xf32> to vector<2x24xf32>
    %136 = vector.shape_cast %135 : vector<2x24xf32> to vector<2x24x1xf32>
    %137 = vector.broadcast %136 : vector<2x24x1xf32> to vector<2x24x24xf32>
    %138 = arith.subf %134, %137 : vector<2x24x24xf32>
    %139 = math.exp %138 : vector<2x24x24xf32>
    %cst_59 = arith.constant dense<0.000000e+00> : vector<2x24xf32>
    %140 = vector.multi_reduction <add>, %139, %cst_59 [2] : vector<2x24x24xf32> to vector<2x24xf32>
    %141 = vector.shape_cast %140 : vector<2x24xf32> to vector<2x24x1xf32>
    %142 = tpu.reciprocal %141 {approx = true} : vector<2x24x1xf32> -> vector<2x24x1xf32>
    %143 = vector.broadcast %142 : vector<2x24x1xf32> to vector<2x24x24xf32>
    %144 = arith.mulf %139, %143 : vector<2x24x24xf32>
    %145 = arith.truncf %144 : vector<2x24x24xf32> to vector<2x24x24xbf16>
    %cst_60 = arith.constant dense<0.000000e+00> : vector<2x24x16xf32>
    %146 = tpu.matmul %145, %129, %cst_60 {dimension_numbers = #tpu.dot_dimension_numbers<[2], [1], [1], [2], [0, 0, 0, 1, 1, 2], [0], [0]>} : vector<2x24x24xbf16>, vector<2x24x16xbf16>, vector<2x24x16xf32> -> vector<2x24x16xf32>
    %147 = vector.extract_strided_slice %80 {offsets = [0, 0, 48], sizes = [2, 24, 16], strides = [1, 1, 1]} : vector<2x24x64xbf16> to vector<2x24x16xbf16>
    %148 = vector.extract_strided_slice %83 {offsets = [0, 0, 48], sizes = [2, 24, 16], strides = [1, 1, 1]} : vector<2x24x64xbf16> to vector<2x24x16xbf16>
    %149 = vector.extract_strided_slice %86 {offsets = [0, 0, 48], sizes = [2, 24, 16], strides = [1, 1, 1]} : vector<2x24x64xbf16> to vector<2x24x16xbf16>
    %cst_61 = arith.constant dense<0.000000e+00> : vector<2x24x24xf32>
    %150 = tpu.matmul %147, %148, %cst_61 {dimension_numbers = #tpu.dot_dimension_numbers<[2], [2], [1], [1], [0, 0, 0, 1, 1, 1], [0], [0]>} : vector<2x24x16xbf16>, vector<2x24x16xbf16>, vector<2x24x24xf32> -> vector<2x24x24xf32>
    %cst_62 = arith.constant 2.500000e-01 : f32
    %151 = vector.broadcast %cst_62 : f32 to vector<2x24x24xf32>
    %152 = arith.mulf %150, %151 : vector<2x24x24xf32>
    %153 = vector.broadcast %45 : vector<1x1x24xf32> to vector<2x24x24xf32>
    %154 = arith.addf %152, %153 : vector<2x24x24xf32>
    %cst_63 = arith.constant dense<0xFF800000> : vector<2x24xf32>
    %155 = vector.multi_reduction <maximumf>, %154, %cst_63 [2] : vector<2x24x24xf32> to vector<2x24xf32>
    %156 = vector.shape_cast %155 : vector<2x24xf32> to vector<2x24x1xf32>
    %157 = vector.broadcast %156 : vector<2x24x1xf32> to vector<2x24x24xf32>
    %158 = arith.subf %154, %157 : vector<2x24x24xf32>
    %159 = math.exp %158 : vector<2x24x24xf32>
    %cst_64 = arith.constant dense<0.000000e+00> : vector<2x24xf32>
    %160 = vector.multi_reduction <add>, %159, %cst_64 [2] : vector<2x24x24xf32> to vector<2x24xf32>
    %161 = vector.shape_cast %160 : vector<2x24xf32> to vector<2x24x1xf32>
    %162 = tpu.reciprocal %161 {approx = true} : vector<2x24x1xf32> -> vector<2x24x1xf32>
    %163 = vector.broadcast %162 : vector<2x24x1xf32> to vector<2x24x24xf32>
    %164 = arith.mulf %159, %163 : vector<2x24x24xf32>
    %165 = arith.truncf %164 : vector<2x24x24xf32> to vector<2x24x24xbf16>
    %cst_65 = arith.constant dense<0.000000e+00> : vector<2x24x16xf32>
    %166 = tpu.matmul %165, %149, %cst_65 {dimension_numbers = #tpu.dot_dimension_numbers<[2], [1], [1], [2], [0, 0, 0, 1, 1, 2], [0], [0]>} : vector<2x24x24xbf16>, vector<2x24x16xbf16>, vector<2x24x16xf32> -> vector<2x24x16xf32>
    %167 = tpu.concatenate %106, %126, %146, %166 in 2 : vector<2x24x16xf32>, vector<2x24x16xf32>, vector<2x24x16xf32>, vector<2x24x16xf32> -> vector<2x24x64xf32>
    %168 = vector.shape_cast %167 : vector<2x24x64xf32> to vector<48x64xf32>
    %c0_66 = arith.constant 0 : index
    %c0_67 = arith.constant 0 : index
    %c0_68 = arith.constant 0 : index
    %169 = vector.load %arg9[%c0_66, %c0_67, %c0_68] : memref<2x64x64xbf16, #tpu.memory_space<vmem>>, vector<1x64x64xbf16>
    %170 = vector.shape_cast %169 : vector<1x64x64xbf16> to vector<64x64xbf16>
    %171 = arith.truncf %168 : vector<48x64xf32> to vector<48x64xbf16>
    %cst_69 = arith.constant dense<0.000000e+00> : vector<48x64xf32>
    %172 = tpu.matmul %171, %170, %cst_69 {dimension_numbers = #tpu.dot_dimension_numbers<[1], [0], [0], [1], [0, 0, 1, 1], [], []>} : vector<48x64xbf16>, vector<64x64xbf16>, vector<48x64xf32> -> vector<48x64xf32>
    %173 = arith.addf %38, %172 : vector<48x64xf32>
    %c0_70 = arith.constant 0 : index
    %c0_71 = arith.constant 0 : index
    %c0_72 = arith.constant 0 : index
    %174 = vector.load %arg10[%c0_70, %c0_71, %c0_72] : memref<2x1x64xf32, #tpu.memory_space<vmem>>, vector<1x1x64xf32>
    %175 = vector.shape_cast %174 : vector<1x1x64xf32> to vector<1x64xf32>
    %176 = vector.broadcast %175 : vector<1x64xf32> to vector<48x64xf32>
    %177 = arith.addf %173, %176 : vector<48x64xf32>
    %c0_73 = arith.constant 0 : index
    %c0_74 = arith.constant 0 : index
    %c0_75 = arith.constant 0 : index
    %178 = vector.load %arg11[%c0_73, %c0_74, %c0_75] : memref<2x1x64xf32, #tpu.memory_space<vmem>>, vector<1x1x64xf32>
    %179 = vector.shape_cast %178 : vector<1x1x64xf32> to vector<1x64xf32>
    %c0_76 = arith.constant 0 : index
    %c0_77 = arith.constant 0 : index
    %c0_78 = arith.constant 0 : index
    %180 = vector.load %arg12[%c0_76, %c0_77, %c0_78] : memref<2x1x64xf32, #tpu.memory_space<vmem>>, vector<1x1x64xf32>
    %181 = vector.shape_cast %180 : vector<1x1x64xf32> to vector<1x64xf32>
    %cst_79 = arith.constant dense<0.000000e+00> : vector<48xf32>
    %182 = vector.multi_reduction <add>, %177, %cst_79 [1] : vector<48x64xf32> to vector<48xf32>
    %183 = vector.shape_cast %182 : vector<48xf32> to vector<48x1xf32>
    %cst_80 = arith.constant 6.400000e+01 : f32
    %184 = vector.broadcast %cst_80 : f32 to vector<48x1xf32>
    %185 = arith.divf %183, %184 : vector<48x1xf32>
    %186 = vector.broadcast %185 : vector<48x1xf32> to vector<48x64xf32>
    %187 = arith.subf %177, %186 : vector<48x64xf32>
    %188 = arith.mulf %187, %187 : vector<48x64xf32>
    %cst_81 = arith.constant dense<0.000000e+00> : vector<48xf32>
    %189 = vector.multi_reduction <add>, %188, %cst_81 [1] : vector<48x64xf32> to vector<48xf32>
    %190 = vector.shape_cast %189 : vector<48xf32> to vector<48x1xf32>
    %cst_82 = arith.constant 6.400000e+01 : f32
    %191 = vector.broadcast %cst_82 : f32 to vector<48x1xf32>
    %192 = arith.divf %190, %191 : vector<48x1xf32>
    %cst_83 = arith.constant 9.99999974E-6 : f32
    %193 = vector.broadcast %cst_83 : f32 to vector<48x1xf32>
    %194 = arith.addf %192, %193 : vector<48x1xf32>
    %195 = math.rsqrt %194 : vector<48x1xf32>
    %196 = vector.broadcast %195 : vector<48x1xf32> to vector<48x64xf32>
    %197 = arith.mulf %187, %196 : vector<48x64xf32>
    %198 = vector.broadcast %179 : vector<1x64xf32> to vector<48x64xf32>
    %199 = arith.mulf %197, %198 : vector<48x64xf32>
    %200 = vector.broadcast %181 : vector<1x64xf32> to vector<48x64xf32>
    %201 = arith.addf %199, %200 : vector<48x64xf32>
    %c0_84 = arith.constant 0 : index
    %c0_85 = arith.constant 0 : index
    %c0_86 = arith.constant 0 : index
    %202 = vector.load %arg13[%c0_84, %c0_85, %c0_86] : memref<2x64x128xbf16, #tpu.memory_space<vmem>>, vector<1x64x128xbf16>
    %203 = vector.shape_cast %202 : vector<1x64x128xbf16> to vector<64x128xbf16>
    %204 = arith.truncf %201 : vector<48x64xf32> to vector<48x64xbf16>
    %cst_87 = arith.constant dense<0.000000e+00> : vector<48x128xf32>
    %205 = tpu.matmul %204, %203, %cst_87 {dimension_numbers = #tpu.dot_dimension_numbers<[1], [0], [0], [1], [0, 0, 1, 1], [], []>} : vector<48x64xbf16>, vector<64x128xbf16>, vector<48x128xf32> -> vector<48x128xf32>
    %c0_88 = arith.constant 0 : index
    %c0_89 = arith.constant 0 : index
    %c0_90 = arith.constant 0 : index
    %206 = vector.load %arg14[%c0_88, %c0_89, %c0_90] : memref<2x1x128xf32, #tpu.memory_space<vmem>>, vector<1x1x128xf32>
    %207 = vector.shape_cast %206 : vector<1x1x128xf32> to vector<1x128xf32>
    %208 = vector.broadcast %207 : vector<1x128xf32> to vector<48x128xf32>
    %209 = arith.addf %205, %208 : vector<48x128xf32>
    %cst_91 = arith.constant 1.702000e+00 : f32
    %210 = vector.broadcast %cst_91 : f32 to vector<48x128xf32>
    %211 = arith.mulf %210, %209 : vector<48x128xf32>
    %212 = arith.negf %211 : vector<48x128xf32>
    %213 = math.exp %212 : vector<48x128xf32>
    %cst_92 = arith.constant 1.000000e+00 : f32
    %214 = vector.broadcast %cst_92 : f32 to vector<48x128xf32>
    %215 = arith.addf %214, %213 : vector<48x128xf32>
    %216 = arith.divf %214, %215 : vector<48x128xf32>
    %217 = arith.mulf %209, %216 : vector<48x128xf32>
    %c0_93 = arith.constant 0 : index
    %c0_94 = arith.constant 0 : index
    %c0_95 = arith.constant 0 : index
    %218 = vector.load %arg15[%c0_93, %c0_94, %c0_95] : memref<2x128x64xbf16, #tpu.memory_space<vmem>>, vector<1x128x64xbf16>
    %219 = vector.shape_cast %218 : vector<1x128x64xbf16> to vector<128x64xbf16>
    %220 = arith.truncf %217 : vector<48x128xf32> to vector<48x128xbf16>
    %cst_96 = arith.constant dense<0.000000e+00> : vector<48x64xf32>
    %221 = tpu.matmul %220, %219, %cst_96 {dimension_numbers = #tpu.dot_dimension_numbers<[1], [0], [0], [1], [0, 0, 1, 1], [], []>} : vector<48x128xbf16>, vector<128x64xbf16>, vector<48x64xf32> -> vector<48x64xf32>
    %222 = arith.addf %177, %221 : vector<48x64xf32>
    %c0_97 = arith.constant 0 : index
    %c0_98 = arith.constant 0 : index
    %c0_99 = arith.constant 0 : index
    %223 = vector.load %arg16[%c0_97, %c0_98, %c0_99] : memref<2x1x64xf32, #tpu.memory_space<vmem>>, vector<1x1x64xf32>
    %224 = vector.shape_cast %223 : vector<1x1x64xf32> to vector<1x64xf32>
    %225 = vector.broadcast %224 : vector<1x64xf32> to vector<48x64xf32>
    %226 = arith.addf %222, %225 : vector<48x64xf32>
    %c1_100 = arith.constant 1 : index
    %c0_101 = arith.constant 0 : index
    %c0_102 = arith.constant 0 : index
    %227 = vector.load %arg5[%c1_100, %c0_101, %c0_102] : memref<2x1x64xf32, #tpu.memory_space<vmem>>, vector<1x1x64xf32>
    %228 = vector.shape_cast %227 : vector<1x1x64xf32> to vector<1x64xf32>
    %c1_103 = arith.constant 1 : index
    %c0_104 = arith.constant 0 : index
    %c0_105 = arith.constant 0 : index
    %229 = vector.load %arg6[%c1_103, %c0_104, %c0_105] : memref<2x1x64xf32, #tpu.memory_space<vmem>>, vector<1x1x64xf32>
    %230 = vector.shape_cast %229 : vector<1x1x64xf32> to vector<1x64xf32>
    %cst_106 = arith.constant dense<0.000000e+00> : vector<48xf32>
    %231 = vector.multi_reduction <add>, %226, %cst_106 [1] : vector<48x64xf32> to vector<48xf32>
    %232 = vector.shape_cast %231 : vector<48xf32> to vector<48x1xf32>
    %cst_107 = arith.constant 6.400000e+01 : f32
    %233 = vector.broadcast %cst_107 : f32 to vector<48x1xf32>
    %234 = arith.divf %232, %233 : vector<48x1xf32>
    %235 = vector.broadcast %234 : vector<48x1xf32> to vector<48x64xf32>
    %236 = arith.subf %226, %235 : vector<48x64xf32>
    %237 = arith.mulf %236, %236 : vector<48x64xf32>
    %cst_108 = arith.constant dense<0.000000e+00> : vector<48xf32>
    %238 = vector.multi_reduction <add>, %237, %cst_108 [1] : vector<48x64xf32> to vector<48xf32>
    %239 = vector.shape_cast %238 : vector<48xf32> to vector<48x1xf32>
    %cst_109 = arith.constant 6.400000e+01 : f32
    %240 = vector.broadcast %cst_109 : f32 to vector<48x1xf32>
    %241 = arith.divf %239, %240 : vector<48x1xf32>
    %cst_110 = arith.constant 9.99999974E-6 : f32
    %242 = vector.broadcast %cst_110 : f32 to vector<48x1xf32>
    %243 = arith.addf %241, %242 : vector<48x1xf32>
    %244 = math.rsqrt %243 : vector<48x1xf32>
    %245 = vector.broadcast %244 : vector<48x1xf32> to vector<48x64xf32>
    %246 = arith.mulf %236, %245 : vector<48x64xf32>
    %247 = vector.broadcast %228 : vector<1x64xf32> to vector<48x64xf32>
    %248 = arith.mulf %246, %247 : vector<48x64xf32>
    %249 = vector.broadcast %230 : vector<1x64xf32> to vector<48x64xf32>
    %250 = arith.addf %248, %249 : vector<48x64xf32>
    %c1_111 = arith.constant 1 : index
    %c0_112 = arith.constant 0 : index
    %c0_113 = arith.constant 0 : index
    %251 = vector.load %arg7[%c1_111, %c0_112, %c0_113] : memref<2x64x192xbf16, #tpu.memory_space<vmem>>, vector<1x64x192xbf16>
    %252 = vector.shape_cast %251 : vector<1x64x192xbf16> to vector<64x192xbf16>
    %253 = arith.truncf %250 : vector<48x64xf32> to vector<48x64xbf16>
    %cst_114 = arith.constant dense<0.000000e+00> : vector<48x192xf32>
    %254 = tpu.matmul %253, %252, %cst_114 {dimension_numbers = #tpu.dot_dimension_numbers<[1], [0], [0], [1], [0, 0, 1, 1], [], []>} : vector<48x64xbf16>, vector<64x192xbf16>, vector<48x192xf32> -> vector<48x192xf32>
    %c1_115 = arith.constant 1 : index
    %c0_116 = arith.constant 0 : index
    %c0_117 = arith.constant 0 : index
    %255 = vector.load %arg8[%c1_115, %c0_116, %c0_117] : memref<2x1x192xf32, #tpu.memory_space<vmem>>, vector<1x1x192xf32>
    %256 = vector.shape_cast %255 : vector<1x1x192xf32> to vector<1x192xf32>
    %257 = vector.broadcast %256 : vector<1x192xf32> to vector<48x192xf32>
    %258 = arith.addf %254, %257 : vector<48x192xf32>
    %259 = vector.extract_strided_slice %258 {offsets = [0, 0], sizes = [48, 64], strides = [1, 1]} : vector<48x192xf32> to vector<48x64xf32>
    %260 = vector.shape_cast %259 : vector<48x64xf32> to vector<2x24x64xf32>
    %261 = arith.truncf %260 : vector<2x24x64xf32> to vector<2x24x64xbf16>
    %262 = vector.extract_strided_slice %258 {offsets = [0, 64], sizes = [48, 64], strides = [1, 1]} : vector<48x192xf32> to vector<48x64xf32>
    %263 = vector.shape_cast %262 : vector<48x64xf32> to vector<2x24x64xf32>
    %264 = arith.truncf %263 : vector<2x24x64xf32> to vector<2x24x64xbf16>
    %265 = vector.extract_strided_slice %258 {offsets = [0, 128], sizes = [48, 64], strides = [1, 1]} : vector<48x192xf32> to vector<48x64xf32>
    %266 = vector.shape_cast %265 : vector<48x64xf32> to vector<2x24x64xf32>
    %267 = arith.truncf %266 : vector<2x24x64xf32> to vector<2x24x64xbf16>
    %268 = vector.extract_strided_slice %261 {offsets = [0, 0, 0], sizes = [2, 24, 16], strides = [1, 1, 1]} : vector<2x24x64xbf16> to vector<2x24x16xbf16>
    %269 = vector.extract_strided_slice %264 {offsets = [0, 0, 0], sizes = [2, 24, 16], strides = [1, 1, 1]} : vector<2x24x64xbf16> to vector<2x24x16xbf16>
    %270 = vector.extract_strided_slice %267 {offsets = [0, 0, 0], sizes = [2, 24, 16], strides = [1, 1, 1]} : vector<2x24x64xbf16> to vector<2x24x16xbf16>
    %cst_118 = arith.constant dense<0.000000e+00> : vector<2x24x24xf32>
    %271 = tpu.matmul %268, %269, %cst_118 {dimension_numbers = #tpu.dot_dimension_numbers<[2], [2], [1], [1], [0, 0, 0, 1, 1, 1], [0], [0]>} : vector<2x24x16xbf16>, vector<2x24x16xbf16>, vector<2x24x24xf32> -> vector<2x24x24xf32>
    %cst_119 = arith.constant 2.500000e-01 : f32
    %272 = vector.broadcast %cst_119 : f32 to vector<2x24x24xf32>
    %273 = arith.mulf %271, %272 : vector<2x24x24xf32>
    %274 = vector.broadcast %45 : vector<1x1x24xf32> to vector<2x24x24xf32>
    %275 = arith.addf %273, %274 : vector<2x24x24xf32>
    %cst_120 = arith.constant dense<0xFF800000> : vector<2x24xf32>
    %276 = vector.multi_reduction <maximumf>, %275, %cst_120 [2] : vector<2x24x24xf32> to vector<2x24xf32>
    %277 = vector.shape_cast %276 : vector<2x24xf32> to vector<2x24x1xf32>
    %278 = vector.broadcast %277 : vector<2x24x1xf32> to vector<2x24x24xf32>
    %279 = arith.subf %275, %278 : vector<2x24x24xf32>
    %280 = math.exp %279 : vector<2x24x24xf32>
    %cst_121 = arith.constant dense<0.000000e+00> : vector<2x24xf32>
    %281 = vector.multi_reduction <add>, %280, %cst_121 [2] : vector<2x24x24xf32> to vector<2x24xf32>
    %282 = vector.shape_cast %281 : vector<2x24xf32> to vector<2x24x1xf32>
    %283 = tpu.reciprocal %282 {approx = true} : vector<2x24x1xf32> -> vector<2x24x1xf32>
    %284 = vector.broadcast %283 : vector<2x24x1xf32> to vector<2x24x24xf32>
    %285 = arith.mulf %280, %284 : vector<2x24x24xf32>
    %286 = arith.truncf %285 : vector<2x24x24xf32> to vector<2x24x24xbf16>
    %cst_122 = arith.constant dense<0.000000e+00> : vector<2x24x16xf32>
    %287 = tpu.matmul %286, %270, %cst_122 {dimension_numbers = #tpu.dot_dimension_numbers<[2], [1], [1], [2], [0, 0, 0, 1, 1, 2], [0], [0]>} : vector<2x24x24xbf16>, vector<2x24x16xbf16>, vector<2x24x16xf32> -> vector<2x24x16xf32>
    %288 = vector.extract_strided_slice %261 {offsets = [0, 0, 16], sizes = [2, 24, 16], strides = [1, 1, 1]} : vector<2x24x64xbf16> to vector<2x24x16xbf16>
    %289 = vector.extract_strided_slice %264 {offsets = [0, 0, 16], sizes = [2, 24, 16], strides = [1, 1, 1]} : vector<2x24x64xbf16> to vector<2x24x16xbf16>
    %290 = vector.extract_strided_slice %267 {offsets = [0, 0, 16], sizes = [2, 24, 16], strides = [1, 1, 1]} : vector<2x24x64xbf16> to vector<2x24x16xbf16>
    %cst_123 = arith.constant dense<0.000000e+00> : vector<2x24x24xf32>
    %291 = tpu.matmul %288, %289, %cst_123 {dimension_numbers = #tpu.dot_dimension_numbers<[2], [2], [1], [1], [0, 0, 0, 1, 1, 1], [0], [0]>} : vector<2x24x16xbf16>, vector<2x24x16xbf16>, vector<2x24x24xf32> -> vector<2x24x24xf32>
    %cst_124 = arith.constant 2.500000e-01 : f32
    %292 = vector.broadcast %cst_124 : f32 to vector<2x24x24xf32>
    %293 = arith.mulf %291, %292 : vector<2x24x24xf32>
    %294 = vector.broadcast %45 : vector<1x1x24xf32> to vector<2x24x24xf32>
    %295 = arith.addf %293, %294 : vector<2x24x24xf32>
    %cst_125 = arith.constant dense<0xFF800000> : vector<2x24xf32>
    %296 = vector.multi_reduction <maximumf>, %295, %cst_125 [2] : vector<2x24x24xf32> to vector<2x24xf32>
    %297 = vector.shape_cast %296 : vector<2x24xf32> to vector<2x24x1xf32>
    %298 = vector.broadcast %297 : vector<2x24x1xf32> to vector<2x24x24xf32>
    %299 = arith.subf %295, %298 : vector<2x24x24xf32>
    %300 = math.exp %299 : vector<2x24x24xf32>
    %cst_126 = arith.constant dense<0.000000e+00> : vector<2x24xf32>
    %301 = vector.multi_reduction <add>, %300, %cst_126 [2] : vector<2x24x24xf32> to vector<2x24xf32>
    %302 = vector.shape_cast %301 : vector<2x24xf32> to vector<2x24x1xf32>
    %303 = tpu.reciprocal %302 {approx = true} : vector<2x24x1xf32> -> vector<2x24x1xf32>
    %304 = vector.broadcast %303 : vector<2x24x1xf32> to vector<2x24x24xf32>
    %305 = arith.mulf %300, %304 : vector<2x24x24xf32>
    %306 = arith.truncf %305 : vector<2x24x24xf32> to vector<2x24x24xbf16>
    %cst_127 = arith.constant dense<0.000000e+00> : vector<2x24x16xf32>
    %307 = tpu.matmul %306, %290, %cst_127 {dimension_numbers = #tpu.dot_dimension_numbers<[2], [1], [1], [2], [0, 0, 0, 1, 1, 2], [0], [0]>} : vector<2x24x24xbf16>, vector<2x24x16xbf16>, vector<2x24x16xf32> -> vector<2x24x16xf32>
    %308 = vector.extract_strided_slice %261 {offsets = [0, 0, 32], sizes = [2, 24, 16], strides = [1, 1, 1]} : vector<2x24x64xbf16> to vector<2x24x16xbf16>
    %309 = vector.extract_strided_slice %264 {offsets = [0, 0, 32], sizes = [2, 24, 16], strides = [1, 1, 1]} : vector<2x24x64xbf16> to vector<2x24x16xbf16>
    %310 = vector.extract_strided_slice %267 {offsets = [0, 0, 32], sizes = [2, 24, 16], strides = [1, 1, 1]} : vector<2x24x64xbf16> to vector<2x24x16xbf16>
    %cst_128 = arith.constant dense<0.000000e+00> : vector<2x24x24xf32>
    %311 = tpu.matmul %308, %309, %cst_128 {dimension_numbers = #tpu.dot_dimension_numbers<[2], [2], [1], [1], [0, 0, 0, 1, 1, 1], [0], [0]>} : vector<2x24x16xbf16>, vector<2x24x16xbf16>, vector<2x24x24xf32> -> vector<2x24x24xf32>
    %cst_129 = arith.constant 2.500000e-01 : f32
    %312 = vector.broadcast %cst_129 : f32 to vector<2x24x24xf32>
    %313 = arith.mulf %311, %312 : vector<2x24x24xf32>
    %314 = vector.broadcast %45 : vector<1x1x24xf32> to vector<2x24x24xf32>
    %315 = arith.addf %313, %314 : vector<2x24x24xf32>
    %cst_130 = arith.constant dense<0xFF800000> : vector<2x24xf32>
    %316 = vector.multi_reduction <maximumf>, %315, %cst_130 [2] : vector<2x24x24xf32> to vector<2x24xf32>
    %317 = vector.shape_cast %316 : vector<2x24xf32> to vector<2x24x1xf32>
    %318 = vector.broadcast %317 : vector<2x24x1xf32> to vector<2x24x24xf32>
    %319 = arith.subf %315, %318 : vector<2x24x24xf32>
    %320 = math.exp %319 : vector<2x24x24xf32>
    %cst_131 = arith.constant dense<0.000000e+00> : vector<2x24xf32>
    %321 = vector.multi_reduction <add>, %320, %cst_131 [2] : vector<2x24x24xf32> to vector<2x24xf32>
    %322 = vector.shape_cast %321 : vector<2x24xf32> to vector<2x24x1xf32>
    %323 = tpu.reciprocal %322 {approx = true} : vector<2x24x1xf32> -> vector<2x24x1xf32>
    %324 = vector.broadcast %323 : vector<2x24x1xf32> to vector<2x24x24xf32>
    %325 = arith.mulf %320, %324 : vector<2x24x24xf32>
    %326 = arith.truncf %325 : vector<2x24x24xf32> to vector<2x24x24xbf16>
    %cst_132 = arith.constant dense<0.000000e+00> : vector<2x24x16xf32>
    %327 = tpu.matmul %326, %310, %cst_132 {dimension_numbers = #tpu.dot_dimension_numbers<[2], [1], [1], [2], [0, 0, 0, 1, 1, 2], [0], [0]>} : vector<2x24x24xbf16>, vector<2x24x16xbf16>, vector<2x24x16xf32> -> vector<2x24x16xf32>
    %328 = vector.extract_strided_slice %261 {offsets = [0, 0, 48], sizes = [2, 24, 16], strides = [1, 1, 1]} : vector<2x24x64xbf16> to vector<2x24x16xbf16>
    %329 = vector.extract_strided_slice %264 {offsets = [0, 0, 48], sizes = [2, 24, 16], strides = [1, 1, 1]} : vector<2x24x64xbf16> to vector<2x24x16xbf16>
    %330 = vector.extract_strided_slice %267 {offsets = [0, 0, 48], sizes = [2, 24, 16], strides = [1, 1, 1]} : vector<2x24x64xbf16> to vector<2x24x16xbf16>
    %cst_133 = arith.constant dense<0.000000e+00> : vector<2x24x24xf32>
    %331 = tpu.matmul %328, %329, %cst_133 {dimension_numbers = #tpu.dot_dimension_numbers<[2], [2], [1], [1], [0, 0, 0, 1, 1, 1], [0], [0]>} : vector<2x24x16xbf16>, vector<2x24x16xbf16>, vector<2x24x24xf32> -> vector<2x24x24xf32>
    %cst_134 = arith.constant 2.500000e-01 : f32
    %332 = vector.broadcast %cst_134 : f32 to vector<2x24x24xf32>
    %333 = arith.mulf %331, %332 : vector<2x24x24xf32>
    %334 = vector.broadcast %45 : vector<1x1x24xf32> to vector<2x24x24xf32>
    %335 = arith.addf %333, %334 : vector<2x24x24xf32>
    %cst_135 = arith.constant dense<0xFF800000> : vector<2x24xf32>
    %336 = vector.multi_reduction <maximumf>, %335, %cst_135 [2] : vector<2x24x24xf32> to vector<2x24xf32>
    %337 = vector.shape_cast %336 : vector<2x24xf32> to vector<2x24x1xf32>
    %338 = vector.broadcast %337 : vector<2x24x1xf32> to vector<2x24x24xf32>
    %339 = arith.subf %335, %338 : vector<2x24x24xf32>
    %340 = math.exp %339 : vector<2x24x24xf32>
    %cst_136 = arith.constant dense<0.000000e+00> : vector<2x24xf32>
    %341 = vector.multi_reduction <add>, %340, %cst_136 [2] : vector<2x24x24xf32> to vector<2x24xf32>
    %342 = vector.shape_cast %341 : vector<2x24xf32> to vector<2x24x1xf32>
    %343 = tpu.reciprocal %342 {approx = true} : vector<2x24x1xf32> -> vector<2x24x1xf32>
    %344 = vector.broadcast %343 : vector<2x24x1xf32> to vector<2x24x24xf32>
    %345 = arith.mulf %340, %344 : vector<2x24x24xf32>
    %346 = arith.truncf %345 : vector<2x24x24xf32> to vector<2x24x24xbf16>
    %cst_137 = arith.constant dense<0.000000e+00> : vector<2x24x16xf32>
    %347 = tpu.matmul %346, %330, %cst_137 {dimension_numbers = #tpu.dot_dimension_numbers<[2], [1], [1], [2], [0, 0, 0, 1, 1, 2], [0], [0]>} : vector<2x24x24xbf16>, vector<2x24x16xbf16>, vector<2x24x16xf32> -> vector<2x24x16xf32>
    %348 = tpu.concatenate %287, %307, %327, %347 in 2 : vector<2x24x16xf32>, vector<2x24x16xf32>, vector<2x24x16xf32>, vector<2x24x16xf32> -> vector<2x24x64xf32>
    %349 = vector.shape_cast %348 : vector<2x24x64xf32> to vector<48x64xf32>
    %c1_138 = arith.constant 1 : index
    %c0_139 = arith.constant 0 : index
    %c0_140 = arith.constant 0 : index
    %350 = vector.load %arg9[%c1_138, %c0_139, %c0_140] : memref<2x64x64xbf16, #tpu.memory_space<vmem>>, vector<1x64x64xbf16>
    %351 = vector.shape_cast %350 : vector<1x64x64xbf16> to vector<64x64xbf16>
    %352 = arith.truncf %349 : vector<48x64xf32> to vector<48x64xbf16>
    %cst_141 = arith.constant dense<0.000000e+00> : vector<48x64xf32>
    %353 = tpu.matmul %352, %351, %cst_141 {dimension_numbers = #tpu.dot_dimension_numbers<[1], [0], [0], [1], [0, 0, 1, 1], [], []>} : vector<48x64xbf16>, vector<64x64xbf16>, vector<48x64xf32> -> vector<48x64xf32>
    %354 = arith.addf %226, %353 : vector<48x64xf32>
    %c1_142 = arith.constant 1 : index
    %c0_143 = arith.constant 0 : index
    %c0_144 = arith.constant 0 : index
    %355 = vector.load %arg10[%c1_142, %c0_143, %c0_144] : memref<2x1x64xf32, #tpu.memory_space<vmem>>, vector<1x1x64xf32>
    %356 = vector.shape_cast %355 : vector<1x1x64xf32> to vector<1x64xf32>
    %357 = vector.broadcast %356 : vector<1x64xf32> to vector<48x64xf32>
    %358 = arith.addf %354, %357 : vector<48x64xf32>
    %c1_145 = arith.constant 1 : index
    %c0_146 = arith.constant 0 : index
    %c0_147 = arith.constant 0 : index
    %359 = vector.load %arg11[%c1_145, %c0_146, %c0_147] : memref<2x1x64xf32, #tpu.memory_space<vmem>>, vector<1x1x64xf32>
    %360 = vector.shape_cast %359 : vector<1x1x64xf32> to vector<1x64xf32>
    %c1_148 = arith.constant 1 : index
    %c0_149 = arith.constant 0 : index
    %c0_150 = arith.constant 0 : index
    %361 = vector.load %arg12[%c1_148, %c0_149, %c0_150] : memref<2x1x64xf32, #tpu.memory_space<vmem>>, vector<1x1x64xf32>
    %362 = vector.shape_cast %361 : vector<1x1x64xf32> to vector<1x64xf32>
    %cst_151 = arith.constant dense<0.000000e+00> : vector<48xf32>
    %363 = vector.multi_reduction <add>, %358, %cst_151 [1] : vector<48x64xf32> to vector<48xf32>
    %364 = vector.shape_cast %363 : vector<48xf32> to vector<48x1xf32>
    %cst_152 = arith.constant 6.400000e+01 : f32
    %365 = vector.broadcast %cst_152 : f32 to vector<48x1xf32>
    %366 = arith.divf %364, %365 : vector<48x1xf32>
    %367 = vector.broadcast %366 : vector<48x1xf32> to vector<48x64xf32>
    %368 = arith.subf %358, %367 : vector<48x64xf32>
    %369 = arith.mulf %368, %368 : vector<48x64xf32>
    %cst_153 = arith.constant dense<0.000000e+00> : vector<48xf32>
    %370 = vector.multi_reduction <add>, %369, %cst_153 [1] : vector<48x64xf32> to vector<48xf32>
    %371 = vector.shape_cast %370 : vector<48xf32> to vector<48x1xf32>
    %cst_154 = arith.constant 6.400000e+01 : f32
    %372 = vector.broadcast %cst_154 : f32 to vector<48x1xf32>
    %373 = arith.divf %371, %372 : vector<48x1xf32>
    %cst_155 = arith.constant 9.99999974E-6 : f32
    %374 = vector.broadcast %cst_155 : f32 to vector<48x1xf32>
    %375 = arith.addf %373, %374 : vector<48x1xf32>
    %376 = math.rsqrt %375 : vector<48x1xf32>
    %377 = vector.broadcast %376 : vector<48x1xf32> to vector<48x64xf32>
    %378 = arith.mulf %368, %377 : vector<48x64xf32>
    %379 = vector.broadcast %360 : vector<1x64xf32> to vector<48x64xf32>
    %380 = arith.mulf %378, %379 : vector<48x64xf32>
    %381 = vector.broadcast %362 : vector<1x64xf32> to vector<48x64xf32>
    %382 = arith.addf %380, %381 : vector<48x64xf32>
    %c1_156 = arith.constant 1 : index
    %c0_157 = arith.constant 0 : index
    %c0_158 = arith.constant 0 : index
    %383 = vector.load %arg13[%c1_156, %c0_157, %c0_158] : memref<2x64x128xbf16, #tpu.memory_space<vmem>>, vector<1x64x128xbf16>
    %384 = vector.shape_cast %383 : vector<1x64x128xbf16> to vector<64x128xbf16>
    %385 = arith.truncf %382 : vector<48x64xf32> to vector<48x64xbf16>
    %cst_159 = arith.constant dense<0.000000e+00> : vector<48x128xf32>
    %386 = tpu.matmul %385, %384, %cst_159 {dimension_numbers = #tpu.dot_dimension_numbers<[1], [0], [0], [1], [0, 0, 1, 1], [], []>} : vector<48x64xbf16>, vector<64x128xbf16>, vector<48x128xf32> -> vector<48x128xf32>
    %c1_160 = arith.constant 1 : index
    %c0_161 = arith.constant 0 : index
    %c0_162 = arith.constant 0 : index
    %387 = vector.load %arg14[%c1_160, %c0_161, %c0_162] : memref<2x1x128xf32, #tpu.memory_space<vmem>>, vector<1x1x128xf32>
    %388 = vector.shape_cast %387 : vector<1x1x128xf32> to vector<1x128xf32>
    %389 = vector.broadcast %388 : vector<1x128xf32> to vector<48x128xf32>
    %390 = arith.addf %386, %389 : vector<48x128xf32>
    %cst_163 = arith.constant 1.702000e+00 : f32
    %391 = vector.broadcast %cst_163 : f32 to vector<48x128xf32>
    %392 = arith.mulf %391, %390 : vector<48x128xf32>
    %393 = arith.negf %392 : vector<48x128xf32>
    %394 = math.exp %393 : vector<48x128xf32>
    %cst_164 = arith.constant 1.000000e+00 : f32
    %395 = vector.broadcast %cst_164 : f32 to vector<48x128xf32>
    %396 = arith.addf %395, %394 : vector<48x128xf32>
    %397 = arith.divf %395, %396 : vector<48x128xf32>
    %398 = arith.mulf %390, %397 : vector<48x128xf32>
    %c1_165 = arith.constant 1 : index
    %c0_166 = arith.constant 0 : index
    %c0_167 = arith.constant 0 : index
    %399 = vector.load %arg15[%c1_165, %c0_166, %c0_167] : memref<2x128x64xbf16, #tpu.memory_space<vmem>>, vector<1x128x64xbf16>
    %400 = vector.shape_cast %399 : vector<1x128x64xbf16> to vector<128x64xbf16>
    %401 = arith.truncf %398 : vector<48x128xf32> to vector<48x128xbf16>
    %cst_168 = arith.constant dense<0.000000e+00> : vector<48x64xf32>
    %402 = tpu.matmul %401, %400, %cst_168 {dimension_numbers = #tpu.dot_dimension_numbers<[1], [0], [0], [1], [0, 0, 1, 1], [], []>} : vector<48x128xbf16>, vector<128x64xbf16>, vector<48x64xf32> -> vector<48x64xf32>
    %403 = arith.addf %358, %402 : vector<48x64xf32>
    %c1_169 = arith.constant 1 : index
    %c0_170 = arith.constant 0 : index
    %c0_171 = arith.constant 0 : index
    %404 = vector.load %arg16[%c1_169, %c0_170, %c0_171] : memref<2x1x64xf32, #tpu.memory_space<vmem>>, vector<1x1x64xf32>
    %405 = vector.shape_cast %404 : vector<1x1x64xf32> to vector<1x64xf32>
    %406 = vector.broadcast %405 : vector<1x64xf32> to vector<48x64xf32>
    %407 = arith.addf %403, %406 : vector<48x64xf32>
    %c0_172 = arith.constant 0 : index
    %c0_173 = arith.constant 0 : index
    %408 = vector.load %arg22[%c0_172, %c0_173] : memref<48x64xf32, #tpu.memory_space<vmem>>, vector<48x64xf32>
    tpu.vector_store %arg22[%c0_172, %c0_173], %407 {strides = array<i32>} : memref<48x64xf32, #tpu.memory_space<vmem>>, vector<48x64xf32>,
    %c0_174 = arith.constant 0 : index
    %c0_175 = arith.constant 0 : index
    %409 = tpu.strided_load %arg22[%c0_174, %c0_175] {strides = array<i32: 24, 1>} : memref<48x64xf32, #tpu.memory_space<vmem>>, vector<2x64xf32>
    %c0_176 = arith.constant 0 : index
    %c0_177 = arith.constant 0 : index
    %410 = vector.load %arg17[%c0_176, %c0_177] : memref<1x64xf32, #tpu.memory_space<vmem>>, vector<1x64xf32>
    %c0_178 = arith.constant 0 : index
    %c0_179 = arith.constant 0 : index
    %411 = vector.load %arg18[%c0_178, %c0_179] : memref<1x64xf32, #tpu.memory_space<vmem>>, vector<1x64xf32>
    %cst_180 = arith.constant dense<0.000000e+00> : vector<2xf32>
    %412 = vector.multi_reduction <add>, %409, %cst_180 [1] : vector<2x64xf32> to vector<2xf32>
    %413 = vector.shape_cast %412 : vector<2xf32> to vector<2x1xf32>
    %cst_181 = arith.constant 6.400000e+01 : f32
    %414 = vector.broadcast %cst_181 : f32 to vector<2x1xf32>
    %415 = arith.divf %413, %414 : vector<2x1xf32>
    %416 = vector.broadcast %415 : vector<2x1xf32> to vector<2x64xf32>
    %417 = arith.subf %409, %416 : vector<2x64xf32>
    %418 = arith.mulf %417, %417 : vector<2x64xf32>
    %cst_182 = arith.constant dense<0.000000e+00> : vector<2xf32>
    %419 = vector.multi_reduction <add>, %418, %cst_182 [1] : vector<2x64xf32> to vector<2xf32>
    %420 = vector.shape_cast %419 : vector<2xf32> to vector<2x1xf32>
    %cst_183 = arith.constant 6.400000e+01 : f32
    %421 = vector.broadcast %cst_183 : f32 to vector<2x1xf32>
    %422 = arith.divf %420, %421 : vector<2x1xf32>
    %cst_184 = arith.constant 9.99999974E-6 : f32
    %423 = vector.broadcast %cst_184 : f32 to vector<2x1xf32>
    %424 = arith.addf %422, %423 : vector<2x1xf32>
    %425 = math.rsqrt %424 : vector<2x1xf32>
    %426 = vector.broadcast %425 : vector<2x1xf32> to vector<2x64xf32>
    %427 = arith.mulf %417, %426 : vector<2x64xf32>
    %428 = vector.broadcast %410 : vector<1x64xf32> to vector<2x64xf32>
    %429 = arith.mulf %427, %428 : vector<2x64xf32>
    %430 = vector.broadcast %411 : vector<1x64xf32> to vector<2x64xf32>
    %431 = arith.addf %429, %430 : vector<2x64xf32>
    %c0_185 = arith.constant 0 : index
    %c0_186 = arith.constant 0 : index
    %432 = vector.load %arg19[%c0_185, %c0_186] : memref<64x128xbf16, #tpu.memory_space<vmem>>, vector<64x128xbf16>
    %433 = arith.truncf %431 : vector<2x64xf32> to vector<2x64xbf16>
    %cst_187 = arith.constant dense<0.000000e+00> : vector<2x128xf32>
    %434 = tpu.matmul %433, %432, %cst_187 {dimension_numbers = #tpu.dot_dimension_numbers<[1], [0], [0], [1], [0, 0, 1, 1], [], []>} : vector<2x64xbf16>, vector<64x128xbf16>, vector<2x128xf32> -> vector<2x128xf32>
    %c0_188 = arith.constant 0 : index
    %c0_189 = arith.constant 0 : index
    %435 = vector.load %arg20[%c0_188, %c0_189] : memref<1x128xf32, #tpu.memory_space<vmem>>, vector<1x128xf32>
    %436 = vector.broadcast %435 : vector<1x128xf32> to vector<2x128xf32>
    %437 = arith.addf %434, %436 : vector<2x128xf32>
    %cst_190 = arith.constant dense<0xFF800000> : vector<2xf32>
    %438 = vector.multi_reduction <maximumf>, %437, %cst_190 [1] : vector<2x128xf32> to vector<2xf32>
    %439 = vector.shape_cast %438 : vector<2xf32> to vector<2x1xf32>
    %440 = vector.broadcast %439 : vector<2x1xf32> to vector<2x128xf32>
    %441 = arith.subf %437, %440 : vector<2x128xf32>
    %442 = math.exp %441 : vector<2x128xf32>
    %cst_191 = arith.constant dense<0.000000e+00> : vector<2xf32>
    %443 = vector.multi_reduction <add>, %442, %cst_191 [1] : vector<2x128xf32> to vector<2xf32>
    %444 = vector.shape_cast %443 : vector<2xf32> to vector<2x1xf32>
    %445 = tpu.reciprocal %444 {approx = true} : vector<2x1xf32> -> vector<2x1xf32>
    %446 = vector.broadcast %445 : vector<2x1xf32> to vector<2x128xf32>
    %447 = arith.mulf %442, %446 : vector<2x128xf32>
    %c0_192 = arith.constant 0 : index
    %c0_193 = arith.constant 0 : index
    %448 = vector.load %arg21[%c0_192, %c0_193] : memref<2x128xf32, #tpu.memory_space<vmem>>, vector<2x128xf32>
    tpu.vector_store %arg21[%c0_192, %c0_193], %447 {strides = array<i32>} : memref<2x128xf32, #tpu.memory_space<vmem>>, vector<2x128xf32>,
    return
  }
}

</mosaic_0001>

<llo_original>
// kernel: aesclip_forward.1
$region0: #{aesclip_forward.1}
  #allocation0 [shape = 'u32[]', space=smem, size = 0x4, offset = 0x4, fixed_abs, tag = 'smem constant byte address 0x4 - core index']
  #allocation1 [shape = 'u32[144,128]{1,0:T(1,128)}', space=vmem, size = 0x12000, scoped, tag = 'internal scratch']
  #allocation2 [shape = 'f32[48,64]{1,0:T(8,128)}', space=vmem, size = 0x6000, scoped, tag = 'scratch operand']
  %s0 = inlined_call_operand.vmem [shape: f32[32,192], index: 0, kind: input, shape index: {}]
  %s1 = inlined_call_operand.vmem [shape: bf16[192,64], index: 1, kind: input, shape index: {}]
  %s2 = inlined_call_operand.vmem [shape: f32[17,64], index: 2, kind: input, shape index: {}]
  %s3 = inlined_call_operand.vmem [shape: f32[1,64], index: 3, kind: input, shape index: {}]
  %s4 = inlined_call_operand.vmem [shape: f32[1,64], index: 4, kind: input, shape index: {}]
  %s5 = inlined_call_operand.vmem [shape: f32[2,1,64], index: 5, kind: input, shape index: {}]
  %s6 = inlined_call_operand.vmem [shape: f32[2,1,64], index: 6, kind: input, shape index: {}]
  %s7 = inlined_call_operand.vmem [shape: bf16[2,64,192], index: 7, kind: input, shape index: {}]
  %s8 = inlined_call_operand.vmem [shape: f32[2,1,192], index: 8, kind: input, shape index: {}]
  %s9 = inlined_call_operand.vmem [shape: bf16[2,64,64], index: 9, kind: input, shape index: {}]
  %s10 = inlined_call_operand.vmem [shape: f32[2,1,64], index: 10, kind: input, shape index: {}]
  %s11 = inlined_call_operand.vmem [shape: f32[2,1,64], index: 11, kind: input, shape index: {}]
  %s12 = inlined_call_operand.vmem [shape: f32[2,1,64], index: 12, kind: input, shape index: {}]
  %s13 = inlined_call_operand.vmem [shape: bf16[2,64,128], index: 13, kind: input, shape index: {}]
  %s14 = inlined_call_operand.vmem [shape: f32[2,1,128], index: 14, kind: input, shape index: {}]
  %s15 = inlined_call_operand.vmem [shape: bf16[2,128,64], index: 15, kind: input, shape index: {}]
  %s16 = inlined_call_operand.vmem [shape: f32[2,1,64], index: 16, kind: input, shape index: {}]
  %s17 = inlined_call_operand.vmem [shape: f32[1,64], index: 17, kind: input, shape index: {}]
  %s18 = inlined_call_operand.vmem [shape: f32[1,64], index: 18, kind: input, shape index: {}]
  %s19 = inlined_call_operand.vmem [shape: bf16[64,128], index: 19, kind: input, shape index: {}]
  %s20 = inlined_call_operand.vmem [shape: f32[1,128], index: 20, kind: input, shape index: {}]
  %s21 = inlined_call_operand.hbm [shape: f32[2,128], index: 21, kind: output, shape index: {}]
  %s22 = sld [smem:[#allocation0]]
  $region94: #{aesclip_forward.1} parent=0
    _
  %s24 = ssub.s32 1, %s22
  %s25 = scalar_select 0, %s24, %s22
  $region1: #{aesclip_forward.1} parent=0
    #allocation3 [shape = 'u8[1024]{0}', space=vmem, size = 0x400, scoped, tag = 'output window, operand 0, single buffered']
    #allocation4 [shape = 's32[1]{0}', space=sflag, size = 0x4, scoped, tag = 'scoped memory for aesclip_forward.1']
    %26 = vsyncpa [#allocation4], 0
    // Predicated region
    $region2: #{aesclip_forward.1} parent=1 // pred_check
      _
    $region3: #{aesclip_forward.1} parent=1 // pred_check_branch
      %28 = sbr.rel (0) target = $region5
    $region4: #{aesclip_forward.1} parent=1 // pred_region
      _
    $region5: #{aesclip_forward.1} parent=1 // pred_fallthru
      _
    // Predicated region
    $region6: #{aesclip_forward.1} parent=1 // pred_check
      _
    $region7: #{aesclip_forward.1} parent=1 // pred_check_branch
      %30 = sbr.rel (0) target = $region9
    $region8: #{aesclip_forward.1} parent=1 // pred_region
      _
    $region9: #{aesclip_forward.1} parent=1 // pred_fallthru
      _
    // Predicated region
    $region10: #{aesclip_forward.1} parent=1 // pred_check
      _
    $region11: #{aesclip_forward.1} parent=1 // pred_check_branch
      %32 = sbr.rel (0) target = $region13
    $region12: #{aesclip_forward.1} parent=1 // pred_region
      _
    $region13: #{aesclip_forward.1} parent=1 // pred_fallthru
      _
    // Predicated region
    $region14: #{aesclip_forward.1} parent=1 // pred_check
      _
    $region15: #{aesclip_forward.1} parent=1 // pred_check_branch
      %34 = sbr.rel (0) target = $region17
    $region16: #{aesclip_forward.1} parent=1 // pred_region
      _
    $region17: #{aesclip_forward.1} parent=1 // pred_fallthru
      _
    // Predicated region
    $region18: #{aesclip_forward.1} parent=1 // pred_check
      _
    $region19: #{aesclip_forward.1} parent=1 // pred_check_branch
      %36 = sbr.rel (0) target = $region21
    $region20: #{aesclip_forward.1} parent=1 // pred_region
      _
    $region21: #{aesclip_forward.1} parent=1 // pred_fallthru
      _
    // Predicated region
    $region22: #{aesclip_forward.1} parent=1 // pred_check
      _
    $region23: #{aesclip_forward.1} parent=1 // pred_check_branch
      %38 = sbr.rel (0) target = $region25
    $region24: #{aesclip_forward.1} parent=1 // pred_region
      _
    $region25: #{aesclip_forward.1} parent=1 // pred_fallthru
      _
    // Predicated region
    $region26: #{aesclip_forward.1} parent=1 // pred_check
      _
    $region27: #{aesclip_forward.1} parent=1 // pred_check_branch
      %40 = sbr.rel (0) target = $region29
    $region28: #{aesclip_forward.1} parent=1 // pred_region
      _
    $region29: #{aesclip_forward.1} parent=1 // pred_fallthru
      _
    // Predicated region
    $region30: #{aesclip_forward.1} parent=1 // pred_check
      _
    $region31: #{aesclip_forward.1} parent=1 // pred_check_branch
      %42 = sbr.rel (0) target = $region33
    $region32: #{aesclip_forward.1} parent=1 // pred_region
      _
    $region33: #{aesclip_forward.1} parent=1 // pred_fallthru
      _
    // Predicated region
    $region34: #{aesclip_forward.1} parent=1 // pred_check
      _
    $region35: #{aesclip_forward.1} parent=1 // pred_check_branch
      %44 = sbr.rel (0) target = $region37
    $region36: #{aesclip_forward.1} parent=1 // pred_region
      _
    $region37: #{aesclip_forward.1} parent=1 // pred_fallthru
      _
    // Predicated region
    $region38: #{aesclip_forward.1} parent=1 // pred_check
      _
    $region39: #{aesclip_forward.1} parent=1 // pred_check_branch
      %46 = sbr.rel (0) target = $region41
    $region40: #{aesclip_forward.1} parent=1 // pred_region
      _
    $region41: #{aesclip_forward.1} parent=1 // pred_fallthru
      _
    // Predicated region
    $region42: #{aesclip_forward.1} parent=1 // pred_check
      _
    $region43: #{aesclip_forward.1} parent=1 // pred_check_branch
      %48 = sbr.rel (0) target = $region45
    $region44: #{aesclip_forward.1} parent=1 // pred_region
      _
    $region45: #{aesclip_forward.1} parent=1 // pred_fallthru
      _
    // Predicated region
    $region46: #{aesclip_forward.1} parent=1 // pred_check
      _
    $region47: #{aesclip_forward.1} parent=1 // pred_check_branch
      %50 = sbr.rel (0) target = $region49
    $region48: #{aesclip_forward.1} parent=1 // pred_region
      _
    $region49: #{aesclip_forward.1} parent=1 // pred_fallthru
      _
    // Predicated region
    $region50: #{aesclip_forward.1} parent=1 // pred_check
      _
    $region51: #{aesclip_forward.1} parent=1 // pred_check_branch
      %52 = sbr.rel (0) target = $region53
    $region52: #{aesclip_forward.1} parent=1 // pred_region
      _
    $region53: #{aesclip_forward.1} parent=1 // pred_fallthru
      _
    // Predicated region
    $region54: #{aesclip_forward.1} parent=1 // pred_check
      _
    $region55: #{aesclip_forward.1} parent=1 // pred_check_branch
      %54 = sbr.rel (0) target = $region57
    $region56: #{aesclip_forward.1} parent=1 // pred_region
      _
    $region57: #{aesclip_forward.1} parent=1 // pred_fallthru
      _
    // Predicated region
    $region58: #{aesclip_forward.1} parent=1 // pred_check
      _
    $region59: #{aesclip_forward.1} parent=1 // pred_check_branch
      %56 = sbr.rel (0) target = $region61
    $region60: #{aesclip_forward.1} parent=1 // pred_region
      _
    $region61: #{aesclip_forward.1} parent=1 // pred_fallthru
      _
    // Predicated region
    $region62: #{aesclip_forward.1} parent=1 // pred_check
      _
    $region63: #{aesclip_forward.1} parent=1 // pred_check_branch
      %58 = sbr.rel (0) target = $region65
    $region64: #{aesclip_forward.1} parent=1 // pred_region
      _
    $region65: #{aesclip_forward.1} parent=1 // pred_fallthru
      _
    // Predicated region
    $region66: #{aesclip_forward.1} parent=1 // pred_check
      _
    $region67: #{aesclip_forward.1} parent=1 // pred_check_branch
      %60 = sbr.rel (0) target = $region69
    $region68: #{aesclip_forward.1} parent=1 // pred_region
      _
    $region69: #{aesclip_forward.1} parent=1 // pred_fallthru
      _
    // Predicated region
    $region70: #{aesclip_forward.1} parent=1 // pred_check
      _
    $region71: #{aesclip_forward.1} parent=1 // pred_check_branch
      %62 = sbr.rel (0) target = $region73
    $region72: #{aesclip_forward.1} parent=1 // pred_region
      _
    $region73: #{aesclip_forward.1} parent=1 // pred_fallthru
      _
    // Predicated region
    $region74: #{aesclip_forward.1} parent=1 // pred_check
      _
    $region75: #{aesclip_forward.1} parent=1 // pred_check_branch
      %64 = sbr.rel (0) target = $region77
    $region76: #{aesclip_forward.1} parent=1 // pred_region
      _
    $region77: #{aesclip_forward.1} parent=1 // pred_fallthru
      _
    // Predicated region
    $region78: #{aesclip_forward.1} parent=1 // pred_check
      _
    $region79: #{aesclip_forward.1} parent=1 // pred_check_branch
      %66 = sbr.rel (0) target = $region81
    $region80: #{aesclip_forward.1} parent=1 // pred_region
      _
    $region81: #{aesclip_forward.1} parent=1 // pred_fallthru
      _
    // Predicated region
    $region82: #{aesclip_forward.1} parent=1 // pred_check
      _
    $region83: #{aesclip_forward.1} parent=1 // pred_check_branch
      %68 = sbr.rel (0) target = $region85
    $region84: #{aesclip_forward.1} parent=1 // pred_region
      _
    $region85: #{aesclip_forward.1} parent=1 // pred_fallthru
      _
    %v70 = vld [vmem:[%s0] sm:$0xff]
    %v71 = vld [vmem:[%s0 + $0x8] sm:$0xff]
    %v72 = vld [vmem:[%s0 + $0x10] sm:$0xff]
    %v73 = vld [vmem:[%s0 + $0x18] sm:$0xff]
    %v74 = vld [vmem:[%s0 + $0x20] sm:$0xff]
    %v75 = vld [vmem:[%s0 + $0x28] sm:$0xff]
    %v76 = vld [vmem:[%s0 + $0x30] sm:$0xff]
    %v77 = vld [vmem:[%s0 + $0x38] sm:$0xff]
    %v78 = vld [vmem:[%s1] sm:$0xf]
    %v79 = vld [vmem:[%s1 + $0x4] sm:$0xf]
    %v80 = vld [vmem:[%s1 + $0x8] sm:$0xf]
    %v81 = vld [vmem:[%s1 + $0xc] sm:$0xf]
    %v82 = vld [vmem:[%s1 + $0x10] sm:$0xf]
    %v83 = vld [vmem:[%s1 + $0x14] sm:$0xf]
    %v84 = vld [vmem:[%s1 + $0x18] sm:$0xf]
    %v85 = vld [vmem:[%s1 + $0x1c] sm:$0xf]
    %v86 = vld [vmem:[%s1 + $0x20] sm:$0xf]
    %v87 = vld [vmem:[%s1 + $0x24] sm:$0xf]
    %v88 = vld [vmem:[%s1 + $0x28] sm:$0xf]
    %v89 = vld [vmem:[%s1 + $0x2c] sm:$0xf]
    %v90 = vld [vmem:[%s1 + $0x30] sm:$0xf]
    %v91 = vld [vmem:[%s1 + $0x34] sm:$0xf]
    %v92 = vld [vmem:[%s1 + $0x38] sm:$0xf]
    %v93 = vld [vmem:[%s1 + $0x3c] sm:$0xf]
    %v94 = vld [vmem:[%s1 + $0x40] sm:$0xf]
    %v95 = vld [vmem:[%s1 + $0x44] sm:$0xf]
    %v96 = vld [vmem:[%s1 + $0x48] sm:$0xf]
    %v97 = vld [vmem:[%s1 + $0x4c] sm:$0xf]
    %v98 = vld [vmem:[%s1 + $0x50] sm:$0xf]
    %v99 = vld [vmem:[%s1 + $0x54] sm:$0xf]
    %v100 = vld [vmem:[%s1 + $0x58] sm:$0xf]
    %v101 = vld [vmem:[%s1 + $0x5c] sm:$0xf]
    %v102 = vpack.c.bf16 %v72, %v70
    %v103 = vpack.c.bf16 %v73, %v71
    %v104 = vpack.c.bf16 %v76, %v74
    %v105 = vpack.c.bf16 %v77, %v75
    %v130 = vunpack.c.l.b16 %v78
    %v131 = vunpack.c.l.b16 %v79
    %v132 = vunpack.c.l.b16 %v80
    %v133 = vunpack.c.l.b16 %v81
    %v134 = vunpack.c.l.b16 %v82
    %v135 = vunpack.c.l.b16 %v83
    %v136 = vunpack.c.l.b16 %v84
    %v137 = vunpack.c.l.b16 %v85
    %v138 = vunpack.c.l.b16 %v86
    %v139 = vunpack.c.l.b16 %v87
    %v140 = vunpack.c.l.b16 %v88
    %v141 = vunpack.c.l.b16 %v89
    %v142 = vunpack.c.l.b16 %v90
    %v143 = vunpack.c.l.b16 %v91
    %v144 = vunpack.c.l.b16 %v92
    %v145 = vunpack.c.l.b16 %v93
    %v146 = vunpack.c.l.b16 %v94
    %v147 = vunpack.c.l.b16 %v95
    %v148 = vunpack.c.l.b16 %v96
    %v149 = vunpack.c.l.b16 %v97
    %v150 = vunpack.c.l.b16 %v98
    %v151 = vunpack.c.l.b16 %v99
    %v152 = vunpack.c.l.b16 %v100
    %v153 = vunpack.c.l.b16 %v101
    %v154 = vpack.c.b16 %v131, %v130
    %v155 = vpack.c.b16 %v133, %v132
    %v156 = vpack.c.b16 %v135, %v134
    %v157 = vpack.c.b16 %v137, %v136
    %v158 = vpack.c.b16 %v139, %v138
    %v159 = vpack.c.b16 %v141, %v140
    %v160 = vpack.c.b16 %v143, %v142
    %v161 = vpack.c.b16 %v145, %v144
    %v162 = vpack.c.b16 %v147, %v146
    %v163 = vpack.c.b16 %v149, %v148
    %v164 = vpack.c.b16 %v151, %v150
    %v165 = vpack.c.b16 %v153, %v152
    %vm178 = vcmask 523264
    %v180 = vsel %vm178, %v103, 0
    %v183 = vsel %vm178, %v105, 0
    %185 = vmatprep.subr.bf16.mxu0 0
    %186 = vmatpush1.bf16.msra.mxu0 %v154
    %187 = vmatprep.subr.bf16.mxu0 0
    %188 = vmatpush1.bf16.msra.mxu0 %v155
    %189 = vmatprep.subr.bf16.mxu0 0
    %190 = vmatpush1.bf16.msra.mxu0 %v156
    %191 = vmatprep.subr.bf16.mxu0 0
    %192 = vmatpush1.bf16.msra.mxu0 %v157
    %193 = vmatprep.subr.bf16.mxu0 0
    %194 = vmatpush1.bf16.msra.mxu0 %v158
    %195 = vmatprep.subr.bf16.mxu0 0
    %196 = vmatpush1.bf16.msra.mxu0 %v159
    %197 = vmatprep.subr.bf16.mxu0 0
    %198 = vmatpush1.bf16.msra.mxu0 %v160
    %199 = vmatprep.subr.bf16.mxu0 0
    %200 = vmatpush1.bf16.msra.mxu0 %v161
    %201 = vmatprep.subr.bf16.mxu0 0
    %202 = vmatpush1.bf16.msra.mxu0 %v162
    %203 = vmatprep.subr.bf16.mxu0 0
    %204 = vmatpush1.bf16.msra.mxu0 %v163
    %205 = vmatprep.subr.bf16.mxu0 0
    %206 = vmatpush1.bf16.msra.mxu0 %v164
    %207 = vmatprep.subr.bf16.mxu0 0
    %208 = vmatpush1.bf16.msra.mxu0 %v165
    %209 = vmatprep.subr.bf16.mxu0 0
    %210 = vmatpush1.bf16.msra.mxu0 0
    %211 = vmatprep.subr.bf16.mxu0 0
    %212 = vmatpush1.bf16.msra.mxu0 0
    %213 = vmatprep.subr.bf16.mxu0 0
    %214 = vmatpush1.bf16.msra.mxu0 0
    %215 = vmatprep.subr.bf16.mxu0 0
    %216 = vmatpush1.bf16.msra.mxu0 0
    %217 = vmatprep.mubr.bf16.mxu0 %v180
    %218 = vmatmul.mubr.bf16.gmra.mrb[0].mxu0 %v102
    %v219 = vpop.f32.mrb[0].mxu0
    %v220 = vadd.f32 0.0, %v219
    %v221 = vpop.f32.mrb[0].mxu0
    %v222 = vpop.f32.mrb[0].mxu0
    %v223 = vadd.f32 0.0, %v222
    %v224 = vpop.f32.mrb[0].mxu0
    %225 = vmatprep.mubr.bf16.mxu0 %v183
    %226 = vmatmul.mubr.bf16.gmra.mrb[0].mxu0 %v104
    %v227 = vpop.f32.mrb[0].mxu0
    %v228 = vadd.f32 0.0, %v227
    %v229 = vpop.f32.mrb[0].mxu0
    %v230 = vpop.f32.mrb[0].mxu0
    %v231 = vadd.f32 0.0, %v230
    %v232 = vpop.f32.mrb[0].mxu0
    %233 = vdwg.mxu0
    %v234 = vld [vmem:[%s2] sm:$0x1]
    %v235 = vld [vmem:[%s2 + $0x1] sm:$0xff]
    %v236 = vld [vmem:[%s2 + $0x9] sm:$0xff]
    %237 = vst.msk [vmem:[#allocation2] sm:$0xff] %vm178, 0.0
    %238 = vst.msk [vmem:[#allocation2 + $0x8] sm:$0xff] %vm178, 0.0
    %239 = vst.msk [vmem:[#allocation2 + $0x10] sm:$0xff] %vm178, 0.0
    %240 = vst.msk [vmem:[#allocation2 + $0x18] sm:$0xff] %vm178, 0.0
    %241 = vst.msk [vmem:[#allocation2 + $0x20] sm:$0xff] %vm178, 0.0
    %242 = vst.msk [vmem:[#allocation2 + $0x28] sm:$0xff] %vm178, 0.0
    %vm243 = vcmask 516096
    %244 = vst.msk [vmem:[#allocation2] sm:$0x1] %vm243, %v234
    %v245 = vadd.f32 %v220, %v235
    %v246 = vadd.f32 %v223, %v236
    %247 = vst.msk [vmem:[#allocation2 + $0x1] sm:$0xff] %vm178, %v245
    %248 = vst.msk [vmem:[#allocation2 + $0x9] sm:$0xff] %vm178, %v246
    %249 = vst.msk [vmem:[#allocation2 + $0x18] sm:$0x1] %vm243, %v234
    %v250 = vadd.f32 %v228, %v235
    %v251 = vadd.f32 %v231, %v236
    %252 = vst.msk [vmem:[#allocation2 + $0x19] sm:$0xff] %vm178, %v250
    %253 = vst.msk [vmem:[#allocation2 + $0x21] sm:$0xff] %vm178, %v251
    %v254 = vld [vmem:[#allocation2] sm:$0xff]
    %v255 = vld [vmem:[#allocation2 + $0x8] sm:$0xff]
    %v256 = vld [vmem:[#allocation2 + $0x10] sm:$0xff]
    %v257 = vld [vmem:[#allocation2 + $0x18] sm:$0xff]
    %v258 = vld [vmem:[#allocation2 + $0x20] sm:$0xff]
    %v259 = vld [vmem:[#allocation2 + $0x28] sm:$0xff]
    %v260 = vld [vmem:[%s3] sm:$0x1]
    %v261 = vld [vmem:[%s4] sm:$0x1]
    %v262 = vsel %vm178, %v254, 0.0
    %263 = vadd.xlane.f32.xlu0 %v262
    %v264 = vpop.xlane.xlu0 %263
    %v265 = vsel %vm178, %v255, 0.0
    %266 = vadd.xlane.f32.xlu0 %v265
    %v267 = vpop.xlane.xlu0 %266
    %v268 = vsel %vm178, %v256, 0.0
    %269 = vadd.xlane.f32.xlu0 %v268
    %v270 = vpop.xlane.xlu0 %269
    %v271 = vsel %vm178, %v257, 0.0
    %272 = vadd.xlane.f32.xlu0 %v271
    %v273 = vpop.xlane.xlu0 %272
    %v274 = vsel %vm178, %v258, 0.0
    %275 = vadd.xlane.f32.xlu0 %v274
    %v276 = vpop.xlane.xlu0 %275
    %v277 = vsel %vm178, %v259, 0.0
    %278 = vadd.xlane.f32.xlu0 %v277
    %v279 = vpop.xlane.xlu0 %278
    %v280 = vrcp.pop 64.0
    %v281 = vmul.f32 %v264, %v280
    %v282 = vmul.f32 %v267, %v280
    %v283 = vmul.f32 %v270, %v280
    %v284 = vmul.f32 %v273, %v280
    %v285 = vmul.f32 %v276, %v280
    %v286 = vmul.f32 %v279, %v280
    %v287 = vsub.f32 %v254, %v281
    %v288 = vsub.f32 %v255, %v282
    %v289 = vsub.f32 %v256, %v283
    %v290 = vsub.f32 %v257, %v284
    %v291 = vsub.f32 %v258, %v285
    %v292 = vsub.f32 %v259, %v286
    %v293 = vmul.f32 %v287, %v287
    %v294 = vmul.f32 %v288, %v288
    %v295 = vmul.f32 %v289, %v289
    %v296 = vmul.f32 %v290, %v290
    %v297 = vmul.f32 %v291, %v291
    %v298 = vmul.f32 %v292, %v292
    %v299 = vsel %vm178, %v293, 0.0
    %300 = vadd.xlane.f32.xlu0 %v299
    %v301 = vpop.xlane.xlu0 %300
    %v302 = vsel %vm178, %v294, 0.0
    %303 = vadd.xlane.f32.xlu0 %v302
    %v304 = vpop.xlane.xlu0 %303
    %v305 = vsel %vm178, %v295, 0.0
    %306 = vadd.xlane.f32.xlu0 %v305
    %v307 = vpop.xlane.xlu0 %306
    %v308 = vsel %vm178, %v296, 0.0
    %309 = vadd.xlane.f32.xlu0 %v308
    %v310 = vpop.xlane.xlu0 %309
    %v311 = vsel %vm178, %v297, 0.0
    %312 = vadd.xlane.f32.xlu0 %v311
    %v313 = vpop.xlane.xlu0 %312
    %v314 = vsel %vm178, %v298, 0.0
    %315 = vadd.xlane.f32.xlu0 %v314
    %v316 = vpop.xlane.xlu0 %315
    %v317 = vmul.f32 %v301, %v280
    %v318 = vmul.f32 %v304, %v280
    %v319 = vmul.f32 %v307, %v280
    %v320 = vmul.f32 %v310, %v280
    %v321 = vmul.f32 %v313, %v280
    %v322 = vmul.f32 %v316, %v280
    %v323 = vadd.f32 %v317, 1e-05
    %v324 = vadd.f32 %v318, 1e-05
    %v325 = vadd.f32 %v319, 1e-05
    %v326 = vadd.f32 %v320, 1e-05
    %v327 = vadd.f32 %v321, 1e-05
    %v328 = vadd.f32 %v322, 1e-05
    %v329 = vrsqrt.pop %v323
    %v330 = vrsqrt.pop %v324
    %v331 = vrsqrt.pop %v325
    %v332 = vrsqrt.pop %v326
    %v333 = vrsqrt.pop %v327
    %v334 = vrsqrt.pop %v328
    %v335 = vmul.f32 %v287, %v329
    %v336 = vmul.f32 %v288, %v330
    %v337 = vmul.f32 %v289, %v331
    %v338 = vmul.f32 %v290, %v332
    %v339 = vmul.f32 %v291, %v333
    %v340 = vmul.f32 %v292, %v334
    %v342 = vlaneseq
    %v343 = vshrl.u32 %v342, 7
    %v344 = vsub.s32 0, %v343
    %v345 = vrot.slane %v260, %v344
    %v347 = vmul.f32 %v335, %v345
    %v348 = vmul.f32 %v336, %v345
    %v349 = vmul.f32 %v337, %v345
    %v350 = vmul.f32 %v338, %v345
    %v351 = vmul.f32 %v339, %v345
    %v352 = vmul.f32 %v340, %v345
    %v354 = vlaneseq
    %v355 = vshrl.u32 %v354, 7
    %v356 = vsub.s32 0, %v355
    %v357 = vrot.slane %v261, %v356
    %v359 = vadd.f32 %v347, %v357
    %v360 = vadd.f32 %v348, %v357
    %v361 = vadd.f32 %v349, %v357
    %v362 = vadd.f32 %v350, %v357
    %v363 = vadd.f32 %v351, %v357
    %v364 = vadd.f32 %v352, %v357
    %v365 = vlaneseq
    %v366 = vand.u32 %v365, 127
    %vm367 = vcmp.lt.s32.totalorder %v366, 17
    %v368 = vsel %vm367, 0.0, -1e+30
    %v369 = vld [vmem:[%s5] sm:$0x1]
    %v370 = vld [vmem:[%s6] sm:$0x1]
    %v371 = vsel %vm178, %v359, 0.0
    %372 = vadd.xlane.f32.xlu0 %v371
    %v373 = vpop.xlane.xlu0 %372
    %v374 = vsel %vm178, %v360, 0.0
    %375 = vadd.xlane.f32.xlu0 %v374
    %v376 = vpop.xlane.xlu0 %375
    %v377 = vsel %vm178, %v361, 0.0
    %378 = vadd.xlane.f32.xlu0 %v377
    %v379 = vpop.xlane.xlu0 %378
    %v380 = vsel %vm178, %v362, 0.0
    %381 = vadd.xlane.f32.xlu0 %v380
    %v382 = vpop.xlane.xlu0 %381
    %v383 = vsel %vm178, %v363, 0.0
    %384 = vadd.xlane.f32.xlu0 %v383
    %v385 = vpop.xlane.xlu0 %384
    %v386 = vsel %vm178, %v364, 0.0
    %387 = vadd.xlane.f32.xlu0 %v386
    %v388 = vpop.xlane.xlu0 %387
    %v389 = vmul.f32 %v373, %v280
    %v390 = vmul.f32 %v376, %v280
    %v391 = vmul.f32 %v379, %v280
    %v392 = vmul.f32 %v382, %v280
    %v393 = vmul.f32 %v385, %v280
    %v394 = vmul.f32 %v388, %v280
    %v395 = vsub.f32 %v359, %v389
    %v396 = vsub.f32 %v360, %v390
    %v397 = vsub.f32 %v361, %v391
    %v398 = vsub.f32 %v362, %v392
    %v399 = vsub.f32 %v363, %v393
    %v400 = vsub.f32 %v364, %v394
    %v401 = vmul.f32 %v395, %v395
    %v402 = vmul.f32 %v396, %v396
    %v403 = vmul.f32 %v397, %v397
    %v404 = vmul.f32 %v398, %v398
    %v405 = vmul.f32 %v399, %v399
    %v406 = vmul.f32 %v400, %v400
    %v407 = vsel %vm178, %v401, 0.0
    %408 = vadd.xlane.f32.xlu0 %v407
    %v409 = vpop.xlane.xlu0 %408
    %v410 = vsel %vm178, %v402, 0.0
    %411 = vadd.xlane.f32.xlu0 %v410
    %v412 = vpop.xlane.xlu0 %411
    %v413 = vsel %vm178, %v403, 0.0
    %414 = vadd.xlane.f32.xlu0 %v413
    %v415 = vpop.xlane.xlu0 %414
    %v416 = vsel %vm178, %v404, 0.0
    %417 = vadd.xlane.f32.xlu0 %v416
    %v418 = vpop.xlane.xlu0 %417
    %v419 = vsel %vm178, %v405, 0.0
    %420 = vadd.xlane.f32.xlu0 %v419
    %v421 = vpop.xlane.xlu0 %420
    %v422 = vsel %vm178, %v406, 0.0
    %423 = vadd.xlane.f32.xlu0 %v422
    %v424 = vpop.xlane.xlu0 %423
    %v425 = vmul.f32 %v409, %v280
    %v426 = vmul.f32 %v412, %v280
    %v427 = vmul.f32 %v415, %v280
    %v428 = vmul.f32 %v418, %v280
    %v429 = vmul.f32 %v421, %v280
    %v430 = vmul.f32 %v424, %v280
    %v431 = vadd.f32 %v425, 1e-05
    %v432 = vadd.f32 %v426, 1e-05
    %v433 = vadd.f32 %v427, 1e-05
    %v434 = vadd.f32 %v428, 1e-05
    %v435 = vadd.f32 %v429, 1e-05
    %v436 = vadd.f32 %v430, 1e-05
    %v437 = vrsqrt.pop %v431
    %v438 = vrsqrt.pop %v432
    %v439 = vrsqrt.pop %v433
    %v440 = vrsqrt.pop %v434
    %v441 = vrsqrt.pop %v435
    %v442 = vrsqrt.pop %v436
    %v443 = vmul.f32 %v395, %v437
    %v444 = vmul.f32 %v396, %v438
    %v445 = vmul.f32 %v397, %v439
    %v446 = vmul.f32 %v398, %v440
    %v447 = vmul.f32 %v399, %v441
    %v448 = vmul.f32 %v400, %v442
    %v450 = vlaneseq
    %v451 = vshrl.u32 %v450, 7
    %v452 = vsub.s32 0, %v451
    %v453 = vrot.slane %v369, %v452
    %v455 = vmul.f32 %v443, %v453
    %v456 = vmul.f32 %v444, %v453
    %v457 = vmul.f32 %v445, %v453
    %v458 = vmul.f32 %v446, %v453
    %v459 = vmul.f32 %v447, %v453
    %v460 = vmul.f32 %v448, %v453
    %v462 = vlaneseq
    %v463 = vshrl.u32 %v462, 7
    %v464 = vsub.s32 0, %v463
    %v465 = vrot.slane %v370, %v464
    %v467 = vadd.f32 %v455, %v465
    %v468 = vadd.f32 %v456, %v465
    %v469 = vadd.f32 %v457, %v465
    %v470 = vadd.f32 %v458, %v465
    %v471 = vadd.f32 %v459, %v465
    %v472 = vadd.f32 %v460, %v465
    %v473 = vld [vmem:[%s7] sm:$0xff]
    %v474 = vld [vmem:[%s7 + $0x8] sm:$0xff]
    %v475 = vld [vmem:[%s7 + $0x10] sm:$0xff]
    %v476 = vld [vmem:[%s7 + $0x18] sm:$0xff]
    %v477 = vld [vmem:[%s7 + $0x20] sm:$0xff]
    %v478 = vld [vmem:[%s7 + $0x28] sm:$0xff]
    %v479 = vld [vmem:[%s7 + $0x30] sm:$0xff]
    %v480 = vld [vmem:[%s7 + $0x38] sm:$0xff]
    %v481 = vpack.c.bf16 %v468, %v467
    %v482 = vpack.c.bf16 %v470, %v469
    %v483 = vpack.c.bf16 %v472, %v471
    %v484 = vld [vmem:[%s8] sm:$0x3]
    %v486 = vlaneseq
    %v487 = vshrl.u32 %v486, 7
    %v488 = vsub.s32 0, %v487
    %v489 = vrot.slane %v484, %v488
    %v490 = vlaneseq
    %v491 = vshrl.u32 %v490, 7
    %v492 = vsub.s32 1, %v491
    %v493 = vrot.slane %v484, %v492
    %v504 = vunpack.c.l.b16 %v473
    %v505 = vunpack.c.h.b16 %v473
    %v506 = vunpack.c.l.b16 %v474
    %v507 = vunpack.c.h.b16 %v474
    %v508 = vunpack.c.l.b16 %v475
    %v509 = vunpack.c.h.b16 %v475
    %v510 = vunpack.c.l.b16 %v476
    %v511 = vunpack.c.h.b16 %v476
    %v512 = vunpack.c.l.b16 %v477
    %v513 = vunpack.c.h.b16 %v477
    %v514 = vunpack.c.l.b16 %v478
    %v515 = vunpack.c.h.b16 %v478
    %v516 = vunpack.c.l.b16 %v479
    %v517 = vunpack.c.h.b16 %v479
    %v518 = vunpack.c.l.b16 %v480
    %v519 = vunpack.c.h.b16 %v480
    %v520 = vpack.c.b16 %v506, %v504
    %v521 = vpack.c.b16 %v507, %v505
    %v522 = vpack.c.b16 %v510, %v508
    %v523 = vpack.c.b16 %v511, %v509
    %v524 = vpack.c.b16 %v514, %v512
    %v525 = vpack.c.b16 %v515, %v513
    %v526 = vpack.c.b16 %v518, %v516
    %v527 = vpack.c.b16 %v519, %v517
    %v537 = vsel %vm178, %v481, 0
    %v540 = vsel %vm178, %v482, 0
    %v543 = vsel %vm178, %v483, 0
    %545 = vmatprep.subr.bf16.mxu0 %v521
    %546 = vmatpush1.bf16.msra.mxu0 %v520
    %547 = vmatprep.subr.bf16.mxu0 %v523
    %548 = vmatpush1.bf16.msra.mxu0 %v522
    %549 = vmatprep.subr.bf16.mxu0 %v525
    %550 = vmatpush1.bf16.msra.mxu0 %v524
    %551 = vmatprep.subr.bf16.mxu0 %v527
    %552 = vmatpush1.bf16.msra.mxu0 %v526
    %553 = vmatprep.subr.bf16.mxu0 0
    %554 = vmatpush1.bf16.msra.mxu0 0
    %555 = vmatprep.subr.bf16.mxu0 0
    %556 = vmatpush1.bf16.msra.mxu0 0
    %557 = vmatprep.subr.bf16.mxu0 0
    %558 = vmatpush1.bf16.msra.mxu0 0
    %559 = vmatprep.subr.bf16.mxu0 0
    %560 = vmatpush1.bf16.msra.mxu0 0
    %561 = vmatprep.subr.bf16.mxu0 0
    %562 = vmatpush1.bf16.msra.mxu0 0
    %563 = vmatprep.subr.bf16.mxu0 0
    %564 = vmatpush1.bf16.msra.mxu0 0
    %565 = vmatprep.subr.bf16.mxu0 0
    %566 = vmatpush1.bf16.msra.mxu0 0
    %567 = vmatprep.subr.bf16.mxu0 0
    %568 = vmatpush1.bf16.msra.mxu0 0
    %569 = vmatprep.subr.bf16.mxu0 0
    %570 = vmatpush1.bf16.msra.mxu0 0
    %571 = vmatprep.subr.bf16.mxu0 0
    %572 = vmatpush1.bf16.msra.mxu0 0
    %573 = vmatprep.subr.bf16.mxu0 0
    %574 = vmatpush1.bf16.msra.mxu0 0
    %575 = vmatprep.subr.bf16.mxu0 0
    %576 = vmatpush1.bf16.msra.mxu0 0
    %577 = vmatprep.mubr.bf16.mxu0 0
    %578 = vmatmul.mubr.bf16.gmra.mrb[0].mxu0 %v537
    %v579 = vpop.f32.mrb[0].mxu0
    %v580 = vadd.f32 %v489, %v579
    %v581 = vpop.f32.mrb[0].mxu0
    %v582 = vadd.f32 %v493, %v581
    %v583 = vpop.f32.mrb[0].mxu0
    %v584 = vadd.f32 %v489, %v583
    %v585 = vpop.f32.mrb[0].mxu0
    %v586 = vadd.f32 %v493, %v585
    %587 = vmatprep.mubr.bf16.mxu0 0
    %588 = vmatmul.mubr.bf16.gmra.mrb[0].mxu0 %v540
    %v589 = vpop.f32.mrb[0].mxu0
    %v590 = vadd.f32 %v489, %v589
    %v591 = vpop.f32.mrb[0].mxu0
    %v592 = vadd.f32 %v493, %v591
    %v593 = vpop.f32.mrb[0].mxu0
    %v594 = vadd.f32 %v489, %v593
    %v595 = vpop.f32.mrb[0].mxu0
    %v596 = vadd.f32 %v493, %v595
    %597 = vmatprep.mubr.bf16.mxu0 0
    %598 = vmatmul.mubr.bf16.gmra.mrb[0].mxu0 %v543
    %v599 = vpop.f32.mrb[0].mxu0
    %v600 = vadd.f32 %v489, %v599
    %v601 = vpop.f32.mrb[0].mxu0
    %v602 = vadd.f32 %v493, %v601
    %v603 = vpop.f32.mrb[0].mxu0
    %v604 = vadd.f32 %v489, %v603
    %v605 = vpop.f32.mrb[0].mxu0
    %v606 = vadd.f32 %v493, %v605
    %607 = vdwg.mxu0
    %v608 = vpack.c.bf16 %v584, %v580
    %v609 = vpack.c.bf16 %v590, %v590
    %v610 = vpack.c.bf16 %v600, %v594
    %v611 = vpack.c.bf16 %v604, %v604
    %v612 = vpack.c.bf16 %v586, %v582
    %v613 = vpack.c.bf16 %v592, %v592
    %v614 = vpack.c.bf16 %v602, %v596
    %v615 = vpack.c.bf16 %v606, %v606
    %618 = vrot.lane.b32.xlu0 %v608, 64
    %v619 = vpop.permute.xlu0 %618
    %620 = vrot.lane.b32.xlu0 %v609, 64
    %v621 = vpop.permute.xlu0 %620
    %vm622 = vcmask 130048
    %v624 = vsel %vm622, %v608, 0
    %v627 = vsel %vm622, %v609, 0
    %v630 = vsel %vm622, %v619, 0
    %v633 = vsel %vm622, %v621, 0
    %635 = vmatprep.subr.bf16.mxu0 0
    %636 = vmatpush1.bf16.xpose.msra.mxu0 %v630
    %637 = vmatprep.subr.bf16.mxu0 0
    %638 = vmatpush1.bf16.xpose.msra.mxu0 %v633
    %639 = vmatprep.subr.bf16.mxu0 0
    %640 = vmatpush1.bf16.xpose.msra.mxu0 0
    %641 = vmatprep.subr.bf16.mxu0 0
    %642 = vmatpush1.bf16.xpose.msra.mxu0 0
    %643 = vmatprep.subr.bf16.mxu0 0
    %644 = vmatpush1.bf16.xpose.msra.mxu0 0
    %645 = vmatprep.subr.bf16.mxu0 0
    %646 = vmatpush1.bf16.xpose.msra.mxu0 0
    %647 = vmatprep.subr.bf16.mxu0 0
    %648 = vmatpush1.bf16.xpose.msra.mxu0 0
    %649 = vmatprep.subr.bf16.mxu0 0
    %650 = vmatpush1.bf16.xpose.msra.mxu0 0
    %651 = vmatprep.subr.bf16.mxu0 0
    %652 = vmatpush1.bf16.xpose.msra.mxu0 0
    %653 = vmatprep.subr.bf16.mxu0 0
    %654 = vmatpush1.bf16.xpose.msra.mxu0 0
    %655 = vmatprep.subr.bf16.mxu0 0
    %656 = vmatpush1.bf16.xpose.msra.mxu0 0
    %657 = vmatprep.subr.bf16.mxu0 0
    %658 = vmatpush1.bf16.xpose.msra.mxu0 0
    %659 = vmatprep.subr.bf16.mxu0 0
    %660 = vmatpush1.bf16.xpose.msra.mxu0 0
    %661 = vmatprep.subr.bf16.mxu0 0
    %662 = vmatpush1.bf16.xpose.msra.mxu0 0
    %663 = vmatprep.subr.bf16.mxu0 0
    %664 = vmatpush1.bf16.xpose.msra.mxu0 0
    %665 = vmatprep.subr.bf16.mxu0 0
    %666 = vmatpush1.bf16.xpose.msra.mxu0 0
    %667 = vmatprep.mubr.bf16.mxu0 0
    %668 = vmatmul.mubr.bf16.gmra.mrb[0].mxu0 %v624
    %v669 = vpop.f32.mrb[0].mxu0
    %v670 = vadd.f32 0.0, %v669
    %v671 = vpop.f32.mrb[0].mxu0
    %v672 = vpop.f32.mrb[0].mxu0
    %v673 = vadd.f32 0.0, %v672
    %v674 = vpop.f32.mrb[0].mxu0
    %675 = vmatprep.mubr.bf16.mxu0 0
    %676 = vmatmul.mubr.bf16.gmra.mrb[0].mxu0 %v627
    %v677 = vpop.f32.mrb[0].mxu0
    %v678 = vadd.f32 0.0, %v677
    %v679 = vpop.f32.mrb[0].mxu0
    %v680 = vpop.f32.mrb[0].mxu0
    %v681 = vpop.f32.mrb[0].mxu0
    %682 = vdwg.mxu0
    %685 = vrot.lane.b32.xlu0 %v610, 64
    %v686 = vpop.permute.xlu0 %685
    %687 = vrot.lane.b32.xlu0 %v611, 64
    %v688 = vpop.permute.xlu0 %687
    %v690 = vsel %vm622, %v610, 0
    %v693 = vsel %vm622, %v611, 0
    %v696 = vsel %vm622, %v686, 0
    %v699 = vsel %vm622, %v688, 0
    %701 = vmatprep.subr.bf16.mxu0 0
    %702 = vmatpush1.bf16.xpose.msra.mxu0 %v696
    %703 = vmatprep.subr.bf16.mxu0 0
    %704 = vmatpush1.bf16.xpose.msra.mxu0 %v699
    %705 = vmatprep.subr.bf16.mxu0 0
    %706 = vmatpush1.bf16.xpose.msra.mxu0 0
    %707 = vmatprep.subr.bf16.mxu0 0
    %708 = vmatpush1.bf16.xpose.msra.mxu0 0
    %709 = vmatprep.subr.bf16.mxu0 0
    %710 = vmatpush1.bf16.xpose.msra.mxu0 0
    %711 = vmatprep.subr.bf16.mxu0 0
    %712 = vmatpush1.bf16.xpose.msra.mxu0 0
    %713 = vmatprep.subr.bf16.mxu0 0
    %714 = vmatpush1.bf16.xpose.msra.mxu0 0
    %715 = vmatprep.subr.bf16.mxu0 0
    %716 = vmatpush1.bf16.xpose.msra.mxu0 0
    %717 = vmatprep.subr.bf16.mxu0 0
    %718 = vmatpush1.bf16.xpose.msra.mxu0 0
    %719 = vmatprep.subr.bf16.mxu0 0
    %720 = vmatpush1.bf16.xpose.msra.mxu0 0
    %721 = vmatprep.subr.bf16.mxu0 0
    %722 = vmatpush1.bf16.xpose.msra.mxu0 0
    %723 = vmatprep.subr.bf16.mxu0 0
    %724 = vmatpush1.bf16.xpose.msra.mxu0 0
    %725 = vmatprep.subr.bf16.mxu0 0
    %726 = vmatpush1.bf16.xpose.msra.mxu0 0
    %727 = vmatprep.subr.bf16.mxu0 0
    %728 = vmatpush1.bf16.xpose.msra.mxu0 0
    %729 = vmatprep.subr.bf16.mxu0 0
    %730 = vmatpush1.bf16.xpose.msra.mxu0 0
    %731 = vmatprep.subr.bf16.mxu0 0
    %732 = vmatpush1.bf16.xpose.msra.mxu0 0
    %733 = vmatprep.mubr.bf16.mxu0 0
    %734 = vmatmul.mubr.bf16.gmra.mrb[0].mxu0 %v690
    %v735 = vpop.f32.mrb[0].mxu0
    %v736 = vadd.f32 0.0, %v735
    %v737 = vpop.f32.mrb[0].mxu0
    %v738 = vpop.f32.mrb[0].mxu0
    %v739 = vadd.f32 0.0, %v738
    %v740 = vpop.f32.mrb[0].mxu0
    %741 = vmatprep.mubr.bf16.mxu0 0
    %742 = vmatmul.mubr.bf16.gmra.mrb[0].mxu0 %v693
    %v743 = vpop.f32.mrb[0].mxu0
    %v744 = vadd.f32 0.0, %v743
    %v745 = vpop.f32.mrb[0].mxu0
    %v746 = vpop.f32.mrb[0].mxu0
    %v747 = vpop.f32.mrb[0].mxu0
    %748 = vdwg.mxu0
    %v749 = vmul.f32 %v670, 0.25
    %v750 = vmul.f32 %v673, 0.25
    %v751 = vmul.f32 %v678, 0.25
    %v752 = vmul.f32 %v736, 0.25
    %v753 = vmul.f32 %v739, 0.25
    %v754 = vmul.f32 %v744, 0.25
    %v755 = vadd.f32 %v749, %v368
    %v756 = vadd.f32 %v750, %v368
    %v757 = vadd.f32 %v751, %v368
    %v758 = vadd.f32 %v752, %v368
    %v759 = vadd.f32 %v753, %v368
    %v760 = vadd.f32 %v754, %v368
    %vm761 = vcmask 195584
    %v762 = vsel %vm761, %v755, -inf
    %763 = vmax.xlane.f32.xlu0 %v762
    %v764 = vpop.xlane.xlu0 %763
    %v765 = vsel %vm761, %v756, -inf
    %766 = vmax.xlane.f32.xlu0 %v765
    %v767 = vpop.xlane.xlu0 %766
    %v768 = vsel %vm761, %v757, -inf
    %769 = vmax.xlane.f32.xlu0 %v768
    %v770 = vpop.xlane.xlu0 %769
    %v771 = vsel %vm761, %v758, -inf
    %772 = vmax.xlane.f32.xlu0 %v771
    %v773 = vpop.xlane.xlu0 %772
    %v774 = vsel %vm761, %v759, -inf
    %775 = vmax.xlane.f32.xlu0 %v774
    %v776 = vpop.xlane.xlu0 %775
    %v777 = vsel %vm761, %v760, -inf
    %778 = vmax.xlane.f32.xlu0 %v777
    %v779 = vpop.xlane.xlu0 %778
    %v780 = vsub.f32 %v755, %v764
    %v781 = vsub.f32 %v756, %v767
    %v782 = vsub.f32 %v757, %v770
    %v783 = vsub.f32 %v758, %v773
    %v784 = vsub.f32 %v759, %v776
    %v785 = vsub.f32 %v760, %v779
    %v786 = vmul.f32 %v780, 1.442695
    %v787 = vpow.pop %v786
    %v788 = vmul.f32 %v781, 1.442695
    %v789 = vpow.pop %v788
    %v790 = vmul.f32 %v782, 1.442695
    %v791 = vpow.pop %v790
    %v792 = vmul.f32 %v783, 1.442695
    %v793 = vpow.pop %v792
    %v794 = vmul.f32 %v784, 1.442695
    %v795 = vpow.pop %v794
    %v796 = vmul.f32 %v785, 1.442695
    %v797 = vpow.pop %v796
    %v798 = vsel %vm761, %v787, 0.0
    %799 = vadd.xlane.f32.xlu0 %v798
    %v800 = vpop.xlane.xlu0 %799
    %v801 = vsel %vm761, %v789, 0.0
    %802 = vadd.xlane.f32.xlu0 %v801
    %v803 = vpop.xlane.xlu0 %802
    %v804 = vsel %vm761, %v791, 0.0
    %805 = vadd.xlane.f32.xlu0 %v804
    %v806 = vpop.xlane.xlu0 %805
    %v807 = vsel %vm761, %v793, 0.0
    %808 = vadd.xlane.f32.xlu0 %v807
    %v809 = vpop.xlane.xlu0 %808
    %v810 = vsel %vm761, %v795, 0.0
    %811 = vadd.xlane.f32.xlu0 %v810
    %v812 = vpop.xlane.xlu0 %811
    %v813 = vsel %vm761, %v797, 0.0
    %814 = vadd.xlane.f32.xlu0 %v813
    %v815 = vpop.xlane.xlu0 %814
    %v816 = vrcp.pop %v800
    %v817 = vrcp.pop %v803
    %v818 = vrcp.pop %v806
    %v819 = vrcp.pop %v809
    %v820 = vrcp.pop %v812
    %v821 = vrcp.pop %v815
    %v822 = vmul.f32 %v787, %v816
    %v823 = vmul.f32 %v789, %v817
    %v824 = vmul.f32 %v791, %v818
    %v825 = vmul.f32 %v793, %v819
    %v826 = vmul.f32 %v795, %v820
    %v827 = vmul.f32 %v797, %v821
    %v828 = vpack.c.bf16 %v823, %v822
    %v829 = vpack.c.bf16 %v824, %v824
    %v830 = vpack.c.bf16 %v826, %v825
    %v831 = vpack.c.bf16 %v827, %v827
    %v833 = vsel %vm761, %v828, 0
    %v836 = vsel %vm761, %v829, 0
    %vm838 = vcmask 1043456
    %v840 = vsel %vm838, %v613, 0
    %842 = vmatprep.subr.bf16.mxu0 0
    %843 = vmatpush1.bf16.msra.mxu0 %v612
    %844 = vmatprep.subr.bf16.mxu0 0
    %845 = vmatpush1.bf16.msra.mxu0 %v840
    %846 = vmatprep.subr.bf16.mxu0 0
    %847 = vmatpush1.bf16.msra.mxu0 0
    %848 = vmatprep.subr.bf16.mxu0 0
    %849 = vmatpush1.bf16.msra.mxu0 0
    %850 = vmatprep.subr.bf16.mxu0 0
    %851 = vmatpush1.bf16.msra.mxu0 0
    %852 = vmatprep.subr.bf16.mxu0 0
    %853 = vmatpush1.bf16.msra.mxu0 0
    %854 = vmatprep.subr.bf16.mxu0 0
    %855 = vmatpush1.bf16.msra.mxu0 0
    %856 = vmatprep.subr.bf16.mxu0 0
    %857 = vmatpush1.bf16.msra.mxu0 0
    %858 = vmatprep.subr.bf16.mxu0 0
    %859 = vmatpush1.bf16.msra.mxu0 0
    %860 = vmatprep.subr.bf16.mxu0 0
    %861 = vmatpush1.bf16.msra.mxu0 0
    %862 = vmatprep.subr.bf16.mxu0 0
    %863 = vmatpush1.bf16.msra.mxu0 0
    %864 = vmatprep.subr.bf16.mxu0 0
    %865 = vmatpush1.bf16.msra.mxu0 0
    %866 = vmatprep.subr.bf16.mxu0 0
    %867 = vmatpush1.bf16.msra.mxu0 0
    %868 = vmatprep.subr.bf16.mxu0 0
    %869 = vmatpush1.bf16.msra.mxu0 0
    %870 = vmatprep.subr.bf16.mxu0 0
    %871 = vmatpush1.bf16.msra.mxu0 0
    %872 = vmatprep.subr.bf16.mxu0 0
    %873 = vmatpush1.bf16.msra.mxu0 0
    %874 = vmatprep.mubr.bf16.mxu0 0
    %875 = vmatmul.mubr.bf16.gmra.mrb[0].mxu0 %v833
    %v876 = vpop.f32.mrb[0].mxu0
    %v877 = vadd.f32 0.0, %v876
    %v878 = vpop.f32.mrb[0].mxu0
    %v879 = vpop.f32.mrb[0].mxu0
    %v880 = vadd.f32 0.0, %v879
    %v881 = vpop.f32.mrb[0].mxu0
    %882 = vmatprep.mubr.bf16.mxu0 0
    %883 = vmatmul.mubr.bf16.gmra.mrb[0].mxu0 %v836
    %v884 = vpop.f32.mrb[0].mxu0
    %v885 = vadd.f32 0.0, %v884
    %v886 = vpop.f32.mrb[0].mxu0
    %v887 = vpop.f32.mrb[0].mxu0
    %v888 = vpop.f32.mrb[0].mxu0
    %889 = vdwg.mxu0
    %v891 = vsel %vm761, %v830, 0
    %v894 = vsel %vm761, %v831, 0
    %v897 = vsel %vm838, %v615, 0
    %899 = vmatprep.subr.bf16.mxu0 0
    %900 = vmatpush1.bf16.msra.mxu0 %v614
    %901 = vmatprep.subr.bf16.mxu0 0
    %902 = vmatpush1.bf16.msra.mxu0 %v897
    %903 = vmatprep.subr.bf16.mxu0 0
    %904 = vmatpush1.bf16.msra.mxu0 0
    %905 = vmatprep.subr.bf16.mxu0 0
    %906 = vmatpush1.bf16.msra.mxu0 0
    %907 = vmatprep.subr.bf16.mxu0 0
    %908 = vmatpush1.bf16.msra.mxu0 0
    %909 = vmatprep.subr.bf16.mxu0 0
    %910 = vmatpush1.bf16.msra.mxu0 0
    %911 = vmatprep.subr.bf16.mxu0 0
    %912 = vmatpush1.bf16.msra.mxu0 0
    %913 = vmatprep.subr.bf16.mxu0 0
    %914 = vmatpush1.bf16.msra.mxu0 0
    %915 = vmatprep.subr.bf16.mxu0 0
    %916 = vmatpush1.bf16.msra.mxu0 0
    %917 = vmatprep.subr.bf16.mxu0 0
    %918 = vmatpush1.bf16.msra.mxu0 0
    %919 = vmatprep.subr.bf16.mxu0 0
    %920 = vmatpush1.bf16.msra.mxu0 0
    %921 = vmatprep.subr.bf16.mxu0 0
    %922 = vmatpush1.bf16.msra.mxu0 0
    %923 = vmatprep.subr.bf16.mxu0 0
    %924 = vmatpush1.bf16.msra.mxu0 0
    %925 = vmatprep.subr.bf16.mxu0 0
    %926 = vmatpush1.bf16.msra.mxu0 0
    %927 = vmatprep.subr.bf16.mxu0 0
    %928 = vmatpush1.bf16.msra.mxu0 0
    %929 = vmatprep.subr.bf16.mxu0 0
    %930 = vmatpush1.bf16.msra.mxu0 0
    %931 = vmatprep.mubr.bf16.mxu0 0
    %932 = vmatmul.mubr.bf16.gmra.mrb[0].mxu0 %v891
    %v933 = vpop.f32.mrb[0].mxu0
    %v934 = vadd.f32 0.0, %v933
    %v935 = vpop.f32.mrb[0].mxu0
    %v936 = vpop.f32.mrb[0].mxu0
    %v937 = vadd.f32 0.0, %v936
    %v938 = vpop.f32.mrb[0].mxu0
    %939 = vmatprep.mubr.bf16.mxu0 0
    %940 = vmatmul.mubr.bf16.gmra.mrb[0].mxu0 %v894
    %v941 = vpop.f32.mrb[0].mxu0
    %v942 = vadd.f32 0.0, %v941
    %v943 = vpop.f32.mrb[0].mxu0
    %v944 = vpop.f32.mrb[0].mxu0
    %v945 = vpop.f32.mrb[0].mxu0
    %946 = vdwg.mxu0
    %947 = vrot.lane.b32.xlu0 %v608, 112
    %v948 = vpop.permute.xlu0 %947
    %949 = vrot.lane.b32.xlu0 %v609, 112
    %v950 = vpop.permute.xlu0 %949
    %951 = vrot.lane.b32.xlu0 %v608, 48
    %v952 = vpop.permute.xlu0 %951
    %953 = vrot.lane.b32.xlu0 %v609, 48
    %v954 = vpop.permute.xlu0 %953
    %v956 = vsel %vm622, %v948, 0
    %v959 = vsel %vm622, %v950, 0
    %v962 = vsel %vm622, %v952, 0
    %v965 = vsel %vm622, %v954, 0
    %967 = vmatprep.subr.bf16.mxu0 0
    %968 = vmatpush1.bf16.xpose.msra.mxu0 %v962
    %969 = vmatprep.subr.bf16.mxu0 0
    %970 = vmatpush1.bf16.xpose.msra.mxu0 %v965
    %971 = vmatprep.subr.bf16.mxu0 0
    %972 = vmatpush1.bf16.xpose.msra.mxu0 0
    %973 = vmatprep.subr.bf16.mxu0 0
    %974 = vmatpush1.bf16.xpose.msra.mxu0 0
    %975 = vmatprep.subr.bf16.mxu0 0
    %976 = vmatpush1.bf16.xpose.msra.mxu0 0
    %977 = vmatprep.subr.bf16.mxu0 0
    %978 = vmatpush1.bf16.xpose.msra.mxu0 0
    %979 = vmatprep.subr.bf16.mxu0 0
    %980 = vmatpush1.bf16.xpose.msra.mxu0 0
    %981 = vmatprep.subr.bf16.mxu0 0
    %982 = vmatpush1.bf16.xpose.msra.mxu0 0
    %983 = vmatprep.subr.bf16.mxu0 0
    %984 = vmatpush1.bf16.xpose.msra.mxu0 0
    %985 = vmatprep.subr.bf16.mxu0 0
    %986 = vmatpush1.bf16.xpose.msra.mxu0 0
    %987 = vmatprep.subr.bf16.mxu0 0
    %988 = vmatpush1.bf16.xpose.msra.mxu0 0
    %989 = vmatprep.subr.bf16.mxu0 0
    %990 = vmatpush1.bf16.xpose.msra.mxu0 0
    %991 = vmatprep.subr.bf16.mxu0 0
    %992 = vmatpush1.bf16.xpose.msra.mxu0 0
    %993 = vmatprep.subr.bf16.mxu0 0
    %994 = vmatpush1.bf16.xpose.msra.mxu0 0
    %995 = vmatprep.subr.bf16.mxu0 0
    %996 = vmatpush1.bf16.xpose.msra.mxu0 0
    %997 = vmatprep.subr.bf16.mxu0 0
    %998 = vmatpush1.bf16.xpose.msra.mxu0 0
    %999 = vmatprep.mubr.bf16.mxu0 0
    %1000 = vmatmul.mubr.bf16.gmra.mrb[0].mxu0 %v956
    %v1001 = vpop.f32.mrb[0].mxu0
    %v1002 = vadd.f32 0.0, %v1001
    %v1003 = vpop.f32.mrb[0].mxu0
    %v1004 = vpop.f32.mrb[0].mxu0
    %v1005 = vadd.f32 0.0, %v1004
    %v1006 = vpop.f32.mrb[0].mxu0
    %1007 = vmatprep.mubr.bf16.mxu0 0
    %1008 = vmatmul.mubr.bf16.gmra.mrb[0].mxu0 %v959
    %v1009 = vpop.f32.mrb[0].mxu0
    %v1010 = vadd.f32 0.0, %v1009
    %v1011 = vpop.f32.mrb[0].mxu0
    %v1012 = vpop.f32.mrb[0].mxu0
    %v1013 = vpop.f32.mrb[0].mxu0
    %1014 = vdwg.mxu0
    %1015 = vrot.lane.b32.xlu0 %v610, 112
    %v1016 = vpop.permute.xlu0 %1015
    %1017 = vrot.lane.b32.xlu0 %v611, 112
    %v1018 = vpop.permute.xlu0 %1017
    %1019 = vrot.lane.b32.xlu0 %v610, 48
    %v1020 = vpop.permute.xlu0 %1019
    %1021 = vrot.lane.b32.xlu0 %v611, 48
    %v1022 = vpop.permute.xlu0 %1021
    %v1024 = vsel %vm622, %v1016, 0
    %v1027 = vsel %vm622, %v1018, 0
    %v1030 = vsel %vm622, %v1020, 0
    %v1033 = vsel %vm622, %v1022, 0
    %1035 = vmatprep.subr.bf16.mxu0 0
    %1036 = vmatpush1.bf16.xpose.msra.mxu0 %v1030
    %1037 = vmatprep.subr.bf16.mxu0 0
    %1038 = vmatpush1.bf16.xpose.msra.mxu0 %v1033
    %1039 = vmatprep.subr.bf16.mxu0 0
    %1040 = vmatpush1.bf16.xpose.msra.mxu0 0
    %1041 = vmatprep.subr.bf16.mxu0 0
    %1042 = vmatpush1.bf16.xpose.msra.mxu0 0
    %1043 = vmatprep.subr.bf16.mxu0 0
    %1044 = vmatpush1.bf16.xpose.msra.mxu0 0
    %1045 = vmatprep.subr.bf16.mxu0 0
    %1046 = vmatpush1.bf16.xpose.msra.mxu0 0
    %1047 = vmatprep.subr.bf16.mxu0 0
    %1048 = vmatpush1.bf16.xpose.msra.mxu0 0
    %1049 = vmatprep.subr.bf16.mxu0 0
    %1050 = vmatpush1.bf16.xpose.msra.mxu0 0
    %1051 = vmatprep.subr.bf16.mxu0 0
    %1052 = vmatpush1.bf16.xpose.msra.mxu0 0
    %1053 = vmatprep.subr.bf16.mxu0 0
    %1054 = vmatpush1.bf16.xpose.msra.mxu0 0
    %1055 = vmatprep.subr.bf16.mxu0 0
    %1056 = vmatpush1.bf16.xpose.msra.mxu0 0
    %1057 = vmatprep.subr.bf16.mxu0 0
    %1058 = vmatpush1.bf16.xpose.msra.mxu0 0
    %1059 = vmatprep.subr.bf16.mxu0 0
    %1060 = vmatpush1.bf16.xpose.msra.mxu0 0
    %1061 = vmatprep.subr.bf16.mxu0 0
    %1062 = vmatpush1.bf16.xpose.msra.mxu0 0
    %1063 = vmatprep.subr.bf16.mxu0 0
    %1064 = vmatpush1.bf16.xpose.msra.mxu0 0
    %1065 = vmatprep.subr.bf16.mxu0 0
    %1066 = vmatpush1.bf16.xpose.msra.mxu0 0
    %1067 = vmatprep.mubr.bf16.mxu0 0
    %1068 = vmatmul.mubr.bf16.gmra.mrb[0].mxu0 %v1024
    %v1069 = vpop.f32.mrb[0].mxu0
    %v1070 = vadd.f32 0.0, %v1069
    %v1071 = vpop.f32.mrb[0].mxu0
    %v1072 = vpop.f32.mrb[0].mxu0
    %v1073 = vadd.f32 0.0, %v1072
    %v1074 = vpop.f32.mrb[0].mxu0
    %1075 = vmatprep.mubr.bf16.mxu0 0
    %1076 = vmatmul.mubr.bf16.gmra.mrb[0].mxu0 %v1027
    %v1077 = vpop.f32.mrb[0].mxu0
    %v1078 = vadd.f32 0.0, %v1077
    %v1079 = vpop.f32.mrb[0].mxu0
    %v1080 = vpop.f32.mrb[0].mxu0
    %v1081 = vpop.f32.mrb[0].mxu0
    %1082 = vdwg.mxu0
    %v1083 = vmul.f32 %v1002, 0.25
    %v1084 = vmul.f32 %v1005, 0.25
    %v1085 = vmul.f32 %v1010, 0.25
    %v1086 = vmul.f32 %v1070, 0.25
    %v1087 = vmul.f32 %v1073, 0.25
    %v1088 = vmul.f32 %v1078, 0.25
    %v1089 = vadd.f32 %v1083, %v368
    %v1090 = vadd.f32 %v1084, %v368
    %v1091 = vadd.f32 %v1085, %v368
    %v1092 = vadd.f32 %v1086, %v368
    %v1093 = vadd.f32 %v1087, %v368
    %v1094 = vadd.f32 %v1088, %v368
    %v1095 = vsel %vm761, %v1089, -inf
    %1096 = vmax.xlane.f32.xlu0 %v1095
    %v1097 = vpop.xlane.xlu0 %1096
    %v1098 = vsel %vm761, %v1090, -inf
    %1099 = vmax.xlane.f32.xlu0 %v1098
    %v1100 = vpop.xlane.xlu0 %1099
    %v1101 = vsel %vm761, %v1091, -inf
    %1102 = vmax.xlane.f32.xlu0 %v1101
    %v1103 = vpop.xlane.xlu0 %1102
    %v1104 = vsel %vm761, %v1092, -inf
    %1105 = vmax.xlane.f32.xlu0 %v1104
    %v1106 = vpop.xlane.xlu0 %1105
    %v1107 = vsel %vm761, %v1093, -inf
    %1108 = vmax.xlane.f32.xlu0 %v1107
    %v1109 = vpop.xlane.xlu0 %1108
    %v1110 = vsel %vm761, %v1094, -inf
    %1111 = vmax.xlane.f32.xlu0 %v1110
    %v1112 = vpop.xlane.xlu0 %1111
    %v1113 = vsub.f32 %v1089, %v1097
    %v1114 = vsub.f32 %v1090, %v1100
    %v1115 = vsub.f32 %v1091, %v1103
    %v1116 = vsub.f32 %v1092, %v1106
    %v1117 = vsub.f32 %v1093, %v1109
    %v1118 = vsub.f32 %v1094, %v1112
    %v1119 = vmul.f32 %v1113, 1.442695
    %v1120 = vpow.pop %v1119
    %v1121 = vmul.f32 %v1114, 1.442695
    %v1122 = vpow.pop %v1121
    %v1123 = vmul.f32 %v1115, 1.442695
    %v1124 = vpow.pop %v1123
    %v1125 = vmul.f32 %v1116, 1.442695
    %v1126 = vpow.pop %v1125
    %v1127 = vmul.f32 %v1117, 1.442695
    %v1128 = vpow.pop %v1127
    %v1129 = vmul.f32 %v1118, 1.442695
    %v1130 = vpow.pop %v1129
    %v1131 = vsel %vm761, %v1120, 0.0
    %1132 = vadd.xlane.f32.xlu0 %v1131
    %v1133 = vpop.xlane.xlu0 %1132
    %v1134 = vsel %vm761, %v1122, 0.0
    %1135 = vadd.xlane.f32.xlu0 %v1134
    %v1136 = vpop.xlane.xlu0 %1135
    %v1137 = vsel %vm761, %v1124, 0.0
    %1138 = vadd.xlane.f32.xlu0 %v1137
    %v1139 = vpop.xlane.xlu0 %1138
    %v1140 = vsel %vm761, %v1126, 0.0
    %1141 = vadd.xlane.f32.xlu0 %v1140
    %v1142 = vpop.xlane.xlu0 %1141
    %v1143 = vsel %vm761, %v1128, 0.0
    %1144 = vadd.xlane.f32.xlu0 %v1143
    %v1145 = vpop.xlane.xlu0 %1144
    %v1146 = vsel %vm761, %v1130, 0.0
    %1147 = vadd.xlane.f32.xlu0 %v1146
    %v1148 = vpop.xlane.xlu0 %1147
    %v1149 = vrcp.pop %v1133
    %v1150 = vrcp.pop %v1136
    %v1151 = vrcp.pop %v1139
    %v1152 = vrcp.pop %v1142
    %v1153 = vrcp.pop %v1145
    %v1154 = vrcp.pop %v1148
    %v1155 = vmul.f32 %v1120, %v1149
    %v1156 = vmul.f32 %v1122, %v1150
    %v1157 = vmul.f32 %v1124, %v1151
    %v1158 = vmul.f32 %v1126, %v1152
    %v1159 = vmul.f32 %v1128, %v1153
    %v1160 = vmul.f32 %v1130, %v1154
    %v1161 = vpack.c.bf16 %v1156, %v1155
    %v1162 = vpack.c.bf16 %v1157, %v1157
    %v1163 = vpack.c.bf16 %v1159, %v1158
    %v1164 = vpack.c.bf16 %v1160, %v1160
    %1167 = vrot.lane.b32.xlu0 %v612, 112
    %v1168 = vpop.permute.xlu0 %1167
    %1169 = vrot.lane.b32.xlu0 %v613, 112
    %v1170 = vpop.permute.xlu0 %1169
    %v1173 = vsel %vm761, %v1161, 0
    %v1176 = vsel %vm761, %v1162, 0
    %v1179 = vsel %vm838, %v1170, 0
    %1181 = vmatprep.subr.bf16.mxu0 0
    %1182 = vmatpush1.bf16.msra.mxu0 %v1168
    %1183 = vmatprep.subr.bf16.mxu0 0
    %1184 = vmatpush1.bf16.msra.mxu0 %v1179
    %1185 = vmatprep.subr.bf16.mxu0 0
    %1186 = vmatpush1.bf16.msra.mxu0 0
    %1187 = vmatprep.subr.bf16.mxu0 0
    %1188 = vmatpush1.bf16.msra.mxu0 0
    %1189 = vmatprep.subr.bf16.mxu0 0
    %1190 = vmatpush1.bf16.msra.mxu0 0
    %1191 = vmatprep.subr.bf16.mxu0 0
    %1192 = vmatpush1.bf16.msra.mxu0 0
    %1193 = vmatprep.subr.bf16.mxu0 0
    %1194 = vmatpush1.bf16.msra.mxu0 0
    %1195 = vmatprep.subr.bf16.mxu0 0
    %1196 = vmatpush1.bf16.msra.mxu0 0
    %1197 = vmatprep.subr.bf16.mxu0 0
    %1198 = vmatpush1.bf16.msra.mxu0 0
    %1199 = vmatprep.subr.bf16.mxu0 0
    %1200 = vmatpush1.bf16.msra.mxu0 0
    %1201 = vmatprep.subr.bf16.mxu0 0
    %1202 = vmatpush1.bf16.msra.mxu0 0
    %1203 = vmatprep.subr.bf16.mxu0 0
    %1204 = vmatpush1.bf16.msra.mxu0 0
    %1205 = vmatprep.subr.bf16.mxu0 0
    %1206 = vmatpush1.bf16.msra.mxu0 0
    %1207 = vmatprep.subr.bf16.mxu0 0
    %1208 = vmatpush1.bf16.msra.mxu0 0
    %1209 = vmatprep.subr.bf16.mxu0 0
    %1210 = vmatpush1.bf16.msra.mxu0 0
    %1211 = vmatprep.subr.bf16.mxu0 0
    %1212 = vmatpush1.bf16.msra.mxu0 0
    %1213 = vmatprep.mubr.bf16.mxu0 0
    %1214 = vmatmul.mubr.bf16.gmra.mrb[0].mxu0 %v1173
    %v1215 = vpop.f32.mrb[0].mxu0
    %v1216 = vadd.f32 0.0, %v1215
    %v1217 = vpop.f32.mrb[0].mxu0
    %v1218 = vpop.f32.mrb[0].mxu0
    %v1219 = vadd.f32 0.0, %v1218
    %v1220 = vpop.f32.mrb[0].mxu0
    %1221 = vmatprep.mubr.bf16.mxu0 0
    %1222 = vmatmul.mubr.bf16.gmra.mrb[0].mxu0 %v1176
    %v1223 = vpop.f32.mrb[0].mxu0
    %v1224 = vadd.f32 0.0, %v1223
    %v1225 = vpop.f32.mrb[0].mxu0
    %v1226 = vpop.f32.mrb[0].mxu0
    %v1227 = vpop.f32.mrb[0].mxu0
    %1228 = vdwg.mxu0
    %1231 = vrot.lane.b32.xlu0 %v614, 112
    %v1232 = vpop.permute.xlu0 %1231
    %1233 = vrot.lane.b32.xlu0 %v615, 112
    %v1234 = vpop.permute.xlu0 %1233
    %v1237 = vsel %vm761, %v1163, 0
    %v1240 = vsel %vm761, %v1164, 0
    %v1243 = vsel %vm838, %v1234, 0
    %1245 = vmatprep.subr.bf16.mxu0 0
    %1246 = vmatpush1.bf16.msra.mxu0 %v1232
    %1247 = vmatprep.subr.bf16.mxu0 0
    %1248 = vmatpush1.bf16.msra.mxu0 %v1243
    %1249 = vmatprep.subr.bf16.mxu0 0
    %1250 = vmatpush1.bf16.msra.mxu0 0
    %1251 = vmatprep.subr.bf16.mxu0 0
    %1252 = vmatpush1.bf16.msra.mxu0 0
    %1253 = vmatprep.subr.bf16.mxu0 0
    %1254 = vmatpush1.bf16.msra.mxu0 0
    %1255 = vmatprep.subr.bf16.mxu0 0
    %1256 = vmatpush1.bf16.msra.mxu0 0
    %1257 = vmatprep.subr.bf16.mxu0 0
    %1258 = vmatpush1.bf16.msra.mxu0 0
    %1259 = vmatprep.subr.bf16.mxu0 0
    %1260 = vmatpush1.bf16.msra.mxu0 0
    %1261 = vmatprep.subr.bf16.mxu0 0
    %1262 = vmatpush1.bf16.msra.mxu0 0
    %1263 = vmatprep.subr.bf16.mxu0 0
    %1264 = vmatpush1.bf16.msra.mxu0 0
    %1265 = vmatprep.subr.bf16.mxu0 0
    %1266 = vmatpush1.bf16.msra.mxu0 0
    %1267 = vmatprep.subr.bf16.mxu0 0
    %1268 = vmatpush1.bf16.msra.mxu0 0
    %1269 = vmatprep.subr.bf16.mxu0 0
    %1270 = vmatpush1.bf16.msra.mxu0 0
    %1271 = vmatprep.subr.bf16.mxu0 0
    %1272 = vmatpush1.bf16.msra.mxu0 0
    %1273 = vmatprep.subr.bf16.mxu0 0
    %1274 = vmatpush1.bf16.msra.mxu0 0
    %1275 = vmatprep.subr.bf16.mxu0 0
    %1276 = vmatpush1.bf16.msra.mxu0 0
    %1277 = vmatprep.mubr.bf16.mxu0 0
    %1278 = vmatmul.mubr.bf16.gmra.mrb[0].mxu0 %v1237
    %v1279 = vpop.f32.mrb[0].mxu0
    %v1280 = vadd.f32 0.0, %v1279
    %v1281 = vpop.f32.mrb[0].mxu0
    %v1282 = vpop.f32.mrb[0].mxu0
    %v1283 = vadd.f32 0.0, %v1282
    %v1284 = vpop.f32.mrb[0].mxu0
    %1285 = vmatprep.mubr.bf16.mxu0 0
    %1286 = vmatmul.mubr.bf16.gmra.mrb[0].mxu0 %v1240
    %v1287 = vpop.f32.mrb[0].mxu0
    %v1288 = vadd.f32 0.0, %v1287
    %v1289 = vpop.f32.mrb[0].mxu0
    %v1290 = vpop.f32.mrb[0].mxu0
    %v1291 = vpop.f32.mrb[0].mxu0
    %1292 = vdwg.mxu0
    %1293 = vrot.lane.b32.xlu0 %v608, 96
    %v1294 = vpop.permute.xlu0 %1293
    %1295 = vrot.lane.b32.xlu0 %v609, 96
    %v1296 = vpop.permute.xlu0 %1295
    %1297 = vrot.lane.b32.xlu0 %v608, 32
    %v1298 = vpop.permute.xlu0 %1297
    %1299 = vrot.lane.b32.xlu0 %v609, 32
    %v1300 = vpop.permute.xlu0 %1299
    %v1302 = vsel %vm622, %v1294, 0
    %v1305 = vsel %vm622, %v1296, 0
    %v1308 = vsel %vm622, %v1298, 0
    %v1311 = vsel %vm622, %v1300, 0
    %1313 = vmatprep.subr.bf16.mxu0 0
    %1314 = vmatpush1.bf16.xpose.msra.mxu0 %v1308
    %1315 = vmatprep.subr.bf16.mxu0 0
    %1316 = vmatpush1.bf16.xpose.msra.mxu0 %v1311
    %1317 = vmatprep.subr.bf16.mxu0 0
    %1318 = vmatpush1.bf16.xpose.msra.mxu0 0
    %1319 = vmatprep.subr.bf16.mxu0 0
    %1320 = vmatpush1.bf16.xpose.msra.mxu0 0
    %1321 = vmatprep.subr.bf16.mxu0 0
    %1322 = vmatpush1.bf16.xpose.msra.mxu0 0
    %1323 = vmatprep.subr.bf16.mxu0 0
    %1324 = vmatpush1.bf16.xpose.msra.mxu0 0
    %1325 = vmatprep.subr.bf16.mxu0 0
    %1326 = vmatpush1.bf16.xpose.msra.mxu0 0
    %1327 = vmatprep.subr.bf16.mxu0 0
    %1328 = vmatpush1.bf16.xpose.msra.mxu0 0
    %1329 = vmatprep.subr.bf16.mxu0 0
    %1330 = vmatpush1.bf16.xpose.msra.mxu0 0
    %1331 = vmatprep.subr.bf16.mxu0 0
    %1332 = vmatpush1.bf16.xpose.msra.mxu0 0
    %1333 = vmatprep.subr.bf16.mxu0 0
    %1334 = vmatpush1.bf16.xpose.msra.mxu0 0
    %1335 = vmatprep.subr.bf16.mxu0 0
    %1336 = vmatpush1.bf16.xpose.msra.mxu0 0
    %1337 = vmatprep.subr.bf16.mxu0 0
    %1338 = vmatpush1.bf16.xpose.msra.mxu0 0
    %1339 = vmatprep.subr.bf16.mxu0 0
    %1340 = vmatpush1.bf16.xpose.msra.mxu0 0
    %1341 = vmatprep.subr.bf16.mxu0 0
    %1342 = vmatpush1.bf16.xpose.msra.mxu0 0
    %1343 = vmatprep.subr.bf16.mxu0 0
    %1344 = vmatpush1.bf16.xpose.msra.mxu0 0
    %1345 = vmatprep.mubr.bf16.mxu0 0
    %1346 = vmatmul.mubr.bf16.gmra.mrb[0].mxu0 %v1302
    %v1347 = vpop.f32.mrb[0].mxu0
    %v1348 = vadd.f32 0.0, %v1347
    %v1349 = vpop.f32.mrb[0].mxu0
    %v1350 = vpop.f32.mrb[0].mxu0
    %v1351 = vadd.f32 0.0, %v1350
    %v1352 = vpop.f32.mrb[0].mxu0
    %1353 = vmatprep.mubr.bf16.mxu0 0
    %1354 = vmatmul.mubr.bf16.gmra.mrb[0].mxu0 %v1305
    %v1355 = vpop.f32.mrb[0].mxu0
    %v1356 = vadd.f32 0.0, %v1355
    %v1357 = vpop.f32.mrb[0].mxu0
    %v1358 = vpop.f32.mrb[0].mxu0
    %v1359 = vpop.f32.mrb[0].mxu0
    %1360 = vdwg.mxu0
    %1361 = vrot.lane.b32.xlu0 %v610, 96
    %v1362 = vpop.permute.xlu0 %1361
    %1363 = vrot.lane.b32.xlu0 %v611, 96
    %v1364 = vpop.permute.xlu0 %1363
    %1365 = vrot.lane.b32.xlu0 %v610, 32
    %v1366 = vpop.permute.xlu0 %1365
    %1367 = vrot.lane.b32.xlu0 %v611, 32
    %v1368 = vpop.permute.xlu0 %1367
    %v1370 = vsel %vm622, %v1362, 0
    %v1373 = vsel %vm622, %v1364, 0
    %v1376 = vsel %vm622, %v1366, 0
    %v1379 = vsel %vm622, %v1368, 0
    %1381 = vmatprep.subr.bf16.mxu0 0
    %1382 = vmatpush1.bf16.xpose.msra.mxu0 %v1376
    %1383 = vmatprep.subr.bf16.mxu0 0
    %1384 = vmatpush1.bf16.xpose.msra.mxu0 %v1379
    %1385 = vmatprep.subr.bf16.mxu0 0
    %1386 = vmatpush1.bf16.xpose.msra.mxu0 0
    %1387 = vmatprep.subr.bf16.mxu0 0
    %1388 = vmatpush1.bf16.xpose.msra.mxu0 0
    %1389 = vmatprep.subr.bf16.mxu0 0
    %1390 = vmatpush1.bf16.xpose.msra.mxu0 0
    %1391 = vmatprep.subr.bf16.mxu0 0
    %1392 = vmatpush1.bf16.xpose.msra.mxu0 0
    %1393 = vmatprep.subr.bf16.mxu0 0
    %1394 = vmatpush1.bf16.xpose.msra.mxu0 0
    %1395 = vmatprep.subr.bf16.mxu0 0
    %1396 = vmatpush1.bf16.xpose.msra.mxu0 0
    %1397 = vmatprep.subr.bf16.mxu0 0
    %1398 = vmatpush1.bf16.xpose.msra.mxu0 0
    %1399 = vmatprep.subr.bf16.mxu0 0
    %1400 = vmatpush1.bf16.xpose.msra.mxu0 0
    %1401 = vmatprep.subr.bf16.mxu0 0
    %1402 = vmatpush1.bf16.xpose.msra.mxu0 0
    %1403 = vmatprep.subr.bf16.mxu0 0
    %1404 = vmatpush1.bf16.xpose.msra.mxu0 0
    %1405 = vmatprep.subr.bf16.mxu0 0
    %1406 = vmatpush1.bf16.xpose.msra.mxu0 0
    %1407 = vmatprep.subr.bf16.mxu0 0
    %1408 = vmatpush1.bf16.xpose.msra.mxu0 0
    %1409 = vmatprep.subr.bf16.mxu0 0
    %1410 = vmatpush1.bf16.xpose.msra.mxu0 0
    %1411 = vmatprep.subr.bf16.mxu0 0
    %1412 = vmatpush1.bf16.xpose.msra.mxu0 0
    %1413 = vmatprep.mubr.bf16.mxu0 0
    %1414 = vmatmul.mubr.bf16.gmra.mrb[0].mxu0 %v1370
    %v1415 = vpop.f32.mrb[0].mxu0
    %v1416 = vadd.f32 0.0, %v1415
    %v1417 = vpop.f32.mrb[0].mxu0
    %v1418 = vpop.f32.mrb[0].mxu0
    %v1419 = vadd.f32 0.0, %v1418
    %v1420 = vpop.f32.mrb[0].mxu0
    %1421 = vmatprep.mubr.bf16.mxu0 0
    %1422 = vmatmul.mubr.bf16.gmra.mrb[0].mxu0 %v1373
    %v1423 = vpop.f32.mrb[0].mxu0
    %v1424 = vadd.f32 0.0, %v1423
    %v1425 = vpop.f32.mrb[0].mxu0
    %v1426 = vpop.f32.mrb[0].mxu0
    %v1427 = vpop.f32.mrb[0].mxu0
    %1428 = vdwg.mxu0
    %v1429 = vmul.f32 %v1348, 0.25
    %v1430 = vmul.f32 %v1351, 0.25
    %v1431 = vmul.f32 %v1356, 0.25
    %v1432 = vmul.f32 %v1416, 0.25
    %v1433 = vmul.f32 %v1419, 0.25
    %v1434 = vmul.f32 %v1424, 0.25
    %v1435 = vadd.f32 %v1429, %v368
    %v1436 = vadd.f32 %v1430, %v368
    %v1437 = vadd.f32 %v1431, %v368
    %v1438 = vadd.f32 %v1432, %v368
    %v1439 = vadd.f32 %v1433, %v368
    %v1440 = vadd.f32 %v1434, %v368
    %v1441 = vsel %vm761, %v1435, -inf
    %1442 = vmax.xlane.f32.xlu0 %v1441
    %v1443 = vpop.xlane.xlu0 %1442
    %v1444 = vsel %vm761, %v1436, -inf
    %1445 = vmax.xlane.f32.xlu0 %v1444
    %v1446 = vpop.xlane.xlu0 %1445
    %v1447 = vsel %vm761, %v1437, -inf
    %1448 = vmax.xlane.f32.xlu0 %v1447
    %v1449 = vpop.xlane.xlu0 %1448
    %v1450 = vsel %vm761, %v1438, -inf
    %1451 = vmax.xlane.f32.xlu0 %v1450
    %v1452 = vpop.xlane.xlu0 %1451
    %v1453 = vsel %vm761, %v1439, -inf
    %1454 = vmax.xlane.f32.xlu0 %v1453
    %v1455 = vpop.xlane.xlu0 %1454
    %v1456 = vsel %vm761, %v1440, -inf
    %1457 = vmax.xlane.f32.xlu0 %v1456
    %v1458 = vpop.xlane.xlu0 %1457
    %v1459 = vsub.f32 %v1435, %v1443
    %v1460 = vsub.f32 %v1436, %v1446
    %v1461 = vsub.f32 %v1437, %v1449
    %v1462 = vsub.f32 %v1438, %v1452
    %v1463 = vsub.f32 %v1439, %v1455
    %v1464 = vsub.f32 %v1440, %v1458
    %v1465 = vmul.f32 %v1459, 1.442695
    %v1466 = vpow.pop %v1465
    %v1467 = vmul.f32 %v1460, 1.442695
    %v1468 = vpow.pop %v1467
    %v1469 = vmul.f32 %v1461, 1.442695
    %v1470 = vpow.pop %v1469
    %v1471 = vmul.f32 %v1462, 1.442695
    %v1472 = vpow.pop %v1471
    %v1473 = vmul.f32 %v1463, 1.442695
    %v1474 = vpow.pop %v1473
    %v1475 = vmul.f32 %v1464, 1.442695
    %v1476 = vpow.pop %v1475
    %v1477 = vsel %vm761, %v1466, 0.0
    %1478 = vadd.xlane.f32.xlu0 %v1477
    %v1479 = vpop.xlane.xlu0 %1478
    %v1480 = vsel %vm761, %v1468, 0.0
    %1481 = vadd.xlane.f32.xlu0 %v1480
    %v1482 = vpop.xlane.xlu0 %1481
    %v1483 = vsel %vm761, %v1470, 0.0
    %1484 = vadd.xlane.f32.xlu0 %v1483
    %v1485 = vpop.xlane.xlu0 %1484
    %v1486 = vsel %vm761, %v1472, 0.0
    %1487 = vadd.xlane.f32.xlu0 %v1486
    %v1488 = vpop.xlane.xlu0 %1487
    %v1489 = vsel %vm761, %v1474, 0.0
    %1490 = vadd.xlane.f32.xlu0 %v1489
    %v1491 = vpop.xlane.xlu0 %1490
    %v1492 = vsel %vm761, %v1476, 0.0
    %1493 = vadd.xlane.f32.xlu0 %v1492
    %v1494 = vpop.xlane.xlu0 %1493
    %v1495 = vrcp.pop %v1479
    %v1496 = vrcp.pop %v1482
    %v1497 = vrcp.pop %v1485
    %v1498 = vrcp.pop %v1488
    %v1499 = vrcp.pop %v1491
    %v1500 = vrcp.pop %v1494
    %v1501 = vmul.f32 %v1466, %v1495
    %v1502 = vmul.f32 %v1468, %v1496
    %v1503 = vmul.f32 %v1470, %v1497
    %v1504 = vmul.f32 %v1472, %v1498
    %v1505 = vmul.f32 %v1474, %v1499
    %v1506 = vmul.f32 %v1476, %v1500
    %v1507 = vpack.c.bf16 %v1502, %v1501
    %v1508 = vpack.c.bf16 %v1503, %v1503
    %v1509 = vpack.c.bf16 %v1505, %v1504
    %v1510 = vpack.c.bf16 %v1506, %v1506
    %1511 = vrot.lane.b32.xlu0 %v612, 96
    %v1512 = vpop.permute.xlu0 %1511
    %1513 = vrot.lane.b32.xlu0 %v613, 96
    %v1514 = vpop.permute.xlu0 %1513
    %v1517 = vsel %vm761, %v1507, 0
    %v1520 = vsel %vm761, %v1508, 0
    %v1523 = vsel %vm838, %v1514, 0
    %1525 = vmatprep.subr.bf16.mxu0 0
    %1526 = vmatpush1.bf16.msra.mxu0 %v1512
    %1527 = vmatprep.subr.bf16.mxu0 0
    %1528 = vmatpush1.bf16.msra.mxu0 %v1523
    %1529 = vmatprep.subr.bf16.mxu0 0
    %1530 = vmatpush1.bf16.msra.mxu0 0
    %1531 = vmatprep.subr.bf16.mxu0 0
    %1532 = vmatpush1.bf16.msra.mxu0 0
    %1533 = vmatprep.subr.bf16.mxu0 0
    %1534 = vmatpush1.bf16.msra.mxu0 0
    %1535 = vmatprep.subr.bf16.mxu0 0
    %1536 = vmatpush1.bf16.msra.mxu0 0
    %1537 = vmatprep.subr.bf16.mxu0 0
    %1538 = vmatpush1.bf16.msra.mxu0 0
    %1539 = vmatprep.subr.bf16.mxu0 0
    %1540 = vmatpush1.bf16.msra.mxu0 0
    %1541 = vmatprep.subr.bf16.mxu0 0
    %1542 = vmatpush1.bf16.msra.mxu0 0
    %1543 = vmatprep.subr.bf16.mxu0 0
    %1544 = vmatpush1.bf16.msra.mxu0 0
    %1545 = vmatprep.subr.bf16.mxu0 0
    %1546 = vmatpush1.bf16.msra.mxu0 0
    %1547 = vmatprep.subr.bf16.mxu0 0
    %1548 = vmatpush1.bf16.msra.mxu0 0
    %1549 = vmatprep.subr.bf16.mxu0 0
    %1550 = vmatpush1.bf16.msra.mxu0 0
    %1551 = vmatprep.subr.bf16.mxu0 0
    %1552 = vmatpush1.bf16.msra.mxu0 0
    %1553 = vmatprep.subr.bf16.mxu0 0
    %1554 = vmatpush1.bf16.msra.mxu0 0
    %1555 = vmatprep.subr.bf16.mxu0 0
    %1556 = vmatpush1.bf16.msra.mxu0 0
    %1557 = vmatprep.mubr.bf16.mxu0 0
    %1558 = vmatmul.mubr.bf16.gmra.mrb[0].mxu0 %v1517
    %v1559 = vpop.f32.mrb[0].mxu0
    %v1560 = vadd.f32 0.0, %v1559
    %v1561 = vpop.f32.mrb[0].mxu0
    %v1562 = vpop.f32.mrb[0].mxu0
    %v1563 = vadd.f32 0.0, %v1562
    %v1564 = vpop.f32.mrb[0].mxu0
    %1565 = vmatprep.mubr.bf16.mxu0 0
    %1566 = vmatmul.mubr.bf16.gmra.mrb[0].mxu0 %v1520
    %v1567 = vpop.f32.mrb[0].mxu0
    %v1568 = vadd.f32 0.0, %v1567
    %v1569 = vpop.f32.mrb[0].mxu0
    %v1570 = vpop.f32.mrb[0].mxu0
    %v1571 = vpop.f32.mrb[0].mxu0
    %1572 = vdwg.mxu0
    %1573 = vrot.lane.b32.xlu0 %v614, 96
    %v1574 = vpop.permute.xlu0 %1573
    %1575 = vrot.lane.b32.xlu0 %v615, 96
    %v1576 = vpop.permute.xlu0 %1575
    %v1579 = vsel %vm761, %v1509, 0
    %v1582 = vsel %vm761, %v1510, 0
    %v1585 = vsel %vm838, %v1576, 0
    %1587 = vmatprep.subr.bf16.mxu0 0
    %1588 = vmatpush1.bf16.msra.mxu0 %v1574
    %1589 = vmatprep.subr.bf16.mxu0 0
    %1590 = vmatpush1.bf16.msra.mxu0 %v1585
    %1591 = vmatprep.subr.bf16.mxu0 0
    %1592 = vmatpush1.bf16.msra.mxu0 0
    %1593 = vmatprep.subr.bf16.mxu0 0
    %1594 = vmatpush1.bf16.msra.mxu0 0
    %1595 = vmatprep.subr.bf16.mxu0 0
    %1596 = vmatpush1.bf16.msra.mxu0 0
    %1597 = vmatprep.subr.bf16.mxu0 0
    %1598 = vmatpush1.bf16.msra.mxu0 0
    %1599 = vmatprep.subr.bf16.mxu0 0
    %1600 = vmatpush1.bf16.msra.mxu0 0
    %1601 = vmatprep.subr.bf16.mxu0 0
    %1602 = vmatpush1.bf16.msra.mxu0 0
    %1603 = vmatprep.subr.bf16.mxu0 0
    %1604 = vmatpush1.bf16.msra.mxu0 0
    %1605 = vmatprep.subr.bf16.mxu0 0
    %1606 = vmatpush1.bf16.msra.mxu0 0
    %1607 = vmatprep.subr.bf16.mxu0 0
    %1608 = vmatpush1.bf16.msra.mxu0 0
    %1609 = vmatprep.subr.bf16.mxu0 0
    %1610 = vmatpush1.bf16.msra.mxu0 0
    %1611 = vmatprep.subr.bf16.mxu0 0
    %1612 = vmatpush1.bf16.msra.mxu0 0
    %1613 = vmatprep.subr.bf16.mxu0 0
    %1614 = vmatpush1.bf16.msra.mxu0 0
    %1615 = vmatprep.subr.bf16.mxu0 0
    %1616 = vmatpush1.bf16.msra.mxu0 0
    %1617 = vmatprep.subr.bf16.mxu0 0
    %1618 = vmatpush1.bf16.msra.mxu0 0
    %1619 = vmatprep.mubr.bf16.mxu0 0
    %1620 = vmatmul.mubr.bf16.gmra.mrb[0].mxu0 %v1579
    %v1621 = vpop.f32.mrb[0].mxu0
    %v1622 = vadd.f32 0.0, %v1621
    %v1623 = vpop.f32.mrb[0].mxu0
    %v1624 = vpop.f32.mrb[0].mxu0
    %v1625 = vadd.f32 0.0, %v1624
    %v1626 = vpop.f32.mrb[0].mxu0
    %1627 = vmatprep.mubr.bf16.mxu0 0
    %1628 = vmatmul.mubr.bf16.gmra.mrb[0].mxu0 %v1582
    %v1629 = vpop.f32.mrb[0].mxu0
    %v1630 = vadd.f32 0.0, %v1629
    %v1631 = vpop.f32.mrb[0].mxu0
    %v1632 = vpop.f32.mrb[0].mxu0
    %v1633 = vpop.f32.mrb[0].mxu0
    %1634 = vdwg.mxu0
    %1635 = vrot.lane.b32.xlu0 %v608, 80
    %v1636 = vpop.permute.xlu0 %1635
    %1637 = vrot.lane.b32.xlu0 %v609, 80
    %v1638 = vpop.permute.xlu0 %1637
    %1639 = vrot.lane.b32.xlu0 %v608, 16
    %v1640 = vpop.permute.xlu0 %1639
    %1641 = vrot.lane.b32.xlu0 %v609, 16
    %v1642 = vpop.permute.xlu0 %1641
    %v1644 = vsel %vm622, %v1636, 0
    %v1647 = vsel %vm622, %v1638, 0
    %v1650 = vsel %vm622, %v1640, 0
    %v1653 = vsel %vm622, %v1642, 0
    %1655 = vmatprep.subr.bf16.mxu0 0
    %1656 = vmatpush1.bf16.xpose.msra.mxu0 %v1650
    %1657 = vmatprep.subr.bf16.mxu0 0
    %1658 = vmatpush1.bf16.xpose.msra.mxu0 %v1653
    %1659 = vmatprep.subr.bf16.mxu0 0
    %1660 = vmatpush1.bf16.xpose.msra.mxu0 0
    %1661 = vmatprep.subr.bf16.mxu0 0
    %1662 = vmatpush1.bf16.xpose.msra.mxu0 0
    %1663 = vmatprep.subr.bf16.mxu0 0
    %1664 = vmatpush1.bf16.xpose.msra.mxu0 0
    %1665 = vmatprep.subr.bf16.mxu0 0
    %1666 = vmatpush1.bf16.xpose.msra.mxu0 0
    %1667 = vmatprep.subr.bf16.mxu0 0
    %1668 = vmatpush1.bf16.xpose.msra.mxu0 0
    %1669 = vmatprep.subr.bf16.mxu0 0
    %1670 = vmatpush1.bf16.xpose.msra.mxu0 0
    %1671 = vmatprep.subr.bf16.mxu0 0
    %1672 = vmatpush1.bf16.xpose.msra.mxu0 0
    %1673 = vmatprep.subr.bf16.mxu0 0
    %1674 = vmatpush1.bf16.xpose.msra.mxu0 0
    %1675 = vmatprep.subr.bf16.mxu0 0
    %1676 = vmatpush1.bf16.xpose.msra.mxu0 0
    %1677 = vmatprep.subr.bf16.mxu0 0
    %1678 = vmatpush1.bf16.xpose.msra.mxu0 0
    %1679 = vmatprep.subr.bf16.mxu0 0
    %1680 = vmatpush1.bf16.xpose.msra.mxu0 0
    %1681 = vmatprep.subr.bf16.mxu0 0
    %1682 = vmatpush1.bf16.xpose.msra.mxu0 0
    %1683 = vmatprep.subr.bf16.mxu0 0
    %1684 = vmatpush1.bf16.xpose.msra.mxu0 0
    %1685 = vmatprep.subr.bf16.mxu0 0
    %1686 = vmatpush1.bf16.xpose.msra.mxu0 0
    %1687 = vmatprep.mubr.bf16.mxu0 0
    %1688 = vmatmul.mubr.bf16.gmra.mrb[0].mxu0 %v1644
    %v1689 = vpop.f32.mrb[0].mxu0
    %v1690 = vadd.f32 0.0, %v1689
    %v1691 = vpop.f32.mrb[0].mxu0
    %v1692 = vpop.f32.mrb[0].mxu0
    %v1693 = vadd.f32 0.0, %v1692
    %v1694 = vpop.f32.mrb[0].mxu0
    %1695 = vmatprep.mubr.bf16.mxu0 0
    %1696 = vmatmul.mubr.bf16.gmra.mrb[0].mxu0 %v1647
    %v1697 = vpop.f32.mrb[0].mxu0
    %v1698 = vadd.f32 0.0, %v1697
    %v1699 = vpop.f32.mrb[0].mxu0
    %v1700 = vpop.f32.mrb[0].mxu0
    %v1701 = vpop.f32.mrb[0].mxu0
    %1702 = vdwg.mxu0
    %1703 = vrot.lane.b32.xlu0 %v610, 80
    %v1704 = vpop.permute.xlu0 %1703
    %1705 = vrot.lane.b32.xlu0 %v611, 80
    %v1706 = vpop.permute.xlu0 %1705
    %1707 = vrot.lane.b32.xlu0 %v610, 16
    %v1708 = vpop.permute.xlu0 %1707
    %1709 = vrot.lane.b32.xlu0 %v611, 16
    %v1710 = vpop.permute.xlu0 %1709
    %v1712 = vsel %vm622, %v1704, 0
    %v1715 = vsel %vm622, %v1706, 0
    %v1718 = vsel %vm622, %v1708, 0
    %v1721 = vsel %vm622, %v1710, 0
    %1723 = vmatprep.subr.bf16.mxu0 0
    %1724 = vmatpush1.bf16.xpose.msra.mxu0 %v1718
    %1725 = vmatprep.subr.bf16.mxu0 0
    %1726 = vmatpush1.bf16.xpose.msra.mxu0 %v1721
    %1727 = vmatprep.subr.bf16.mxu0 0
    %1728 = vmatpush1.bf16.xpose.msra.mxu0 0
    %1729 = vmatprep.subr.bf16.mxu0 0
    %1730 = vmatpush1.bf16.xpose.msra.mxu0 0
    %1731 = vmatprep.subr.bf16.mxu0 0
    %1732 = vmatpush1.bf16.xpose.msra.mxu0 0
    %1733 = vmatprep.subr.bf16.mxu0 0
    %1734 = vmatpush1.bf16.xpose.msra.mxu0 0
    %1735 = vmatprep.subr.bf16.mxu0 0
    %1736 = vmatpush1.bf16.xpose.msra.mxu0 0
    %1737 = vmatprep.subr.bf16.mxu0 0
    %1738 = vmatpush1.bf16.xpose.msra.mxu0 0
    %1739 = vmatprep.subr.bf16.mxu0 0
    %1740 = vmatpush1.bf16.xpose.msra.mxu0 0
    %1741 = vmatprep.subr.bf16.mxu0 0
    %1742 = vmatpush1.bf16.xpose.msra.mxu0 0
    %1743 = vmatprep.subr.bf16.mxu0 0
    %1744 = vmatpush1.bf16.xpose.msra.mxu0 0
    %1745 = vmatprep.subr.bf16.mxu0 0
    %1746 = vmatpush1.bf16.xpose.msra.mxu0 0
    %1747 = vmatprep.subr.bf16.mxu0 0
    %1748 = vmatpush1.bf16.xpose.msra.mxu0 0
    %1749 = vmatprep.subr.bf16.mxu0 0
    %1750 = vmatpush1.bf16.xpose.msra.mxu0 0
    %1751 = vmatprep.subr.bf16.mxu0 0
    %1752 = vmatpush1.bf16.xpose.msra.mxu0 0
    %1753 = vmatprep.subr.bf16.mxu0 0
    %1754 = vmatpush1.bf16.xpose.msra.mxu0 0
    %1755 = vmatprep.mubr.bf16.mxu0 0
    %1756 = vmatmul.mubr.bf16.gmra.mrb[0].mxu0 %v1712
    %v1757 = vpop.f32.mrb[0].mxu0
    %v1758 = vadd.f32 0.0, %v1757
    %v1759 = vpop.f32.mrb[0].mxu0
    %v1760 = vpop.f32.mrb[0].mxu0
    %v1761 = vadd.f32 0.0, %v1760
    %v1762 = vpop.f32.mrb[0].mxu0
    %1763 = vmatprep.mubr.bf16.mxu0 0
    %1764 = vmatmul.mubr.bf16.gmra.mrb[0].mxu0 %v1715
    %v1765 = vpop.f32.mrb[0].mxu0
    %v1766 = vadd.f32 0.0, %v1765
    %v1767 = vpop.f32.mrb[0].mxu0
    %v1768 = vpop.f32.mrb[0].mxu0
    %v1769 = vpop.f32.mrb[0].mxu0
    %1770 = vdwg.mxu0
    %v1771 = vmul.f32 %v1690, 0.25
    %v1772 = vmul.f32 %v1693, 0.25
    %v1773 = vmul.f32 %v1698, 0.25
    %v1774 = vmul.f32 %v1758, 0.25
    %v1775 = vmul.f32 %v1761, 0.25
    %v1776 = vmul.f32 %v1766, 0.25
    %v1777 = vadd.f32 %v1771, %v368
    %v1778 = vadd.f32 %v1772, %v368
    %v1779 = vadd.f32 %v1773, %v368
    %v1780 = vadd.f32 %v1774, %v368
    %v1781 = vadd.f32 %v1775, %v368
    %v1782 = vadd.f32 %v1776, %v368
    %v1783 = vsel %vm761, %v1777, -inf
    %1784 = vmax.xlane.f32.xlu0 %v1783
    %v1785 = vpop.xlane.xlu0 %1784
    %v1786 = vsel %vm761, %v1778, -inf
    %1787 = vmax.xlane.f32.xlu0 %v1786
    %v1788 = vpop.xlane.xlu0 %1787
    %v1789 = vsel %vm761, %v1779, -inf
    %1790 = vmax.xlane.f32.xlu0 %v1789
    %v1791 = vpop.xlane.xlu0 %1790
    %v1792 = vsel %vm761, %v1780, -inf
    %1793 = vmax.xlane.f32.xlu0 %v1792
    %v1794 = vpop.xlane.xlu0 %1793
    %v1795 = vsel %vm761, %v1781, -inf
    %1796 = vmax.xlane.f32.xlu0 %v1795
    %v1797 = vpop.xlane.xlu0 %1796
    %v1798 = vsel %vm761, %v1782, -inf
    %1799 = vmax.xlane.f32.xlu0 %v1798
    %v1800 = vpop.xlane.xlu0 %1799
    %v1801 = vsub.f32 %v1777, %v1785
    %v1802 = vsub.f32 %v1778, %v1788
    %v1803 = vsub.f32 %v1779, %v1791
    %v1804 = vsub.f32 %v1780, %v1794
    %v1805 = vsub.f32 %v1781, %v1797
    %v1806 = vsub.f32 %v1782, %v1800
    %v1807 = vmul.f32 %v1801, 1.442695
    %v1808 = vpow.pop %v1807
    %v1809 = vmul.f32 %v1802, 1.442695
    %v1810 = vpow.pop %v1809
    %v1811 = vmul.f32 %v1803, 1.442695
    %v1812 = vpow.pop %v1811
    %v1813 = vmul.f32 %v1804, 1.442695
    %v1814 = vpow.pop %v1813
    %v1815 = vmul.f32 %v1805, 1.442695
    %v1816 = vpow.pop %v1815
    %v1817 = vmul.f32 %v1806, 1.442695
    %v1818 = vpow.pop %v1817
    %v1819 = vsel %vm761, %v1808, 0.0
    %1820 = vadd.xlane.f32.xlu0 %v1819
    %v1821 = vpop.xlane.xlu0 %1820
    %v1822 = vsel %vm761, %v1810, 0.0
    %1823 = vadd.xlane.f32.xlu0 %v1822
    %v1824 = vpop.xlane.xlu0 %1823
    %v1825 = vsel %vm761, %v1812, 0.0
    %1826 = vadd.xlane.f32.xlu0 %v1825
    %v1827 = vpop.xlane.xlu0 %1826
    %v1828 = vsel %vm761, %v1814, 0.0
    %1829 = vadd.xlane.f32.xlu0 %v1828
    %v1830 = vpop.xlane.xlu0 %1829
    %v1831 = vsel %vm761, %v1816, 0.0
    %1832 = vadd.xlane.f32.xlu0 %v1831
    %v1833 = vpop.xlane.xlu0 %1832
    %v1834 = vsel %vm761, %v1818, 0.0
    %1835 = vadd.xlane.f32.xlu0 %v1834
    %v1836 = vpop.xlane.xlu0 %1835
    %v1837 = vrcp.pop %v1821
    %v1838 = vrcp.pop %v1824
    %v1839 = vrcp.pop %v1827
    %v1840 = vrcp.pop %v1830
    %v1841 = vrcp.pop %v1833
    %v1842 = vrcp.pop %v1836
    %v1843 = vmul.f32 %v1808, %v1837
    %v1844 = vmul.f32 %v1810, %v1838
    %v1845 = vmul.f32 %v1812, %v1839
    %v1846 = vmul.f32 %v1814, %v1840
    %v1847 = vmul.f32 %v1816, %v1841
    %v1848 = vmul.f32 %v1818, %v1842
    %v1849 = vpack.c.bf16 %v1844, %v1843
    %v1850 = vpack.c.bf16 %v1845, %v1845
    %v1851 = vpack.c.bf16 %v1847, %v1846
    %v1852 = vpack.c.bf16 %v1848, %v1848
    %1853 = vrot.lane.b32.xlu0 %v612, 80
    %v1854 = vpop.permute.xlu0 %1853
    %1855 = vrot.lane.b32.xlu0 %v613, 80
    %v1856 = vpop.permute.xlu0 %1855
    %v1859 = vsel %vm761, %v1849, 0
    %v1862 = vsel %vm761, %v1850, 0
    %v1865 = vsel %vm838, %v1856, 0
    %1867 = vmatprep.subr.bf16.mxu0 0
    %1868 = vmatpush1.bf16.msra.mxu0 %v1854
    %1869 = vmatprep.subr.bf16.mxu0 0
    %1870 = vmatpush1.bf16.msra.mxu0 %v1865
    %1871 = vmatprep.subr.bf16.mxu0 0
    %1872 = vmatpush1.bf16.msra.mxu0 0
    %1873 = vmatprep.subr.bf16.mxu0 0
    %1874 = vmatpush1.bf16.msra.mxu0 0
    %1875 = vmatprep.subr.bf16.mxu0 0
    %1876 = vmatpush1.bf16.msra.mxu0 0
    %1877 = vmatprep.subr.bf16.mxu0 0
    %1878 = vmatpush1.bf16.msra.mxu0 0
    %1879 = vmatprep.subr.bf16.mxu0 0
    %1880 = vmatpush1.bf16.msra.mxu0 0
    %1881 = vmatprep.subr.bf16.mxu0 0
    %1882 = vmatpush1.bf16.msra.mxu0 0
    %1883 = vmatprep.subr.bf16.mxu0 0
    %1884 = vmatpush1.bf16.msra.mxu0 0
    %1885 = vmatprep.subr.bf16.mxu0 0
    %1886 = vmatpush1.bf16.msra.mxu0 0
    %1887 = vmatprep.subr.bf16.mxu0 0
    %1888 = vmatpush1.bf16.msra.mxu0 0
    %1889 = vmatprep.subr.bf16.mxu0 0
    %1890 = vmatpush1.bf16.msra.mxu0 0
    %1891 = vmatprep.subr.bf16.mxu0 0
    %1892 = vmatpush1.bf16.msra.mxu0 0
    %1893 = vmatprep.subr.bf16.mxu0 0
    %1894 = vmatpush1.bf16.msra.mxu0 0
    %1895 = vmatprep.subr.bf16.mxu0 0
    %1896 = vmatpush1.bf16.msra.mxu0 0
    %1897 = vmatprep.subr.bf16.mxu0 0
    %1898 = vmatpush1.bf16.msra.mxu0 0
    %1899 = vmatprep.mubr.bf16.mxu0 0
    %1900 = vmatmul.mubr.bf16.gmra.mrb[0].mxu0 %v1859
    %v1901 = vpop.f32.mrb[0].mxu0
    %v1902 = vadd.f32 0.0, %v1901
    %v1903 = vpop.f32.mrb[0].mxu0
    %v1904 = vpop.f32.mrb[0].mxu0
    %v1905 = vadd.f32 0.0, %v1904
    %v1906 = vpop.f32.mrb[0].mxu0
    %1907 = vmatprep.mubr.bf16.mxu0 0
    %1908 = vmatmul.mubr.bf16.gmra.mrb[0].mxu0 %v1862
    %v1909 = vpop.f32.mrb[0].mxu0
    %v1910 = vadd.f32 0.0, %v1909
    %v1911 = vpop.f32.mrb[0].mxu0
    %v1912 = vpop.f32.mrb[0].mxu0
    %v1913 = vpop.f32.mrb[0].mxu0
    %1914 = vdwg.mxu0
    %1915 = vrot.lane.b32.xlu0 %v614, 80
    %v1916 = vpop.permute.xlu0 %1915
    %1917 = vrot.lane.b32.xlu0 %v615, 80
    %v1918 = vpop.permute.xlu0 %1917
    %v1921 = vsel %vm761, %v1851, 0
    %v1924 = vsel %vm761, %v1852, 0
    %v1927 = vsel %vm838, %v1918, 0
    %1929 = vmatprep.subr.bf16.mxu0 0
    %1930 = vmatpush1.bf16.msra.mxu0 %v1916
    %1931 = vmatprep.subr.bf16.mxu0 0
    %1932 = vmatpush1.bf16.msra.mxu0 %v1927
    %1933 = vmatprep.subr.bf16.mxu0 0
    %1934 = vmatpush1.bf16.msra.mxu0 0
    %1935 = vmatprep.subr.bf16.mxu0 0
    %1936 = vmatpush1.bf16.msra.mxu0 0
    %1937 = vmatprep.subr.bf16.mxu0 0
    %1938 = vmatpush1.bf16.msra.mxu0 0
    %1939 = vmatprep.subr.bf16.mxu0 0
    %1940 = vmatpush1.bf16.msra.mxu0 0
    %1941 = vmatprep.subr.bf16.mxu0 0
    %1942 = vmatpush1.bf16.msra.mxu0 0
    %1943 = vmatprep.subr.bf16.mxu0 0
    %1944 = vmatpush1.bf16.msra.mxu0 0
    %1945 = vmatprep.subr.bf16.mxu0 0
    %1946 = vmatpush1.bf16.msra.mxu0 0
    %1947 = vmatprep.subr.bf16.mxu0 0
    %1948 = vmatpush1.bf16.msra.mxu0 0
    %1949 = vmatprep.subr.bf16.mxu0 0
    %1950 = vmatpush1.bf16.msra.mxu0 0
    %1951 = vmatprep.subr.bf16.mxu0 0
    %1952 = vmatpush1.bf16.msra.mxu0 0
    %1953 = vmatprep.subr.bf16.mxu0 0
    %1954 = vmatpush1.bf16.msra.mxu0 0
    %1955 = vmatprep.subr.bf16.mxu0 0
    %1956 = vmatpush1.bf16.msra.mxu0 0
    %1957 = vmatprep.subr.bf16.mxu0 0
    %1958 = vmatpush1.bf16.msra.mxu0 0
    %1959 = vmatprep.subr.bf16.mxu0 0
    %1960 = vmatpush1.bf16.msra.mxu0 0
    %1961 = vmatprep.mubr.bf16.mxu0 0
    %1962 = vmatmul.mubr.bf16.gmra.mrb[0].mxu0 %v1921
    %v1963 = vpop.f32.mrb[0].mxu0
    %v1964 = vadd.f32 0.0, %v1963
    %v1965 = vpop.f32.mrb[0].mxu0
    %v1966 = vpop.f32.mrb[0].mxu0
    %v1967 = vadd.f32 0.0, %v1966
    %v1968 = vpop.f32.mrb[0].mxu0
    %1969 = vmatprep.mubr.bf16.mxu0 0
    %1970 = vmatmul.mubr.bf16.gmra.mrb[0].mxu0 %v1924
    %v1971 = vpop.f32.mrb[0].mxu0
    %v1972 = vadd.f32 0.0, %v1971
    %v1973 = vpop.f32.mrb[0].mxu0
    %v1974 = vpop.f32.mrb[0].mxu0
    %v1975 = vpop.f32.mrb[0].mxu0
    %1976 = vdwg.mxu0
    %1983 = vrot.lane.b32.xlu0 %v1216, 16
    %v1984 = vpop.permute.xlu0 %1983
    %1985 = vrot.lane.b32.xlu0 %v1219, 16
    %v1986 = vpop.permute.xlu0 %1985
    %1987 = vrot.lane.b32.xlu0 %v1224, 16
    %v1988 = vpop.permute.xlu0 %1987
    %1989 = vrot.lane.b32.xlu0 %v1280, 16
    %v1990 = vpop.permute.xlu0 %1989
    %1991 = vrot.lane.b32.xlu0 %v1283, 16
    %v1992 = vpop.permute.xlu0 %1991
    %1993 = vrot.lane.b32.xlu0 %v1288, 16
    %v1994 = vpop.permute.xlu0 %1993
    %2007 = vrot.lane.b32.xlu0 %v1560, 32
    %v2008 = vpop.permute.xlu0 %2007
    %2009 = vrot.lane.b32.xlu0 %v1563, 32
    %v2010 = vpop.permute.xlu0 %2009
    %2011 = vrot.lane.b32.xlu0 %v1568, 32
    %v2012 = vpop.permute.xlu0 %2011
    %2013 = vrot.lane.b32.xlu0 %v1622, 32
    %v2014 = vpop.permute.xlu0 %2013
    %2015 = vrot.lane.b32.xlu0 %v1625, 32
    %v2016 = vpop.permute.xlu0 %2015
    %2017 = vrot.lane.b32.xlu0 %v1630, 32
    %v2018 = vpop.permute.xlu0 %2017
    %2031 = vrot.lane.b32.xlu0 %v1902, 48
    %v2032 = vpop.permute.xlu0 %2031
    %2033 = vrot.lane.b32.xlu0 %v1905, 48
    %v2034 = vpop.permute.xlu0 %2033
    %2035 = vrot.lane.b32.xlu0 %v1910, 48
    %v2036 = vpop.permute.xlu0 %2035
    %2037 = vrot.lane.b32.xlu0 %v1964, 48
    %v2038 = vpop.permute.xlu0 %2037
    %2039 = vrot.lane.b32.xlu0 %v1967, 48
    %v2040 = vpop.permute.xlu0 %2039
    %2041 = vrot.lane.b32.xlu0 %v1972, 48
    %v2042 = vpop.permute.xlu0 %2041
    %v2049 = vsel %vm622, %v877, %v1984
    %v2050 = vsel %vm622, %v880, %v1986
    %v2051 = vsel %vm622, %v885, %v1988
    %v2052 = vsel %vm622, %v934, %v1990
    %v2053 = vsel %vm622, %v937, %v1992
    %v2054 = vsel %vm622, %v942, %v1994
    %vm2055 = vcmask 261120
    %v2056 = vsel %vm2055, %v2049, %v2008
    %v2057 = vsel %vm2055, %v2050, %v2010
    %v2058 = vsel %vm2055, %v2051, %v2012
    %v2059 = vsel %vm2055, %v2052, %v2014
    %v2060 = vsel %vm2055, %v2053, %v2016
    %v2061 = vsel %vm2055, %v2054, %v2018
    %vm2062 = vcmask 392192
    %v2063 = vsel %vm2062, %v2056, %v2032
    %v2064 = vsel %vm2062, %v2057, %v2034
    %v2065 = vsel %vm2062, %v2058, %v2036
    %v2066 = vsel %vm2062, %v2059, %v2038
    %v2067 = vsel %vm2062, %v2060, %v2040
    %v2068 = vsel %vm2062, %v2061, %v2042
    %v2069 = vld [vmem:[%s9] sm:$0xf]
    %v2070 = vld [vmem:[%s9 + $0x4] sm:$0xf]
    %v2071 = vld [vmem:[%s9 + $0x8] sm:$0xf]
    %v2072 = vld [vmem:[%s9 + $0xc] sm:$0xf]
    %v2073 = vld [vmem:[%s9 + $0x10] sm:$0xf]
    %v2074 = vld [vmem:[%s9 + $0x14] sm:$0xf]
    %v2075 = vld [vmem:[%s9 + $0x18] sm:$0xf]
    %v2076 = vld [vmem:[%s9 + $0x1c] sm:$0xf]
    %v2077 = vpack.c.bf16 %v2064, %v2063
    %v2078 = vpack.c.bf16 %v2066, %v2065
    %v2079 = vpack.c.bf16 %v2068, %v2067
    %v2088 = vunpack.c.l.b16 %v2069
    %v2089 = vunpack.c.l.b16 %v2070
    %v2090 = vunpack.c.l.b16 %v2071
    %v2091 = vunpack.c.l.b16 %v2072
    %v2092 = vunpack.c.l.b16 %v2073
    %v2093 = vunpack.c.l.b16 %v2074
    %v2094 = vunpack.c.l.b16 %v2075
    %v2095 = vunpack.c.l.b16 %v2076
    %v2096 = vpack.c.b16 %v2089, %v2088
    %v2097 = vpack.c.b16 %v2091, %v2090
    %v2098 = vpack.c.b16 %v2093, %v2092
    %v2099 = vpack.c.b16 %v2095, %v2094
    %v2105 = vsel %vm178, %v2077, 0
    %v2108 = vsel %vm178, %v2078, 0
    %v2111 = vsel %vm178, %v2079, 0
    %2113 = vmatprep.subr.bf16.mxu0 0
    %2114 = vmatpush1.bf16.msra.mxu0 %v2096
    %2115 = vmatprep.subr.bf16.mxu0 0
    %2116 = vmatpush1.bf16.msra.mxu0 %v2097
    %2117 = vmatprep.subr.bf16.mxu0 0
    %2118 = vmatpush1.bf16.msra.mxu0 %v2098
    %2119 = vmatprep.subr.bf16.mxu0 0
    %2120 = vmatpush1.bf16.msra.mxu0 %v2099
    %2121 = vmatprep.subr.bf16.mxu0 0
    %2122 = vmatpush1.bf16.msra.mxu0 0
    %2123 = vmatprep.subr.bf16.mxu0 0
    %2124 = vmatpush1.bf16.msra.mxu0 0
    %2125 = vmatprep.subr.bf16.mxu0 0
    %2126 = vmatpush1.bf16.msra.mxu0 0
    %2127 = vmatprep.subr.bf16.mxu0 0
    %2128 = vmatpush1.bf16.msra.mxu0 0
    %2129 = vmatprep.subr.bf16.mxu0 0
    %2130 = vmatpush1.bf16.msra.mxu0 0
    %2131 = vmatprep.subr.bf16.mxu0 0
    %2132 = vmatpush1.bf16.msra.mxu0 0
    %2133 = vmatprep.subr.bf16.mxu0 0
    %2134 = vmatpush1.bf16.msra.mxu0 0
    %2135 = vmatprep.subr.bf16.mxu0 0
    %2136 = vmatpush1.bf16.msra.mxu0 0
    %2137 = vmatprep.subr.bf16.mxu0 0
    %2138 = vmatpush1.bf16.msra.mxu0 0
    %2139 = vmatprep.subr.bf16.mxu0 0
    %2140 = vmatpush1.bf16.msra.mxu0 0
    %2141 = vmatprep.subr.bf16.mxu0 0
    %2142 = vmatpush1.bf16.msra.mxu0 0
    %2143 = vmatprep.subr.bf16.mxu0 0
    %2144 = vmatpush1.bf16.msra.mxu0 0
    %2145 = vmatprep.mubr.bf16.mxu0 0
    %2146 = vmatmul.mubr.bf16.gmra.mrb[0].mxu0 %v2105
    %v2147 = vpop.f32.mrb[0].mxu0
    %v2148 = vadd.f32 0.0, %v2147
    %v2149 = vpop.f32.mrb[0].mxu0
    %v2150 = vpop.f32.mrb[0].mxu0
    %v2151 = vadd.f32 0.0, %v2150
    %v2152 = vpop.f32.mrb[0].mxu0
    %2153 = vmatprep.mubr.bf16.mxu0 0
    %2154 = vmatmul.mubr.bf16.gmra.mrb[0].mxu0 %v2108
    %v2155 = vpop.f32.mrb[0].mxu0
    %v2156 = vadd.f32 0.0, %v2155
    %v2157 = vpop.f32.mrb[0].mxu0
    %v2158 = vpop.f32.mrb[0].mxu0
    %v2159 = vadd.f32 0.0, %v2158
    %v2160 = vpop.f32.mrb[0].mxu0
    %2161 = vmatprep.mubr.bf16.mxu0 0
    %2162 = vmatmul.mubr.bf16.gmra.mrb[0].mxu0 %v2111
    %v2163 = vpop.f32.mrb[0].mxu0
    %v2164 = vadd.f32 0.0, %v2163
    %v2165 = vpop.f32.mrb[0].mxu0
    %v2166 = vpop.f32.mrb[0].mxu0
    %v2167 = vadd.f32 0.0, %v2166
    %v2168 = vpop.f32.mrb[0].mxu0
    %2169 = vdwg.mxu0
    %v2170 = vadd.f32 %v359, %v2148
    %v2171 = vadd.f32 %v360, %v2151
    %v2172 = vadd.f32 %v361, %v2156
    %v2173 = vadd.f32 %v362, %v2159
    %v2174 = vadd.f32 %v363, %v2164
    %v2175 = vadd.f32 %v364, %v2167
    %v2176 = vld [vmem:[%s10] sm:$0x1]
    %v2178 = vlaneseq
    %v2179 = vshrl.u32 %v2178, 7
    %v2180 = vsub.s32 0, %v2179
    %v2181 = vrot.slane %v2176, %v2180
    %v2183 = vadd.f32 %v2170, %v2181
    %v2184 = vadd.f32 %v2171, %v2181
    %v2185 = vadd.f32 %v2172, %v2181
    %v2186 = vadd.f32 %v2173, %v2181
    %v2187 = vadd.f32 %v2174, %v2181
    %v2188 = vadd.f32 %v2175, %v2181
    %v2189 = vld [vmem:[%s11] sm:$0x1]
    %v2190 = vld [vmem:[%s12] sm:$0x1]
    %v2191 = vsel %vm178, %v2183, 0.0
    %2192 = vadd.xlane.f32.xlu0 %v2191
    %v2193 = vpop.xlane.xlu0 %2192
    %v2194 = vsel %vm178, %v2184, 0.0
    %2195 = vadd.xlane.f32.xlu0 %v2194
    %v2196 = vpop.xlane.xlu0 %2195
    %v2197 = vsel %vm178, %v2185, 0.0
    %2198 = vadd.xlane.f32.xlu0 %v2197
    %v2199 = vpop.xlane.xlu0 %2198
    %v2200 = vsel %vm178, %v2186, 0.0
    %2201 = vadd.xlane.f32.xlu0 %v2200
    %v2202 = vpop.xlane.xlu0 %2201
    %v2203 = vsel %vm178, %v2187, 0.0
    %2204 = vadd.xlane.f32.xlu0 %v2203
    %v2205 = vpop.xlane.xlu0 %2204
    %v2206 = vsel %vm178, %v2188, 0.0
    %2207 = vadd.xlane.f32.xlu0 %v2206
    %v2208 = vpop.xlane.xlu0 %2207
    %v2209 = vmul.f32 %v2193, %v280
    %v2210 = vmul.f32 %v2196, %v280
    %v2211 = vmul.f32 %v2199, %v280
    %v2212 = vmul.f32 %v2202, %v280
    %v2213 = vmul.f32 %v2205, %v280
    %v2214 = vmul.f32 %v2208, %v280
    %v2215 = vsub.f32 %v2183, %v2209
    %v2216 = vsub.f32 %v2184, %v2210
    %v2217 = vsub.f32 %v2185, %v2211
    %v2218 = vsub.f32 %v2186, %v2212
    %v2219 = vsub.f32 %v2187, %v2213
    %v2220 = vsub.f32 %v2188, %v2214
    %v2221 = vmul.f32 %v2215, %v2215
    %v2222 = vmul.f32 %v2216, %v2216
    %v2223 = vmul.f32 %v2217, %v2217
    %v2224 = vmul.f32 %v2218, %v2218
    %v2225 = vmul.f32 %v2219, %v2219
    %v2226 = vmul.f32 %v2220, %v2220
    %v2227 = vsel %vm178, %v2221, 0.0
    %2228 = vadd.xlane.f32.xlu0 %v2227
    %v2229 = vpop.xlane.xlu0 %2228
    %v2230 = vsel %vm178, %v2222, 0.0
    %2231 = vadd.xlane.f32.xlu0 %v2230
    %v2232 = vpop.xlane.xlu0 %2231
    %v2233 = vsel %vm178, %v2223, 0.0
    %2234 = vadd.xlane.f32.xlu0 %v2233
    %v2235 = vpop.xlane.xlu0 %2234
    %v2236 = vsel %vm178, %v2224, 0.0
    %2237 = vadd.xlane.f32.xlu0 %v2236
    %v2238 = vpop.xlane.xlu0 %2237
    %v2239 = vsel %vm178, %v2225, 0.0
    %2240 = vadd.xlane.f32.xlu0 %v2239
    %v2241 = vpop.xlane.xlu0 %2240
    %v2242 = vsel %vm178, %v2226, 0.0
    %2243 = vadd.xlane.f32.xlu0 %v2242
    %v2244 = vpop.xlane.xlu0 %2243
    %v2245 = vmul.f32 %v2229, %v280
    %v2246 = vmul.f32 %v2232, %v280
    %v2247 = vmul.f32 %v2235, %v280
    %v2248 = vmul.f32 %v2238, %v280
    %v2249 = vmul.f32 %v2241, %v280
    %v2250 = vmul.f32 %v2244, %v280
    %v2251 = vadd.f32 %v2245, 1e-05
    %v2252 = vadd.f32 %v2246, 1e-05
    %v2253 = vadd.f32 %v2247, 1e-05
    %v2254 = vadd.f32 %v2248, 1e-05
    %v2255 = vadd.f32 %v2249, 1e-05
    %v2256 = vadd.f32 %v2250, 1e-05
    %v2257 = vrsqrt.pop %v2251
    %v2258 = vrsqrt.pop %v2252
    %v2259 = vrsqrt.pop %v2253
    %v2260 = vrsqrt.pop %v2254
    %v2261 = vrsqrt.pop %v2255
    %v2262 = vrsqrt.pop %v2256
    %v2263 = vmul.f32 %v2215, %v2257
    %v2264 = vmul.f32 %v2216, %v2258
    %v2265 = vmul.f32 %v2217, %v2259
    %v2266 = vmul.f32 %v2218, %v2260
    %v2267 = vmul.f32 %v2219, %v2261
    %v2268 = vmul.f32 %v2220, %v2262
    %v2270 = vlaneseq
    %v2271 = vshrl.u32 %v2270, 7
    %v2272 = vsub.s32 0, %v2271
    %v2273 = vrot.slane %v2189, %v2272
    %v2275 = vmul.f32 %v2263, %v2273
    %v2276 = vmul.f32 %v2264, %v2273
    %v2277 = vmul.f32 %v2265, %v2273
    %v2278 = vmul.f32 %v2266, %v2273
    %v2279 = vmul.f32 %v2267, %v2273
    %v2280 = vmul.f32 %v2268, %v2273
    %v2282 = vlaneseq
    %v2283 = vshrl.u32 %v2282, 7
    %v2284 = vsub.s32 0, %v2283
    %v2285 = vrot.slane %v2190, %v2284
    %v2287 = vadd.f32 %v2275, %v2285
    %v2288 = vadd.f32 %v2276, %v2285
    %v2289 = vadd.f32 %v2277, %v2285
    %v2290 = vadd.f32 %v2278, %v2285
    %v2291 = vadd.f32 %v2279, %v2285
    %v2292 = vadd.f32 %v2280, %v2285
    %v2293 = vld [vmem:[%s13] sm:$0xf]
    %v2294 = vld [vmem:[%s13 + $0x4] sm:$0xf]
    %v2295 = vld [vmem:[%s13 + $0x8] sm:$0xf]
    %v2296 = vld [vmem:[%s13 + $0xc] sm:$0xf]
    %v2297 = vld [vmem:[%s13 + $0x10] sm:$0xf]
    %v2298 = vld [vmem:[%s13 + $0x14] sm:$0xf]
    %v2299 = vld [vmem:[%s13 + $0x18] sm:$0xf]
    %v2300 = vld [vmem:[%s13 + $0x1c] sm:$0xf]
    %v2301 = vpack.c.bf16 %v2288, %v2287
    %v2302 = vpack.c.bf16 %v2290, %v2289
    %v2303 = vpack.c.bf16 %v2292, %v2291
    %v2304 = vld [vmem:[%s14] sm:$0x1]
    %v2306 = vlaneseq
    %v2307 = vshrl.u32 %v2306, 7
    %v2308 = vsub.s32 0, %v2307
    %v2309 = vrot.slane %v2304, %v2308
    %v2319 = vunpack.c.l.b16 %v2293
    %v2320 = vunpack.c.l.b16 %v2294
    %v2321 = vunpack.c.l.b16 %v2295
    %v2322 = vunpack.c.l.b16 %v2296
    %v2323 = vunpack.c.l.b16 %v2297
    %v2324 = vunpack.c.l.b16 %v2298
    %v2325 = vunpack.c.l.b16 %v2299
    %v2326 = vunpack.c.l.b16 %v2300
    %v2327 = vpack.c.b16 %v2320, %v2319
    %v2328 = vpack.c.b16 %v2322, %v2321
    %v2329 = vpack.c.b16 %v2324, %v2323
    %v2330 = vpack.c.b16 %v2326, %v2325
    %v2336 = vsel %vm178, %v2301, 0
    %v2339 = vsel %vm178, %v2302, 0
    %v2342 = vsel %vm178, %v2303, 0
    %2344 = vmatprep.subr.bf16.mxu0 0
    %2345 = vmatpush1.bf16.msra.mxu0 %v2327
    %2346 = vmatprep.subr.bf16.mxu0 0
    %2347 = vmatpush1.bf16.msra.mxu0 %v2328
    %2348 = vmatprep.subr.bf16.mxu0 0
    %2349 = vmatpush1.bf16.msra.mxu0 %v2329
    %2350 = vmatprep.subr.bf16.mxu0 0
    %2351 = vmatpush1.bf16.msra.mxu0 %v2330
    %2352 = vmatprep.subr.bf16.mxu0 0
    %2353 = vmatpush1.bf16.msra.mxu0 0
    %2354 = vmatprep.subr.bf16.mxu0 0
    %2355 = vmatpush1.bf16.msra.mxu0 0
    %2356 = vmatprep.subr.bf16.mxu0 0
    %2357 = vmatpush1.bf16.msra.mxu0 0
    %2358 = vmatprep.subr.bf16.mxu0 0
    %2359 = vmatpush1.bf16.msra.mxu0 0
    %2360 = vmatprep.subr.bf16.mxu0 0
    %2361 = vmatpush1.bf16.msra.mxu0 0
    %2362 = vmatprep.subr.bf16.mxu0 0
    %2363 = vmatpush1.bf16.msra.mxu0 0
    %2364 = vmatprep.subr.bf16.mxu0 0
    %2365 = vmatpush1.bf16.msra.mxu0 0
    %2366 = vmatprep.subr.bf16.mxu0 0
    %2367 = vmatpush1.bf16.msra.mxu0 0
    %2368 = vmatprep.subr.bf16.mxu0 0
    %2369 = vmatpush1.bf16.msra.mxu0 0
    %2370 = vmatprep.subr.bf16.mxu0 0
    %2371 = vmatpush1.bf16.msra.mxu0 0
    %2372 = vmatprep.subr.bf16.mxu0 0
    %2373 = vmatpush1.bf16.msra.mxu0 0
    %2374 = vmatprep.subr.bf16.mxu0 0
    %2375 = vmatpush1.bf16.msra.mxu0 0
    %2376 = vmatprep.mubr.bf16.mxu0 0
    %2377 = vmatmul.mubr.bf16.gmra.mrb[0].mxu0 %v2336
    %v2378 = vpop.f32.mrb[0].mxu0
    %v2379 = vadd.f32 %v2309, %v2378
    %v2380 = vpop.f32.mrb[0].mxu0
    %v2381 = vpop.f32.mrb[0].mxu0
    %v2382 = vadd.f32 %v2309, %v2381
    %v2383 = vpop.f32.mrb[0].mxu0
    %2384 = vmatprep.mubr.bf16.mxu0 0
    %2385 = vmatmul.mubr.bf16.gmra.mrb[0].mxu0 %v2339
    %v2386 = vpop.f32.mrb[0].mxu0
    %v2387 = vadd.f32 %v2309, %v2386
    %v2388 = vpop.f32.mrb[0].mxu0
    %v2389 = vpop.f32.mrb[0].mxu0
    %v2390 = vadd.f32 %v2309, %v2389
    %v2391 = vpop.f32.mrb[0].mxu0
    %2392 = vmatprep.mubr.bf16.mxu0 0
    %2393 = vmatmul.mubr.bf16.gmra.mrb[0].mxu0 %v2342
    %v2394 = vpop.f32.mrb[0].mxu0
    %v2395 = vadd.f32 %v2309, %v2394
    %v2396 = vpop.f32.mrb[0].mxu0
    %v2397 = vpop.f32.mrb[0].mxu0
    %v2398 = vadd.f32 %v2309, %v2397
    %v2399 = vpop.f32.mrb[0].mxu0
    %2400 = vdwg.mxu0
    %v2401 = vmul.f32 %v2379, 1.702
    %v2402 = vmul.f32 %v2382, 1.702
    %v2403 = vmul.f32 %v2387, 1.702
    %v2404 = vmul.f32 %v2390, 1.702
    %v2405 = vmul.f32 %v2395, 1.702
    %v2406 = vmul.f32 %v2398, 1.702
    %v2407 = vxor.u32 %v2401, 2147483648
    %v2408 = vxor.u32 %v2402, 2147483648
    %v2409 = vxor.u32 %v2403, 2147483648
    %v2410 = vxor.u32 %v2404, 2147483648
    %v2411 = vxor.u32 %v2405, 2147483648
    %v2412 = vxor.u32 %v2406, 2147483648
    %v2413 = vmul.f32 %v2407, 1.442695
    %v2414 = vpow.pop %v2413
    %v2415 = vmul.f32 %v2408, 1.442695
    %v2416 = vpow.pop %v2415
    %v2417 = vmul.f32 %v2409, 1.442695
    %v2418 = vpow.pop %v2417
    %v2419 = vmul.f32 %v2410, 1.442695
    %v2420 = vpow.pop %v2419
    %v2421 = vmul.f32 %v2411, 1.442695
    %v2422 = vpow.pop %v2421
    %v2423 = vmul.f32 %v2412, 1.442695
    %v2424 = vpow.pop %v2423
    %v2425 = vadd.f32 %v2414, 1.0
    %v2426 = vadd.f32 %v2416, 1.0
    %v2427 = vadd.f32 %v2418, 1.0
    %v2428 = vadd.f32 %v2420, 1.0
    %v2429 = vadd.f32 %v2422, 1.0
    %v2430 = vadd.f32 %v2424, 1.0
    %v2431 = vrcp.pop %v2425
    %v2432 = vmul.f32 1.0, %v2431
    %v2433 = vrcp.pop %v2426
    %v2434 = vmul.f32 1.0, %v2433
    %v2435 = vrcp.pop %v2427
    %v2436 = vmul.f32 1.0, %v2435
    %v2437 = vrcp.pop %v2428
    %v2438 = vmul.f32 1.0, %v2437
    %v2439 = vrcp.pop %v2429
    %v2440 = vmul.f32 1.0, %v2439
    %v2441 = vrcp.pop %v2430
    %v2442 = vmul.f32 1.0, %v2441
    %v2443 = vmul.f32 %v2379, %v2432
    %v2444 = vmul.f32 %v2382, %v2434
    %v2445 = vmul.f32 %v2387, %v2436
    %v2446 = vmul.f32 %v2390, %v2438
    %v2447 = vmul.f32 %v2395, %v2440
    %v2448 = vmul.f32 %v2398, %v2442
    %v2449 = vld [vmem:[%s15] sm:$0xf]
    %v2450 = vld [vmem:[%s15 + $0x4] sm:$0xf]
    %v2451 = vld [vmem:[%s15 + $0x8] sm:$0xf]
    %v2452 = vld [vmem:[%s15 + $0xc] sm:$0xf]
    %v2453 = vld [vmem:[%s15 + $0x10] sm:$0xf]
    %v2454 = vld [vmem:[%s15 + $0x14] sm:$0xf]
    %v2455 = vld [vmem:[%s15 + $0x18] sm:$0xf]
    %v2456 = vld [vmem:[%s15 + $0x1c] sm:$0xf]
    %v2457 = vld [vmem:[%s15 + $0x20] sm:$0xf]
    %v2458 = vld [vmem:[%s15 + $0x24] sm:$0xf]
    %v2459 = vld [vmem:[%s15 + $0x28] sm:$0xf]
    %v2460 = vld [vmem:[%s15 + $0x2c] sm:$0xf]
    %v2461 = vld [vmem:[%s15 + $0x30] sm:$0xf]
    %v2462 = vld [vmem:[%s15 + $0x34] sm:$0xf]
    %v2463 = vld [vmem:[%s15 + $0x38] sm:$0xf]
    %v2464 = vld [vmem:[%s15 + $0x3c] sm:$0xf]
    %v2465 = vpack.c.bf16 %v2444, %v2443
    %v2466 = vpack.c.bf16 %v2446, %v2445
    %v2467 = vpack.c.bf16 %v2448, %v2447
    %v2484 = vunpack.c.l.b16 %v2449
    %v2485 = vunpack.c.l.b16 %v2450
    %v2486 = vunpack.c.l.b16 %v2451
    %v2487 = vunpack.c.l.b16 %v2452
    %v2488 = vunpack.c.l.b16 %v2453
    %v2489 = vunpack.c.l.b16 %v2454
    %v2490 = vunpack.c.l.b16 %v2455
    %v2491 = vunpack.c.l.b16 %v2456
    %v2492 = vunpack.c.l.b16 %v2457
    %v2493 = vunpack.c.l.b16 %v2458
    %v2494 = vunpack.c.l.b16 %v2459
    %v2495 = vunpack.c.l.b16 %v2460
    %v2496 = vunpack.c.l.b16 %v2461
    %v2497 = vunpack.c.l.b16 %v2462
    %v2498 = vunpack.c.l.b16 %v2463
    %v2499 = vunpack.c.l.b16 %v2464
    %v2500 = vpack.c.b16 %v2485, %v2484
    %v2501 = vpack.c.b16 %v2487, %v2486
    %v2502 = vpack.c.b16 %v2489, %v2488
    %v2503 = vpack.c.b16 %v2491, %v2490
    %v2504 = vpack.c.b16 %v2493, %v2492
    %v2505 = vpack.c.b16 %v2495, %v2494
    %v2506 = vpack.c.b16 %v2497, %v2496
    %v2507 = vpack.c.b16 %v2499, %v2498
    %2516 = vmatprep.subr.bf16.mxu0 0
    %2517 = vmatpush1.bf16.msra.mxu0 %v2500
    %2518 = vmatprep.subr.bf16.mxu0 0
    %2519 = vmatpush1.bf16.msra.mxu0 %v2501
    %2520 = vmatprep.subr.bf16.mxu0 0
    %2521 = vmatpush1.bf16.msra.mxu0 %v2502
    %2522 = vmatprep.subr.bf16.mxu0 0
    %2523 = vmatpush1.bf16.msra.mxu0 %v2503
    %2524 = vmatprep.subr.bf16.mxu0 0
    %2525 = vmatpush1.bf16.msra.mxu0 %v2504
    %2526 = vmatprep.subr.bf16.mxu0 0
    %2527 = vmatpush1.bf16.msra.mxu0 %v2505
    %2528 = vmatprep.subr.bf16.mxu0 0
    %2529 = vmatpush1.bf16.msra.mxu0 %v2506
    %2530 = vmatprep.subr.bf16.mxu0 0
    %2531 = vmatpush1.bf16.msra.mxu0 %v2507
    %2532 = vmatprep.subr.bf16.mxu0 0
    %2533 = vmatpush1.bf16.msra.mxu0 0
    %2534 = vmatprep.subr.bf16.mxu0 0
    %2535 = vmatpush1.bf16.msra.mxu0 0
    %2536 = vmatprep.subr.bf16.mxu0 0
    %2537 = vmatpush1.bf16.msra.mxu0 0
    %2538 = vmatprep.subr.bf16.mxu0 0
    %2539 = vmatpush1.bf16.msra.mxu0 0
    %2540 = vmatprep.subr.bf16.mxu0 0
    %2541 = vmatpush1.bf16.msra.mxu0 0
    %2542 = vmatprep.subr.bf16.mxu0 0
    %2543 = vmatpush1.bf16.msra.mxu0 0
    %2544 = vmatprep.subr.bf16.mxu0 0
    %2545 = vmatpush1.bf16.msra.mxu0 0
    %2546 = vmatprep.subr.bf16.mxu0 0
    %2547 = vmatpush1.bf16.msra.mxu0 0
    %2548 = vmatprep.mubr.bf16.mxu0 0
    %2549 = vmatmul.mubr.bf16.gmra.mrb[0].mxu0 %v2465
    %v2550 = vpop.f32.mrb[0].mxu0
    %v2551 = vadd.f32 0.0, %v2550
    %v2552 = vpop.f32.mrb[0].mxu0
    %v2553 = vpop.f32.mrb[0].mxu0
    %v2554 = vadd.f32 0.0, %v2553
    %v2555 = vpop.f32.mrb[0].mxu0
    %2556 = vmatprep.mubr.bf16.mxu0 0
    %2557 = vmatmul.mubr.bf16.gmra.mrb[0].mxu0 %v2466
    %v2558 = vpop.f32.mrb[0].mxu0
    %v2559 = vadd.f32 0.0, %v2558
    %v2560 = vpop.f32.mrb[0].mxu0
    %v2561 = vpop.f32.mrb[0].mxu0
    %v2562 = vadd.f32 0.0, %v2561
    %v2563 = vpop.f32.mrb[0].mxu0
    %2564 = vmatprep.mubr.bf16.mxu0 0
    %2565 = vmatmul.mubr.bf16.gmra.mrb[0].mxu0 %v2467
    %v2566 = vpop.f32.mrb[0].mxu0
    %v2567 = vadd.f32 0.0, %v2566
    %v2568 = vpop.f32.mrb[0].mxu0
    %v2569 = vpop.f32.mrb[0].mxu0
    %v2570 = vadd.f32 0.0, %v2569
    %v2571 = vpop.f32.mrb[0].mxu0
    %2572 = vdwg.mxu0
    %v2573 = vadd.f32 %v2183, %v2551
    %v2574 = vadd.f32 %v2184, %v2554
    %v2575 = vadd.f32 %v2185, %v2559
    %v2576 = vadd.f32 %v2186, %v2562
    %v2577 = vadd.f32 %v2187, %v2567
    %v2578 = vadd.f32 %v2188, %v2570
    %v2579 = vld [vmem:[%s16] sm:$0x1]
    %v2581 = vlaneseq
    %v2582 = vshrl.u32 %v2581, 7
    %v2583 = vsub.s32 0, %v2582
    %v2584 = vrot.slane %v2579, %v2583
    %v2586 = vadd.f32 %v2573, %v2584
    %v2587 = vadd.f32 %v2574, %v2584
    %v2588 = vadd.f32 %v2575, %v2584
    %v2589 = vadd.f32 %v2576, %v2584
    %v2590 = vadd.f32 %v2577, %v2584
    %v2591 = vadd.f32 %v2578, %v2584
    %s2592 = scalar_lea.vmem %s5, 1
    %v2593 = vld [vmem:[%s2592] sm:$0x1]
    %s2594 = scalar_lea.vmem %s6, 1
    %v2595 = vld [vmem:[%s2594] sm:$0x1]
    %v2596 = vsel %vm178, %v2586, 0.0
    %2597 = vadd.xlane.f32.xlu0 %v2596
    %v2598 = vpop.xlane.xlu0 %2597
    %v2599 = vsel %vm178, %v2587, 0.0
    %2600 = vadd.xlane.f32.xlu0 %v2599
    %v2601 = vpop.xlane.xlu0 %2600
    %v2602 = vsel %vm178, %v2588, 0.0
    %2603 = vadd.xlane.f32.xlu0 %v2602
    %v2604 = vpop.xlane.xlu0 %2603
    %v2605 = vsel %vm178, %v2589, 0.0
    %2606 = vadd.xlane.f32.xlu0 %v2605
    %v2607 = vpop.xlane.xlu0 %2606
    %v2608 = vsel %vm178, %v2590, 0.0
    %2609 = vadd.xlane.f32.xlu0 %v2608
    %v2610 = vpop.xlane.xlu0 %2609
    %v2611 = vsel %vm178, %v2591, 0.0
    %2612 = vadd.xlane.f32.xlu0 %v2611
    %v2613 = vpop.xlane.xlu0 %2612
    %v2614 = vmul.f32 %v2598, %v280
    %v2615 = vmul.f32 %v2601, %v280
    %v2616 = vmul.f32 %v2604, %v280
    %v2617 = vmul.f32 %v2607, %v280
    %v2618 = vmul.f32 %v2610, %v280
    %v2619 = vmul.f32 %v2613, %v280
    %v2620 = vsub.f32 %v2586, %v2614
    %v2621 = vsub.f32 %v2587, %v2615
    %v2622 = vsub.f32 %v2588, %v2616
    %v2623 = vsub.f32 %v2589, %v2617
    %v2624 = vsub.f32 %v2590, %v2618
    %v2625 = vsub.f32 %v2591, %v2619
    %v2626 = vmul.f32 %v2620, %v2620
    %v2627 = vmul.f32 %v2621, %v2621
    %v2628 = vmul.f32 %v2622, %v2622
    %v2629 = vmul.f32 %v2623, %v2623
    %v2630 = vmul.f32 %v2624, %v2624
    %v2631 = vmul.f32 %v2625, %v2625
    %v2632 = vsel %vm178, %v2626, 0.0
    %2633 = vadd.xlane.f32.xlu0 %v2632
    %v2634 = vpop.xlane.xlu0 %2633
    %v2635 = vsel %vm178, %v2627, 0.0
    %2636 = vadd.xlane.f32.xlu0 %v2635
    %v2637 = vpop.xlane.xlu0 %2636
    %v2638 = vsel %vm178, %v2628, 0.0
    %2639 = vadd.xlane.f32.xlu0 %v2638
    %v2640 = vpop.xlane.xlu0 %2639
    %v2641 = vsel %vm178, %v2629, 0.0
    %2642 = vadd.xlane.f32.xlu0 %v2641
    %v2643 = vpop.xlane.xlu0 %2642
    %v2644 = vsel %vm178, %v2630, 0.0
    %2645 = vadd.xlane.f32.xlu0 %v2644
    %v2646 = vpop.xlane.xlu0 %2645
    %v2647 = vsel %vm178, %v2631, 0.0
    %2648 = vadd.xlane.f32.xlu0 %v2647
    %v2649 = vpop.xlane.xlu0 %2648
    %v2650 = vmul.f32 %v2634, %v280
    %v2651 = vmul.f32 %v2637, %v280
    %v2652 = vmul.f32 %v2640, %v280
    %v2653 = vmul.f32 %v2643, %v280
    %v2654 = vmul.f32 %v2646, %v280
    %v2655 = vmul.f32 %v2649, %v280
    %v2656 = vadd.f32 %v2650, 1e-05
    %v2657 = vadd.f32 %v2651, 1e-05
    %v2658 = vadd.f32 %v2652, 1e-05
    %v2659 = vadd.f32 %v2653, 1e-05
    %v2660 = vadd.f32 %v2654, 1e-05
    %v2661 = vadd.f32 %v2655, 1e-05
    %v2662 = vrsqrt.pop %v2656
    %v2663 = vrsqrt.pop %v2657
    %v2664 = vrsqrt.pop %v2658
    %v2665 = vrsqrt.pop %v2659
    %v2666 = vrsqrt.pop %v2660
    %v2667 = vrsqrt.pop %v2661
    %v2668 = vmul.f32 %v2620, %v2662
    %v2669 = vmul.f32 %v2621, %v2663
    %v2670 = vmul.f32 %v2622, %v2664
    %v2671 = vmul.f32 %v2623, %v2665
    %v2672 = vmul.f32 %v2624, %v2666
    %v2673 = vmul.f32 %v2625, %v2667
    %v2675 = vlaneseq
    %v2676 = vshrl.u32 %v2675, 7
    %v2677 = vsub.s32 0, %v2676
    %v2678 = vrot.slane %v2593, %v2677
    %v2680 = vmul.f32 %v2668, %v2678
    %v2681 = vmul.f32 %v2669, %v2678
    %v2682 = vmul.f32 %v2670, %v2678
    %v2683 = vmul.f32 %v2671, %v2678
    %v2684 = vmul.f32 %v2672, %v2678
    %v2685 = vmul.f32 %v2673, %v2678
    %v2687 = vlaneseq
    %v2688 = vshrl.u32 %v2687, 7
    %v2689 = vsub.s32 0, %v2688
    %v2690 = vrot.slane %v2595, %v2689
    %v2692 = vadd.f32 %v2680, %v2690
    %v2693 = vadd.f32 %v2681, %v2690
    %v2694 = vadd.f32 %v2682, %v2690
    %v2695 = vadd.f32 %v2683, %v2690
    %v2696 = vadd.f32 %v2684, %v2690
    %v2697 = vadd.f32 %v2685, %v2690
    %s2698 = scalar_lea.vmem %s7, 64
    %v2699 = vld [vmem:[%s2698] sm:$0xff]
    %v2700 = vld [vmem:[%s2698 + $0x8] sm:$0xff]
    %v2701 = vld [vmem:[%s2698 + $0x10] sm:$0xff]
    %v2702 = vld [vmem:[%s2698 + $0x18] sm:$0xff]
    %v2703 = vld [vmem:[%s2698 + $0x20] sm:$0xff]
    %v2704 = vld [vmem:[%s2698 + $0x28] sm:$0xff]
    %v2705 = vld [vmem:[%s2698 + $0x30] sm:$0xff]
    %v2706 = vld [vmem:[%s2698 + $0x38] sm:$0xff]
    %v2707 = vpack.c.bf16 %v2693, %v2692
    %v2708 = vpack.c.bf16 %v2695, %v2694
    %v2709 = vpack.c.bf16 %v2697, %v2696
    %s2710 = scalar_lea.vmem %s8, 2
    %v2711 = vld [vmem:[%s2710] sm:$0x3]
    %v2713 = vlaneseq
    %v2714 = vshrl.u32 %v2713, 7
    %v2715 = vsub.s32 0, %v2714
    %v2716 = vrot.slane %v2711, %v2715
    %v2717 = vlaneseq
    %v2718 = vshrl.u32 %v2717, 7
    %v2719 = vsub.s32 1, %v2718
    %v2720 = vrot.slane %v2711, %v2719
    %v2731 = vunpack.c.l.b16 %v2699
    %v2732 = vunpack.c.h.b16 %v2699
    %v2733 = vunpack.c.l.b16 %v2700
    %v2734 = vunpack.c.h.b16 %v2700
    %v2735 = vunpack.c.l.b16 %v2701
    %v2736 = vunpack.c.h.b16 %v2701
    %v2737 = vunpack.c.l.b16 %v2702
    %v2738 = vunpack.c.h.b16 %v2702
    %v2739 = vunpack.c.l.b16 %v2703
    %v2740 = vunpack.c.h.b16 %v2703
    %v2741 = vunpack.c.l.b16 %v2704
    %v2742 = vunpack.c.h.b16 %v2704
    %v2743 = vunpack.c.l.b16 %v2705
    %v2744 = vunpack.c.h.b16 %v2705
    %v2745 = vunpack.c.l.b16 %v2706
    %v2746 = vunpack.c.h.b16 %v2706
    %v2747 = vpack.c.b16 %v2733, %v2731
    %v2748 = vpack.c.b16 %v2734, %v2732
    %v2749 = vpack.c.b16 %v2737, %v2735
    %v2750 = vpack.c.b16 %v2738, %v2736
    %v2751 = vpack.c.b16 %v2741, %v2739
    %v2752 = vpack.c.b16 %v2742, %v2740
    %v2753 = vpack.c.b16 %v2745, %v2743
    %v2754 = vpack.c.b16 %v2746, %v2744
    %v2764 = vsel %vm178, %v2707, 0
    %v2767 = vsel %vm178, %v2708, 0
    %v2770 = vsel %vm178, %v2709, 0
    %2772 = vmatprep.subr.bf16.mxu0 %v2748
    %2773 = vmatpush1.bf16.msra.mxu0 %v2747
    %2774 = vmatprep.subr.bf16.mxu0 %v2750
    %2775 = vmatpush1.bf16.msra.mxu0 %v2749
    %2776 = vmatprep.subr.bf16.mxu0 %v2752
    %2777 = vmatpush1.bf16.msra.mxu0 %v2751
    %2778 = vmatprep.subr.bf16.mxu0 %v2754
    %2779 = vmatpush1.bf16.msra.mxu0 %v2753
    %2780 = vmatprep.subr.bf16.mxu0 0
    %2781 = vmatpush1.bf16.msra.mxu0 0
    %2782 = vmatprep.subr.bf16.mxu0 0
    %2783 = vmatpush1.bf16.msra.mxu0 0
    %2784 = vmatprep.subr.bf16.mxu0 0
    %2785 = vmatpush1.bf16.msra.mxu0 0
    %2786 = vmatprep.subr.bf16.mxu0 0
    %2787 = vmatpush1.bf16.msra.mxu0 0
    %2788 = vmatprep.subr.bf16.mxu0 0
    %2789 = vmatpush1.bf16.msra.mxu0 0
    %2790 = vmatprep.subr.bf16.mxu0 0
    %2791 = vmatpush1.bf16.msra.mxu0 0
    %2792 = vmatprep.subr.bf16.mxu0 0
    %2793 = vmatpush1.bf16.msra.mxu0 0
    %2794 = vmatprep.subr.bf16.mxu0 0
    %2795 = vmatpush1.bf16.msra.mxu0 0
    %2796 = vmatprep.subr.bf16.mxu0 0
    %2797 = vmatpush1.bf16.msra.mxu0 0
    %2798 = vmatprep.subr.bf16.mxu0 0
    %2799 = vmatpush1.bf16.msra.mxu0 0
    %2800 = vmatprep.subr.bf16.mxu0 0
    %2801 = vmatpush1.bf16.msra.mxu0 0
    %2802 = vmatprep.subr.bf16.mxu0 0
    %2803 = vmatpush1.bf16.msra.mxu0 0
    %2804 = vmatprep.mubr.bf16.mxu0 0
    %2805 = vmatmul.mubr.bf16.gmra.mrb[0].mxu0 %v2764
    %v2806 = vpop.f32.mrb[0].mxu0
    %v2807 = vadd.f32 %v2716, %v2806
    %v2808 = vpop.f32.mrb[0].mxu0
    %v2809 = vadd.f32 %v2720, %v2808
    %v2810 = vpop.f32.mrb[0].mxu0
    %v2811 = vadd.f32 %v2716, %v2810
    %v2812 = vpop.f32.mrb[0].mxu0
    %v2813 = vadd.f32 %v2720, %v2812
    %2814 = vmatprep.mubr.bf16.mxu0 0
    %2815 = vmatmul.mubr.bf16.gmra.mrb[0].mxu0 %v2767
    %v2816 = vpop.f32.mrb[0].mxu0
    %v2817 = vadd.f32 %v2716, %v2816
    %v2818 = vpop.f32.mrb[0].mxu0
    %v2819 = vadd.f32 %v2720, %v2818
    %v2820 = vpop.f32.mrb[0].mxu0
    %v2821 = vadd.f32 %v2716, %v2820
    %v2822 = vpop.f32.mrb[0].mxu0
    %v2823 = vadd.f32 %v2720, %v2822
    %2824 = vmatprep.mubr.bf16.mxu0 0
    %2825 = vmatmul.mubr.bf16.gmra.mrb[0].mxu0 %v2770
    %v2826 = vpop.f32.mrb[0].mxu0
    %v2827 = vadd.f32 %v2716, %v2826
    %v2828 = vpop.f32.mrb[0].mxu0
    %v2829 = vadd.f32 %v2720, %v2828
    %v2830 = vpop.f32.mrb[0].mxu0
    %v2831 = vadd.f32 %v2716, %v2830
    %v2832 = vpop.f32.mrb[0].mxu0
    %v2833 = vadd.f32 %v2720, %v2832
    %2834 = vdwg.mxu0
    %v2835 = vpack.c.bf16 %v2811, %v2807
    %v2836 = vpack.c.bf16 %v2817, %v2817
    %v2837 = vpack.c.bf16 %v2827, %v2821
    %v2838 = vpack.c.bf16 %v2831, %v2831
    %v2839 = vpack.c.bf16 %v2813, %v2809
    %v2840 = vpack.c.bf16 %v2819, %v2819
    %v2841 = vpack.c.bf16 %v2829, %v2823
    %v2842 = vpack.c.bf16 %v2833, %v2833
    %2845 = vrot.lane.b32.xlu0 %v2835, 64
    %v2846 = vpop.permute.xlu0 %2845
    %2847 = vrot.lane.b32.xlu0 %v2836, 64
    %v2848 = vpop.permute.xlu0 %2847
    %v2850 = vsel %vm622, %v2835, 0
    %v2853 = vsel %vm622, %v2836, 0
    %v2856 = vsel %vm622, %v2846, 0
    %v2859 = vsel %vm622, %v2848, 0
    %2861 = vmatprep.subr.bf16.mxu0 0
    %2862 = vmatpush1.bf16.xpose.msra.mxu0 %v2856
    %2863 = vmatprep.subr.bf16.mxu0 0
    %2864 = vmatpush1.bf16.xpose.msra.mxu0 %v2859
    %2865 = vmatprep.subr.bf16.mxu0 0
    %2866 = vmatpush1.bf16.xpose.msra.mxu0 0
    %2867 = vmatprep.subr.bf16.mxu0 0
    %2868 = vmatpush1.bf16.xpose.msra.mxu0 0
    %2869 = vmatprep.subr.bf16.mxu0 0
    %2870 = vmatpush1.bf16.xpose.msra.mxu0 0
    %2871 = vmatprep.subr.bf16.mxu0 0
    %2872 = vmatpush1.bf16.xpose.msra.mxu0 0
    %2873 = vmatprep.subr.bf16.mxu0 0
    %2874 = vmatpush1.bf16.xpose.msra.mxu0 0
    %2875 = vmatprep.subr.bf16.mxu0 0
    %2876 = vmatpush1.bf16.xpose.msra.mxu0 0
    %2877 = vmatprep.subr.bf16.mxu0 0
    %2878 = vmatpush1.bf16.xpose.msra.mxu0 0
    %2879 = vmatprep.subr.bf16.mxu0 0
    %2880 = vmatpush1.bf16.xpose.msra.mxu0 0
    %2881 = vmatprep.subr.bf16.mxu0 0
    %2882 = vmatpush1.bf16.xpose.msra.mxu0 0
    %2883 = vmatprep.subr.bf16.mxu0 0
    %2884 = vmatpush1.bf16.xpose.msra.mxu0 0
    %2885 = vmatprep.subr.bf16.mxu0 0
    %2886 = vmatpush1.bf16.xpose.msra.mxu0 0
    %2887 = vmatprep.subr.bf16.mxu0 0
    %2888 = vmatpush1.bf16.xpose.msra.mxu0 0
    %2889 = vmatprep.subr.bf16.mxu0 0
    %2890 = vmatpush1.bf16.xpose.msra.mxu0 0
    %2891 = vmatprep.subr.bf16.mxu0 0
    %2892 = vmatpush1.bf16.xpose.msra.mxu0 0
    %2893 = vmatprep.mubr.bf16.mxu0 0
    %2894 = vmatmul.mubr.bf16.gmra.mrb[0].mxu0 %v2850
    %v2895 = vpop.f32.mrb[0].mxu0
    %v2896 = vadd.f32 0.0, %v2895
    %v2897 = vpop.f32.mrb[0].mxu0
    %v2898 = vpop.f32.mrb[0].mxu0
    %v2899 = vadd.f32 0.0, %v2898
    %v2900 = vpop.f32.mrb[0].mxu0
    %2901 = vmatprep.mubr.bf16.mxu0 0
    %2902 = vmatmul.mubr.bf16.gmra.mrb[0].mxu0 %v2853
    %v2903 = vpop.f32.mrb[0].mxu0
    %v2904 = vadd.f32 0.0, %v2903
    %v2905 = vpop.f32.mrb[0].mxu0
    %v2906 = vpop.f32.mrb[0].mxu0
    %v2907 = vpop.f32.mrb[0].mxu0
    %2908 = vdwg.mxu0
    %2911 = vrot.lane.b32.xlu0 %v2837, 64
    %v2912 = vpop.permute.xlu0 %2911
    %2913 = vrot.lane.b32.xlu0 %v2838, 64
    %v2914 = vpop.permute.xlu0 %2913
    %v2916 = vsel %vm622, %v2837, 0
    %v2919 = vsel %vm622, %v2838, 0
    %v2922 = vsel %vm622, %v2912, 0
    %v2925 = vsel %vm622, %v2914, 0
    %2927 = vmatprep.subr.bf16.mxu0 0
    %2928 = vmatpush1.bf16.xpose.msra.mxu0 %v2922
    %2929 = vmatprep.subr.bf16.mxu0 0
    %2930 = vmatpush1.bf16.xpose.msra.mxu0 %v2925
    %2931 = vmatprep.subr.bf16.mxu0 0
    %2932 = vmatpush1.bf16.xpose.msra.mxu0 0
    %2933 = vmatprep.subr.bf16.mxu0 0
    %2934 = vmatpush1.bf16.xpose.msra.mxu0 0
    %2935 = vmatprep.subr.bf16.mxu0 0
    %2936 = vmatpush1.bf16.xpose.msra.mxu0 0
    %2937 = vmatprep.subr.bf16.mxu0 0
    %2938 = vmatpush1.bf16.xpose.msra.mxu0 0
    %2939 = vmatprep.subr.bf16.mxu0 0
    %2940 = vmatpush1.bf16.xpose.msra.mxu0 0
    %2941 = vmatprep.subr.bf16.mxu0 0
    %2942 = vmatpush1.bf16.xpose.msra.mxu0 0
    %2943 = vmatprep.subr.bf16.mxu0 0
    %2944 = vmatpush1.bf16.xpose.msra.mxu0 0
    %2945 = vmatprep.subr.bf16.mxu0 0
    %2946 = vmatpush1.bf16.xpose.msra.mxu0 0
    %2947 = vmatprep.subr.bf16.mxu0 0
    %2948 = vmatpush1.bf16.xpose.msra.mxu0 0
    %2949 = vmatprep.subr.bf16.mxu0 0
    %2950 = vmatpush1.bf16.xpose.msra.mxu0 0
    %2951 = vmatprep.subr.bf16.mxu0 0
    %2952 = vmatpush1.bf16.xpose.msra.mxu0 0
    %2953 = vmatprep.subr.bf16.mxu0 0
    %2954 = vmatpush1.bf16.xpose.msra.mxu0 0
    %2955 = vmatprep.subr.bf16.mxu0 0
    %2956 = vmatpush1.bf16.xpose.msra.mxu0 0
    %2957 = vmatprep.subr.bf16.mxu0 0
    %2958 = vmatpush1.bf16.xpose.msra.mxu0 0
    %2959 = vmatprep.mubr.bf16.mxu0 0
    %2960 = vmatmul.mubr.bf16.gmra.mrb[0].mxu0 %v2916
    %v2961 = vpop.f32.mrb[0].mxu0
    %v2962 = vadd.f32 0.0, %v2961
    %v2963 = vpop.f32.mrb[0].mxu0
    %v2964 = vpop.f32.mrb[0].mxu0
    %v2965 = vadd.f32 0.0, %v2964
    %v2966 = vpop.f32.mrb[0].mxu0
    %2967 = vmatprep.mubr.bf16.mxu0 0
    %2968 = vmatmul.mubr.bf16.gmra.mrb[0].mxu0 %v2919
    %v2969 = vpop.f32.mrb[0].mxu0
    %v2970 = vadd.f32 0.0, %v2969
    %v2971 = vpop.f32.mrb[0].mxu0
    %v2972 = vpop.f32.mrb[0].mxu0
    %v2973 = vpop.f32.mrb[0].mxu0
    %2974 = vdwg.mxu0
    %v2975 = vmul.f32 %v2896, 0.25
    %v2976 = vmul.f32 %v2899, 0.25
    %v2977 = vmul.f32 %v2904, 0.25
    %v2978 = vmul.f32 %v2962, 0.25
    %v2979 = vmul.f32 %v2965, 0.25
    %v2980 = vmul.f32 %v2970, 0.25
    %v2981 = vadd.f32 %v2975, %v368
    %v2982 = vadd.f32 %v2976, %v368
    %v2983 = vadd.f32 %v2977, %v368
    %v2984 = vadd.f32 %v2978, %v368
    %v2985 = vadd.f32 %v2979, %v368
    %v2986 = vadd.f32 %v2980, %v368
    %v2987 = vsel %vm761, %v2981, -inf
    %2988 = vmax.xlane.f32.xlu0 %v2987
    %v2989 = vpop.xlane.xlu0 %2988
    %v2990 = vsel %vm761, %v2982, -inf
    %2991 = vmax.xlane.f32.xlu0 %v2990
    %v2992 = vpop.xlane.xlu0 %2991
    %v2993 = vsel %vm761, %v2983, -inf
    %2994 = vmax.xlane.f32.xlu0 %v2993
    %v2995 = vpop.xlane.xlu0 %2994
    %v2996 = vsel %vm761, %v2984, -inf
    %2997 = vmax.xlane.f32.xlu0 %v2996
    %v2998 = vpop.xlane.xlu0 %2997
    %v2999 = vsel %vm761, %v2985, -inf
    %3000 = vmax.xlane.f32.xlu0 %v2999
    %v3001 = vpop.xlane.xlu0 %3000
    %v3002 = vsel %vm761, %v2986, -inf
    %3003 = vmax.xlane.f32.xlu0 %v3002
    %v3004 = vpop.xlane.xlu0 %3003
    %v3005 = vsub.f32 %v2981, %v2989
    %v3006 = vsub.f32 %v2982, %v2992
    %v3007 = vsub.f32 %v2983, %v2995
    %v3008 = vsub.f32 %v2984, %v2998
    %v3009 = vsub.f32 %v2985, %v3001
    %v3010 = vsub.f32 %v2986, %v3004
    %v3011 = vmul.f32 %v3005, 1.442695
    %v3012 = vpow.pop %v3011
    %v3013 = vmul.f32 %v3006, 1.442695
    %v3014 = vpow.pop %v3013
    %v3015 = vmul.f32 %v3007, 1.442695
    %v3016 = vpow.pop %v3015
    %v3017 = vmul.f32 %v3008, 1.442695
    %v3018 = vpow.pop %v3017
    %v3019 = vmul.f32 %v3009, 1.442695
    %v3020 = vpow.pop %v3019
    %v3021 = vmul.f32 %v3010, 1.442695
    %v3022 = vpow.pop %v3021
    %v3023 = vsel %vm761, %v3012, 0.0
    %3024 = vadd.xlane.f32.xlu0 %v3023
    %v3025 = vpop.xlane.xlu0 %3024
    %v3026 = vsel %vm761, %v3014, 0.0
    %3027 = vadd.xlane.f32.xlu0 %v3026
    %v3028 = vpop.xlane.xlu0 %3027
    %v3029 = vsel %vm761, %v3016, 0.0
    %3030 = vadd.xlane.f32.xlu0 %v3029
    %v3031 = vpop.xlane.xlu0 %3030
    %v3032 = vsel %vm761, %v3018, 0.0
    %3033 = vadd.xlane.f32.xlu0 %v3032
    %v3034 = vpop.xlane.xlu0 %3033
    %v3035 = vsel %vm761, %v3020, 0.0
    %3036 = vadd.xlane.f32.xlu0 %v3035
    %v3037 = vpop.xlane.xlu0 %3036
    %v3038 = vsel %vm761, %v3022, 0.0
    %3039 = vadd.xlane.f32.xlu0 %v3038
    %v3040 = vpop.xlane.xlu0 %3039
    %v3041 = vrcp.pop %v3025
    %v3042 = vrcp.pop %v3028
    %v3043 = vrcp.pop %v3031
    %v3044 = vrcp.pop %v3034
    %v3045 = vrcp.pop %v3037
    %v3046 = vrcp.pop %v3040
    %v3047 = vmul.f32 %v3012, %v3041
    %v3048 = vmul.f32 %v3014, %v3042
    %v3049 = vmul.f32 %v3016, %v3043
    %v3050 = vmul.f32 %v3018, %v3044
    %v3051 = vmul.f32 %v3020, %v3045
    %v3052 = vmul.f32 %v3022, %v3046
    %v3053 = vpack.c.bf16 %v3048, %v3047
    %v3054 = vpack.c.bf16 %v3049, %v3049
    %v3055 = vpack.c.bf16 %v3051, %v3050
    %v3056 = vpack.c.bf16 %v3052, %v3052
    %v3058 = vsel %vm761, %v3053, 0
    %v3061 = vsel %vm761, %v3054, 0
    %v3064 = vsel %vm838, %v2840, 0
    %3066 = vmatprep.subr.bf16.mxu0 0
    %3067 = vmatpush1.bf16.msra.mxu0 %v2839
    %3068 = vmatprep.subr.bf16.mxu0 0
    %3069 = vmatpush1.bf16.msra.mxu0 %v3064
    %3070 = vmatprep.subr.bf16.mxu0 0
    %3071 = vmatpush1.bf16.msra.mxu0 0
    %3072 = vmatprep.subr.bf16.mxu0 0
    %3073 = vmatpush1.bf16.msra.mxu0 0
    %3074 = vmatprep.subr.bf16.mxu0 0
    %3075 = vmatpush1.bf16.msra.mxu0 0
    %3076 = vmatprep.subr.bf16.mxu0 0
    %3077 = vmatpush1.bf16.msra.mxu0 0
    %3078 = vmatprep.subr.bf16.mxu0 0
    %3079 = vmatpush1.bf16.msra.mxu0 0
    %3080 = vmatprep.subr.bf16.mxu0 0
    %3081 = vmatpush1.bf16.msra.mxu0 0
    %3082 = vmatprep.subr.bf16.mxu0 0
    %3083 = vmatpush1.bf16.msra.mxu0 0
    %3084 = vmatprep.subr.bf16.mxu0 0
    %3085 = vmatpush1.bf16.msra.mxu0 0
    %3086 = vmatprep.subr.bf16.mxu0 0
    %3087 = vmatpush1.bf16.msra.mxu0 0
    %3088 = vmatprep.subr.bf16.mxu0 0
    %3089 = vmatpush1.bf16.msra.mxu0 0
    %3090 = vmatprep.subr.bf16.mxu0 0
    %3091 = vmatpush1.bf16.msra.mxu0 0
    %3092 = vmatprep.subr.bf16.mxu0 0
    %3093 = vmatpush1.bf16.msra.mxu0 0
    %3094 = vmatprep.subr.bf16.mxu0 0
    %3095 = vmatpush1.bf16.msra.mxu0 0
    %3096 = vmatprep.subr.bf16.mxu0 0
    %3097 = vmatpush1.bf16.msra.mxu0 0
    %3098 = vmatprep.mubr.bf16.mxu0 0
    %3099 = vmatmul.mubr.bf16.gmra.mrb[0].mxu0 %v3058
    %v3100 = vpop.f32.mrb[0].mxu0
    %v3101 = vadd.f32 0.0, %v3100
    %v3102 = vpop.f32.mrb[0].mxu0
    %v3103 = vpop.f32.mrb[0].mxu0
    %v3104 = vadd.f32 0.0, %v3103
    %v3105 = vpop.f32.mrb[0].mxu0
    %3106 = vmatprep.mubr.bf16.mxu0 0
    %3107 = vmatmul.mubr.bf16.gmra.mrb[0].mxu0 %v3061
    %v3108 = vpop.f32.mrb[0].mxu0
    %v3109 = vadd.f32 0.0, %v3108
    %v3110 = vpop.f32.mrb[0].mxu0
    %v3111 = vpop.f32.mrb[0].mxu0
    %v3112 = vpop.f32.mrb[0].mxu0
    %3113 = vdwg.mxu0
    %v3115 = vsel %vm761, %v3055, 0
    %v3118 = vsel %vm761, %v3056, 0
    %v3121 = vsel %vm838, %v2842, 0
    %3123 = vmatprep.subr.bf16.mxu0 0
    %3124 = vmatpush1.bf16.msra.mxu0 %v2841
    %3125 = vmatprep.subr.bf16.mxu0 0
    %3126 = vmatpush1.bf16.msra.mxu0 %v3121
    %3127 = vmatprep.subr.bf16.mxu0 0
    %3128 = vmatpush1.bf16.msra.mxu0 0
    %3129 = vmatprep.subr.bf16.mxu0 0
    %3130 = vmatpush1.bf16.msra.mxu0 0
    %3131 = vmatprep.subr.bf16.mxu0 0
    %3132 = vmatpush1.bf16.msra.mxu0 0
    %3133 = vmatprep.subr.bf16.mxu0 0
    %3134 = vmatpush1.bf16.msra.mxu0 0
    %3135 = vmatprep.subr.bf16.mxu0 0
    %3136 = vmatpush1.bf16.msra.mxu0 0
    %3137 = vmatprep.subr.bf16.mxu0 0
    %3138 = vmatpush1.bf16.msra.mxu0 0
    %3139 = vmatprep.subr.bf16.mxu0 0
    %3140 = vmatpush1.bf16.msra.mxu0 0
    %3141 = vmatprep.subr.bf16.mxu0 0
    %3142 = vmatpush1.bf16.msra.mxu0 0
    %3143 = vmatprep.subr.bf16.mxu0 0
    %3144 = vmatpush1.bf16.msra.mxu0 0
    %3145 = vmatprep.subr.bf16.mxu0 0
    %3146 = vmatpush1.bf16.msra.mxu0 0
    %3147 = vmatprep.subr.bf16.mxu0 0
    %3148 = vmatpush1.bf16.msra.mxu0 0
    %3149 = vmatprep.subr.bf16.mxu0 0
    %3150 = vmatpush1.bf16.msra.mxu0 0
    %3151 = vmatprep.subr.bf16.mxu0 0
    %3152 = vmatpush1.bf16.msra.mxu0 0
    %3153 = vmatprep.subr.bf16.mxu0 0
    %3154 = vmatpush1.bf16.msra.mxu0 0
    %3155 = vmatprep.mubr.bf16.mxu0 0
    %3156 = vmatmul.mubr.bf16.gmra.mrb[0].mxu0 %v3115
    %v3157 = vpop.f32.mrb[0].mxu0
    %v3158 = vadd.f32 0.0, %v3157
    %v3159 = vpop.f32.mrb[0].mxu0
    %v3160 = vpop.f32.mrb[0].mxu0
    %v3161 = vadd.f32 0.0, %v3160
    %v3162 = vpop.f32.mrb[0].mxu0
    %3163 = vmatprep.mubr.bf16.mxu0 0
    %3164 = vmatmul.mubr.bf16.gmra.mrb[0].mxu0 %v3118
    %v3165 = vpop.f32.mrb[0].mxu0
    %v3166 = vadd.f32 0.0, %v3165
    %v3167 = vpop.f32.mrb[0].mxu0
    %v3168 = vpop.f32.mrb[0].mxu0
    %v3169 = vpop.f32.mrb[0].mxu0
    %3170 = vdwg.mxu0
    %3171 = vrot.lane.b32.xlu0 %v2835, 112
    %v3172 = vpop.permute.xlu0 %3171
    %3173 = vrot.lane.b32.xlu0 %v2836, 112
    %v3174 = vpop.permute.xlu0 %3173
    %3175 = vrot.lane.b32.xlu0 %v2835, 48
    %v3176 = vpop.permute.xlu0 %3175
    %3177 = vrot.lane.b32.xlu0 %v2836, 48
    %v3178 = vpop.permute.xlu0 %3177
    %v3180 = vsel %vm622, %v3172, 0
    %v3183 = vsel %vm622, %v3174, 0
    %v3186 = vsel %vm622, %v3176, 0
    %v3189 = vsel %vm622, %v3178, 0
    %3191 = vmatprep.subr.bf16.mxu0 0
    %3192 = vmatpush1.bf16.xpose.msra.mxu0 %v3186
    %3193 = vmatprep.subr.bf16.mxu0 0
    %3194 = vmatpush1.bf16.xpose.msra.mxu0 %v3189
    %3195 = vmatprep.subr.bf16.mxu0 0
    %3196 = vmatpush1.bf16.xpose.msra.mxu0 0
    %3197 = vmatprep.subr.bf16.mxu0 0
    %3198 = vmatpush1.bf16.xpose.msra.mxu0 0
    %3199 = vmatprep.subr.bf16.mxu0 0
    %3200 = vmatpush1.bf16.xpose.msra.mxu0 0
    %3201 = vmatprep.subr.bf16.mxu0 0
    %3202 = vmatpush1.bf16.xpose.msra.mxu0 0
    %3203 = vmatprep.subr.bf16.mxu0 0
    %3204 = vmatpush1.bf16.xpose.msra.mxu0 0
    %3205 = vmatprep.subr.bf16.mxu0 0
    %3206 = vmatpush1.bf16.xpose.msra.mxu0 0
    %3207 = vmatprep.subr.bf16.mxu0 0
    %3208 = vmatpush1.bf16.xpose.msra.mxu0 0
    %3209 = vmatprep.subr.bf16.mxu0 0
    %3210 = vmatpush1.bf16.xpose.msra.mxu0 0
    %3211 = vmatprep.subr.bf16.mxu0 0
    %3212 = vmatpush1.bf16.xpose.msra.mxu0 0
    %3213 = vmatprep.subr.bf16.mxu0 0
    %3214 = vmatpush1.bf16.xpose.msra.mxu0 0
    %3215 = vmatprep.subr.bf16.mxu0 0
    %3216 = vmatpush1.bf16.xpose.msra.mxu0 0
    %3217 = vmatprep.subr.bf16.mxu0 0
    %3218 = vmatpush1.bf16.xpose.msra.mxu0 0
    %3219 = vmatprep.subr.bf16.mxu0 0
    %3220 = vmatpush1.bf16.xpose.msra.mxu0 0
    %3221 = vmatprep.subr.bf16.mxu0 0
    %3222 = vmatpush1.bf16.xpose.msra.mxu0 0
    %3223 = vmatprep.mubr.bf16.mxu0 0
    %3224 = vmatmul.mubr.bf16.gmra.mrb[0].mxu0 %v3180
    %v3225 = vpop.f32.mrb[0].mxu0
    %v3226 = vadd.f32 0.0, %v3225
    %v3227 = vpop.f32.mrb[0].mxu0
    %v3228 = vpop.f32.mrb[0].mxu0
    %v3229 = vadd.f32 0.0, %v3228
    %v3230 = vpop.f32.mrb[0].mxu0
    %3231 = vmatprep.mubr.bf16.mxu0 0
    %3232 = vmatmul.mubr.bf16.gmra.mrb[0].mxu0 %v3183
    %v3233 = vpop.f32.mrb[0].mxu0
    %v3234 = vadd.f32 0.0, %v3233
    %v3235 = vpop.f32.mrb[0].mxu0
    %v3236 = vpop.f32.mrb[0].mxu0
    %v3237 = vpop.f32.mrb[0].mxu0
    %3238 = vdwg.mxu0
    %3239 = vrot.lane.b32.xlu0 %v2837, 112
    %v3240 = vpop.permute.xlu0 %3239
    %3241 = vrot.lane.b32.xlu0 %v2838, 112
    %v3242 = vpop.permute.xlu0 %3241
    %3243 = vrot.lane.b32.xlu0 %v2837, 48
    %v3244 = vpop.permute.xlu0 %3243
    %3245 = vrot.lane.b32.xlu0 %v2838, 48
    %v3246 = vpop.permute.xlu0 %3245
    %v3248 = vsel %vm622, %v3240, 0
    %v3251 = vsel %vm622, %v3242, 0
    %v3254 = vsel %vm622, %v3244, 0
    %v3257 = vsel %vm622, %v3246, 0
    %3259 = vmatprep.subr.bf16.mxu0 0
    %3260 = vmatpush1.bf16.xpose.msra.mxu0 %v3254
    %3261 = vmatprep.subr.bf16.mxu0 0
    %3262 = vmatpush1.bf16.xpose.msra.mxu0 %v3257
    %3263 = vmatprep.subr.bf16.mxu0 0
    %3264 = vmatpush1.bf16.xpose.msra.mxu0 0
    %3265 = vmatprep.subr.bf16.mxu0 0
    %3266 = vmatpush1.bf16.xpose.msra.mxu0 0
    %3267 = vmatprep.subr.bf16.mxu0 0
    %3268 = vmatpush1.bf16.xpose.msra.mxu0 0
    %3269 = vmatprep.subr.bf16.mxu0 0
    %3270 = vmatpush1.bf16.xpose.msra.mxu0 0
    %3271 = vmatprep.subr.bf16.mxu0 0
    %3272 = vmatpush1.bf16.xpose.msra.mxu0 0
    %3273 = vmatprep.subr.bf16.mxu0 0
    %3274 = vmatpush1.bf16.xpose.msra.mxu0 0
    %3275 = vmatprep.subr.bf16.mxu0 0
    %3276 = vmatpush1.bf16.xpose.msra.mxu0 0
    %3277 = vmatprep.subr.bf16.mxu0 0
    %3278 = vmatpush1.bf16.xpose.msra.mxu0 0
    %3279 = vmatprep.subr.bf16.mxu0 0
    %3280 = vmatpush1.bf16.xpose.msra.mxu0 0
    %3281 = vmatprep.subr.bf16.mxu0 0
    %3282 = vmatpush1.bf16.xpose.msra.mxu0 0
    %3283 = vmatprep.subr.bf16.mxu0 0
    %3284 = vmatpush1.bf16.xpose.msra.mxu0 0
    %3285 = vmatprep.subr.bf16.mxu0 0
    %3286 = vmatpush1.bf16.xpose.msra.mxu0 0
    %3287 = vmatprep.subr.bf16.mxu0 0
    %3288 = vmatpush1.bf16.xpose.msra.mxu0 0
    %3289 = vmatprep.subr.bf16.mxu0 0
    %3290 = vmatpush1.bf16.xpose.msra.mxu0 0
    %3291 = vmatprep.mubr.bf16.mxu0 0
    %3292 = vmatmul.mubr.bf16.gmra.mrb[0].mxu0 %v3248
    %v3293 = vpop.f32.mrb[0].mxu0
    %v3294 = vadd.f32 0.0, %v3293
    %v3295 = vpop.f32.mrb[0].mxu0
    %v3296 = vpop.f32.mrb[0].mxu0
    %v3297 = vadd.f32 0.0, %v3296
    %v3298 = vpop.f32.mrb[0].mxu0
    %3299 = vmatprep.mubr.bf16.mxu0 0
    %3300 = vmatmul.mubr.bf16.gmra.mrb[0].mxu0 %v3251
    %v3301 = vpop.f32.mrb[0].mxu0
    %v3302 = vadd.f32 0.0, %v3301
    %v3303 = vpop.f32.mrb[0].mxu0
    %v3304 = vpop.f32.mrb[0].mxu0
    %v3305 = vpop.f32.mrb[0].mxu0
    %3306 = vdwg.mxu0
    %v3307 = vmul.f32 %v3226, 0.25
    %v3308 = vmul.f32 %v3229, 0.25
    %v3309 = vmul.f32 %v3234, 0.25
    %v3310 = vmul.f32 %v3294, 0.25
    %v3311 = vmul.f32 %v3297, 0.25
    %v3312 = vmul.f32 %v3302, 0.25
    %v3313 = vadd.f32 %v3307, %v368
    %v3314 = vadd.f32 %v3308, %v368
    %v3315 = vadd.f32 %v3309, %v368
    %v3316 = vadd.f32 %v3310, %v368
    %v3317 = vadd.f32 %v3311, %v368
    %v3318 = vadd.f32 %v3312, %v368
    %v3319 = vsel %vm761, %v3313, -inf
    %3320 = vmax.xlane.f32.xlu0 %v3319
    %v3321 = vpop.xlane.xlu0 %3320
    %v3322 = vsel %vm761, %v3314, -inf
    %3323 = vmax.xlane.f32.xlu0 %v3322
    %v3324 = vpop.xlane.xlu0 %3323
    %v3325 = vsel %vm761, %v3315, -inf
    %3326 = vmax.xlane.f32.xlu0 %v3325
    %v3327 = vpop.xlane.xlu0 %3326
    %v3328 = vsel %vm761, %v3316, -inf
    %3329 = vmax.xlane.f32.xlu0 %v3328
    %v3330 = vpop.xlane.xlu0 %3329
    %v3331 = vsel %vm761, %v3317, -inf
    %3332 = vmax.xlane.f32.xlu0 %v3331
    %v3333 = vpop.xlane.xlu0 %3332
    %v3334 = vsel %vm761, %v3318, -inf
    %3335 = vmax.xlane.f32.xlu0 %v3334
    %v3336 = vpop.xlane.xlu0 %3335
    %v3337 = vsub.f32 %v3313, %v3321
    %v3338 = vsub.f32 %v3314, %v3324
    %v3339 = vsub.f32 %v3315, %v3327
    %v3340 = vsub.f32 %v3316, %v3330
    %v3341 = vsub.f32 %v3317, %v3333
    %v3342 = vsub.f32 %v3318, %v3336
    %v3343 = vmul.f32 %v3337, 1.442695
    %v3344 = vpow.pop %v3343
    %v3345 = vmul.f32 %v3338, 1.442695
    %v3346 = vpow.pop %v3345
    %v3347 = vmul.f32 %v3339, 1.442695
    %v3348 = vpow.pop %v3347
    %v3349 = vmul.f32 %v3340, 1.442695
    %v3350 = vpow.pop %v3349
    %v3351 = vmul.f32 %v3341, 1.442695
    %v3352 = vpow.pop %v3351
    %v3353 = vmul.f32 %v3342, 1.442695
    %v3354 = vpow.pop %v3353
    %v3355 = vsel %vm761, %v3344, 0.0
    %3356 = vadd.xlane.f32.xlu0 %v3355
    %v3357 = vpop.xlane.xlu0 %3356
    %v3358 = vsel %vm761, %v3346, 0.0
    %3359 = vadd.xlane.f32.xlu0 %v3358
    %v3360 = vpop.xlane.xlu0 %3359
    %v3361 = vsel %vm761, %v3348, 0.0
    %3362 = vadd.xlane.f32.xlu0 %v3361
    %v3363 = vpop.xlane.xlu0 %3362
    %v3364 = vsel %vm761, %v3350, 0.0
    %3365 = vadd.xlane.f32.xlu0 %v3364
    %v3366 = vpop.xlane.xlu0 %3365
    %v3367 = vsel %vm761, %v3352, 0.0
    %3368 = vadd.xlane.f32.xlu0 %v3367
    %v3369 = vpop.xlane.xlu0 %3368
    %v3370 = vsel %vm761, %v3354, 0.0
    %3371 = vadd.xlane.f32.xlu0 %v3370
    %v3372 = vpop.xlane.xlu0 %3371
    %v3373 = vrcp.pop %v3357
    %v3374 = vrcp.pop %v3360
    %v3375 = vrcp.pop %v3363
    %v3376 = vrcp.pop %v3366
    %v3377 = vrcp.pop %v3369
    %v3378 = vrcp.pop %v3372
    %v3379 = vmul.f32 %v3344, %v3373
    %v3380 = vmul.f32 %v3346, %v3374
    %v3381 = vmul.f32 %v3348, %v3375
    %v3382 = vmul.f32 %v3350, %v3376
    %v3383 = vmul.f32 %v3352, %v3377
    %v3384 = vmul.f32 %v3354, %v3378
    %v3385 = vpack.c.bf16 %v3380, %v3379
    %v3386 = vpack.c.bf16 %v3381, %v3381
    %v3387 = vpack.c.bf16 %v3383, %v3382
    %v3388 = vpack.c.bf16 %v3384, %v3384
    %3391 = vrot.lane.b32.xlu0 %v2839, 112
    %v3392 = vpop.permute.xlu0 %3391
    %3393 = vrot.lane.b32.xlu0 %v2840, 112
    %v3394 = vpop.permute.xlu0 %3393
    %v3397 = vsel %vm761, %v3385, 0
    %v3400 = vsel %vm761, %v3386, 0
    %v3403 = vsel %vm838, %v3394, 0
    %3405 = vmatprep.subr.bf16.mxu0 0
    %3406 = vmatpush1.bf16.msra.mxu0 %v3392
    %3407 = vmatprep.subr.bf16.mxu0 0
    %3408 = vmatpush1.bf16.msra.mxu0 %v3403
    %3409 = vmatprep.subr.bf16.mxu0 0
    %3410 = vmatpush1.bf16.msra.mxu0 0
    %3411 = vmatprep.subr.bf16.mxu0 0
    %3412 = vmatpush1.bf16.msra.mxu0 0
    %3413 = vmatprep.subr.bf16.mxu0 0
    %3414 = vmatpush1.bf16.msra.mxu0 0
    %3415 = vmatprep.subr.bf16.mxu0 0
    %3416 = vmatpush1.bf16.msra.mxu0 0
    %3417 = vmatprep.subr.bf16.mxu0 0
    %3418 = vmatpush1.bf16.msra.mxu0 0
    %3419 = vmatprep.subr.bf16.mxu0 0
    %3420 = vmatpush1.bf16.msra.mxu0 0
    %3421 = vmatprep.subr.bf16.mxu0 0
    %3422 = vmatpush1.bf16.msra.mxu0 0
    %3423 = vmatprep.subr.bf16.mxu0 0
    %3424 = vmatpush1.bf16.msra.mxu0 0
    %3425 = vmatprep.subr.bf16.mxu0 0
    %3426 = vmatpush1.bf16.msra.mxu0 0
    %3427 = vmatprep.subr.bf16.mxu0 0
    %3428 = vmatpush1.bf16.msra.mxu0 0
    %3429 = vmatprep.subr.bf16.mxu0 0
    %3430 = vmatpush1.bf16.msra.mxu0 0
    %3431 = vmatprep.subr.bf16.mxu0 0
    %3432 = vmatpush1.bf16.msra.mxu0 0
    %3433 = vmatprep.subr.bf16.mxu0 0
    %3434 = vmatpush1.bf16.msra.mxu0 0
    %3435 = vmatprep.subr.bf16.mxu0 0
    %3436 = vmatpush1.bf16.msra.mxu0 0
    %3437 = vmatprep.mubr.bf16.mxu0 0
    %3438 = vmatmul.mubr.bf16.gmra.mrb[0].mxu0 %v3397
    %v3439 = vpop.f32.mrb[0].mxu0
    %v3440 = vadd.f32 0.0, %v3439
    %v3441 = vpop.f32.mrb[0].mxu0
    %v3442 = vpop.f32.mrb[0].mxu0
    %v3443 = vadd.f32 0.0, %v3442
    %v3444 = vpop.f32.mrb[0].mxu0
    %3445 = vmatprep.mubr.bf16.mxu0 0
    %3446 = vmatmul.mubr.bf16.gmra.mrb[0].mxu0 %v3400
    %v3447 = vpop.f32.mrb[0].mxu0
    %v3448 = vadd.f32 0.0, %v3447
    %v3449 = vpop.f32.mrb[0].mxu0
    %v3450 = vpop.f32.mrb[0].mxu0
    %v3451 = vpop.f32.mrb[0].mxu0
    %3452 = vdwg.mxu0
    %3455 = vrot.lane.b32.xlu0 %v2841, 112
    %v3456 = vpop.permute.xlu0 %3455
    %3457 = vrot.lane.b32.xlu0 %v2842, 112
    %v3458 = vpop.permute.xlu0 %3457
    %v3461 = vsel %vm761, %v3387, 0
    %v3464 = vsel %vm761, %v3388, 0
    %v3467 = vsel %vm838, %v3458, 0
    %3469 = vmatprep.subr.bf16.mxu0 0
    %3470 = vmatpush1.bf16.msra.mxu0 %v3456
    %3471 = vmatprep.subr.bf16.mxu0 0
    %3472 = vmatpush1.bf16.msra.mxu0 %v3467
    %3473 = vmatprep.subr.bf16.mxu0 0
    %3474 = vmatpush1.bf16.msra.mxu0 0
    %3475 = vmatprep.subr.bf16.mxu0 0
    %3476 = vmatpush1.bf16.msra.mxu0 0
    %3477 = vmatprep.subr.bf16.mxu0 0
    %3478 = vmatpush1.bf16.msra.mxu0 0
    %3479 = vmatprep.subr.bf16.mxu0 0
    %3480 = vmatpush1.bf16.msra.mxu0 0
    %3481 = vmatprep.subr.bf16.mxu0 0
    %3482 = vmatpush1.bf16.msra.mxu0 0
    %3483 = vmatprep.subr.bf16.mxu0 0
    %3484 = vmatpush1.bf16.msra.mxu0 0
    %3485 = vmatprep.subr.bf16.mxu0 0
    %3486 = vmatpush1.bf16.msra.mxu0 0
    %3487 = vmatprep.subr.bf16.mxu0 0
    %3488 = vmatpush1.bf16.msra.mxu0 0
    %3489 = vmatprep.subr.bf16.mxu0 0
    %3490 = vmatpush1.bf16.msra.mxu0 0
    %3491 = vmatprep.subr.bf16.mxu0 0
    %3492 = vmatpush1.bf16.msra.mxu0 0
    %3493 = vmatprep.subr.bf16.mxu0 0
    %3494 = vmatpush1.bf16.msra.mxu0 0
    %3495 = vmatprep.subr.bf16.mxu0 0
    %3496 = vmatpush1.bf16.msra.mxu0 0
    %3497 = vmatprep.subr.bf16.mxu0 0
    %3498 = vmatpush1.bf16.msra.mxu0 0
    %3499 = vmatprep.subr.bf16.mxu0 0
    %3500 = vmatpush1.bf16.msra.mxu0 0
    %3501 = vmatprep.mubr.bf16.mxu0 0
    %3502 = vmatmul.mubr.bf16.gmra.mrb[0].mxu0 %v3461
    %v3503 = vpop.f32.mrb[0].mxu0
    %v3504 = vadd.f32 0.0, %v3503
    %v3505 = vpop.f32.mrb[0].mxu0
    %v3506 = vpop.f32.mrb[0].mxu0
    %v3507 = vadd.f32 0.0, %v3506
    %v3508 = vpop.f32.mrb[0].mxu0
    %3509 = vmatprep.mubr.bf16.mxu0 0
    %3510 = vmatmul.mubr.bf16.gmra.mrb[0].mxu0 %v3464
    %v3511 = vpop.f32.mrb[0].mxu0
    %v3512 = vadd.f32 0.0, %v3511
    %v3513 = vpop.f32.mrb[0].mxu0
    %v3514 = vpop.f32.mrb[0].mxu0
    %v3515 = vpop.f32.mrb[0].mxu0
    %3516 = vdwg.mxu0
    %3517 = vrot.lane.b32.xlu0 %v2835, 96
    %v3518 = vpop.permute.xlu0 %3517
    %3519 = vrot.lane.b32.xlu0 %v2836, 96
    %v3520 = vpop.permute.xlu0 %3519
    %3521 = vrot.lane.b32.xlu0 %v2835, 32
    %v3522 = vpop.permute.xlu0 %3521
    %3523 = vrot.lane.b32.xlu0 %v2836, 32
    %v3524 = vpop.permute.xlu0 %3523
    %v3526 = vsel %vm622, %v3518, 0
    %v3529 = vsel %vm622, %v3520, 0
    %v3532 = vsel %vm622, %v3522, 0
    %v3535 = vsel %vm622, %v3524, 0
    %3537 = vmatprep.subr.bf16.mxu0 0
    %3538 = vmatpush1.bf16.xpose.msra.mxu0 %v3532
    %3539 = vmatprep.subr.bf16.mxu0 0
    %3540 = vmatpush1.bf16.xpose.msra.mxu0 %v3535
    %3541 = vmatprep.subr.bf16.mxu0 0
    %3542 = vmatpush1.bf16.xpose.msra.mxu0 0
    %3543 = vmatprep.subr.bf16.mxu0 0
    %3544 = vmatpush1.bf16.xpose.msra.mxu0 0
    %3545 = vmatprep.subr.bf16.mxu0 0
    %3546 = vmatpush1.bf16.xpose.msra.mxu0 0
    %3547 = vmatprep.subr.bf16.mxu0 0
    %3548 = vmatpush1.bf16.xpose.msra.mxu0 0
    %3549 = vmatprep.subr.bf16.mxu0 0
    %3550 = vmatpush1.bf16.xpose.msra.mxu0 0
    %3551 = vmatprep.subr.bf16.mxu0 0
    %3552 = vmatpush1.bf16.xpose.msra.mxu0 0
    %3553 = vmatprep.subr.bf16.mxu0 0
    %3554 = vmatpush1.bf16.xpose.msra.mxu0 0
    %3555 = vmatprep.subr.bf16.mxu0 0
    %3556 = vmatpush1.bf16.xpose.msra.mxu0 0
    %3557 = vmatprep.subr.bf16.mxu0 0
    %3558 = vmatpush1.bf16.xpose.msra.mxu0 0
    %3559 = vmatprep.subr.bf16.mxu0 0
    %3560 = vmatpush1.bf16.xpose.msra.mxu0 0
    %3561 = vmatprep.subr.bf16.mxu0 0
    %3562 = vmatpush1.bf16.xpose.msra.mxu0 0
    %3563 = vmatprep.subr.bf16.mxu0 0
    %3564 = vmatpush1.bf16.xpose.msra.mxu0 0
    %3565 = vmatprep.subr.bf16.mxu0 0
    %3566 = vmatpush1.bf16.xpose.msra.mxu0 0
    %3567 = vmatprep.subr.bf16.mxu0 0
    %3568 = vmatpush1.bf16.xpose.msra.mxu0 0
    %3569 = vmatprep.mubr.bf16.mxu0 0
    %3570 = vmatmul.mubr.bf16.gmra.mrb[0].mxu0 %v3526
    %v3571 = vpop.f32.mrb[0].mxu0
    %v3572 = vadd.f32 0.0, %v3571
    %v3573 = vpop.f32.mrb[0].mxu0
    %v3574 = vpop.f32.mrb[0].mxu0
    %v3575 = vadd.f32 0.0, %v3574
    %v3576 = vpop.f32.mrb[0].mxu0
    %3577 = vmatprep.mubr.bf16.mxu0 0
    %3578 = vmatmul.mubr.bf16.gmra.mrb[0].mxu0 %v3529
    %v3579 = vpop.f32.mrb[0].mxu0
    %v3580 = vadd.f32 0.0, %v3579
    %v3581 = vpop.f32.mrb[0].mxu0
    %v3582 = vpop.f32.mrb[0].mxu0
    %v3583 = vpop.f32.mrb[0].mxu0
    %3584 = vdwg.mxu0
    %3585 = vrot.lane.b32.xlu0 %v2837, 96
    %v3586 = vpop.permute.xlu0 %3585
    %3587 = vrot.lane.b32.xlu0 %v2838, 96
    %v3588 = vpop.permute.xlu0 %3587
    %3589 = vrot.lane.b32.xlu0 %v2837, 32
    %v3590 = vpop.permute.xlu0 %3589
    %3591 = vrot.lane.b32.xlu0 %v2838, 32
    %v3592 = vpop.permute.xlu0 %3591
    %v3594 = vsel %vm622, %v3586, 0
    %v3597 = vsel %vm622, %v3588, 0
    %v3600 = vsel %vm622, %v3590, 0
    %v3603 = vsel %vm622, %v3592, 0
    %3605 = vmatprep.subr.bf16.mxu0 0
    %3606 = vmatpush1.bf16.xpose.msra.mxu0 %v3600
    %3607 = vmatprep.subr.bf16.mxu0 0
    %3608 = vmatpush1.bf16.xpose.msra.mxu0 %v3603
    %3609 = vmatprep.subr.bf16.mxu0 0
    %3610 = vmatpush1.bf16.xpose.msra.mxu0 0
    %3611 = vmatprep.subr.bf16.mxu0 0
    %3612 = vmatpush1.bf16.xpose.msra.mxu0 0
    %3613 = vmatprep.subr.bf16.mxu0 0
    %3614 = vmatpush1.bf16.xpose.msra.mxu0 0
    %3615 = vmatprep.subr.bf16.mxu0 0
    %3616 = vmatpush1.bf16.xpose.msra.mxu0 0
    %3617 = vmatprep.subr.bf16.mxu0 0
    %3618 = vmatpush1.bf16.xpose.msra.mxu0 0
    %3619 = vmatprep.subr.bf16.mxu0 0
    %3620 = vmatpush1.bf16.xpose.msra.mxu0 0
    %3621 = vmatprep.subr.bf16.mxu0 0
    %3622 = vmatpush1.bf16.xpose.msra.mxu0 0
    %3623 = vmatprep.subr.bf16.mxu0 0
    %3624 = vmatpush1.bf16.xpose.msra.mxu0 0
    %3625 = vmatprep.subr.bf16.mxu0 0
    %3626 = vmatpush1.bf16.xpose.msra.mxu0 0
    %3627 = vmatprep.subr.bf16.mxu0 0
    %3628 = vmatpush1.bf16.xpose.msra.mxu0 0
    %3629 = vmatprep.subr.bf16.mxu0 0
    %3630 = vmatpush1.bf16.xpose.msra.mxu0 0
    %3631 = vmatprep.subr.bf16.mxu0 0
    %3632 = vmatpush1.bf16.xpose.msra.mxu0 0
    %3633 = vmatprep.subr.bf16.mxu0 0
    %3634 = vmatpush1.bf16.xpose.msra.mxu0 0
    %3635 = vmatprep.subr.bf16.mxu0 0
    %3636 = vmatpush1.bf16.xpose.msra.mxu0 0
    %3637 = vmatprep.mubr.bf16.mxu0 0
    %3638 = vmatmul.mubr.bf16.gmra.mrb[0].mxu0 %v3594
    %v3639 = vpop.f32.mrb[0].mxu0
    %v3640 = vadd.f32 0.0, %v3639
    %v3641 = vpop.f32.mrb[0].mxu0
    %v3642 = vpop.f32.mrb[0].mxu0
    %v3643 = vadd.f32 0.0, %v3642
    %v3644 = vpop.f32.mrb[0].mxu0
    %3645 = vmatprep.mubr.bf16.mxu0 0
    %3646 = vmatmul.mubr.bf16.gmra.mrb[0].mxu0 %v3597
    %v3647 = vpop.f32.mrb[0].mxu0
    %v3648 = vadd.f32 0.0, %v3647
    %v3649 = vpop.f32.mrb[0].mxu0
    %v3650 = vpop.f32.mrb[0].mxu0
    %v3651 = vpop.f32.mrb[0].mxu0
    %3652 = vdwg.mxu0
    %v3653 = vmul.f32 %v3572, 0.25
    %v3654 = vmul.f32 %v3575, 0.25
    %v3655 = vmul.f32 %v3580, 0.25
    %v3656 = vmul.f32 %v3640, 0.25
    %v3657 = vmul.f32 %v3643, 0.25
    %v3658 = vmul.f32 %v3648, 0.25
    %v3659 = vadd.f32 %v3653, %v368
    %v3660 = vadd.f32 %v3654, %v368
    %v3661 = vadd.f32 %v3655, %v368
    %v3662 = vadd.f32 %v3656, %v368
    %v3663 = vadd.f32 %v3657, %v368
    %v3664 = vadd.f32 %v3658, %v368
    %v3665 = vsel %vm761, %v3659, -inf
    %3666 = vmax.xlane.f32.xlu0 %v3665
    %v3667 = vpop.xlane.xlu0 %3666
    %v3668 = vsel %vm761, %v3660, -inf
    %3669 = vmax.xlane.f32.xlu0 %v3668
    %v3670 = vpop.xlane.xlu0 %3669
    %v3671 = vsel %vm761, %v3661, -inf
    %3672 = vmax.xlane.f32.xlu0 %v3671
    %v3673 = vpop.xlane.xlu0 %3672
    %v3674 = vsel %vm761, %v3662, -inf
    %3675 = vmax.xlane.f32.xlu0 %v3674
    %v3676 = vpop.xlane.xlu0 %3675
    %v3677 = vsel %vm761, %v3663, -inf
    %3678 = vmax.xlane.f32.xlu0 %v3677
    %v3679 = vpop.xlane.xlu0 %3678
    %v3680 = vsel %vm761, %v3664, -inf
    %3681 = vmax.xlane.f32.xlu0 %v3680
    %v3682 = vpop.xlane.xlu0 %3681
    %v3683 = vsub.f32 %v3659, %v3667
    %v3684 = vsub.f32 %v3660, %v3670
    %v3685 = vsub.f32 %v3661, %v3673
    %v3686 = vsub.f32 %v3662, %v3676
    %v3687 = vsub.f32 %v3663, %v3679
    %v3688 = vsub.f32 %v3664, %v3682
    %v3689 = vmul.f32 %v3683, 1.442695
    %v3690 = vpow.pop %v3689
    %v3691 = vmul.f32 %v3684, 1.442695
    %v3692 = vpow.pop %v3691
    %v3693 = vmul.f32 %v3685, 1.442695
    %v3694 = vpow.pop %v3693
    %v3695 = vmul.f32 %v3686, 1.442695
    %v3696 = vpow.pop %v3695
    %v3697 = vmul.f32 %v3687, 1.442695
    %v3698 = vpow.pop %v3697
    %v3699 = vmul.f32 %v3688, 1.442695
    %v3700 = vpow.pop %v3699
    %v3701 = vsel %vm761, %v3690, 0.0
    %3702 = vadd.xlane.f32.xlu0 %v3701
    %v3703 = vpop.xlane.xlu0 %3702
    %v3704 = vsel %vm761, %v3692, 0.0
    %3705 = vadd.xlane.f32.xlu0 %v3704
    %v3706 = vpop.xlane.xlu0 %3705
    %v3707 = vsel %vm761, %v3694, 0.0
    %3708 = vadd.xlane.f32.xlu0 %v3707
    %v3709 = vpop.xlane.xlu0 %3708
    %v3710 = vsel %vm761, %v3696, 0.0
    %3711 = vadd.xlane.f32.xlu0 %v3710
    %v3712 = vpop.xlane.xlu0 %3711
    %v3713 = vsel %vm761, %v3698, 0.0
    %3714 = vadd.xlane.f32.xlu0 %v3713
    %v3715 = vpop.xlane.xlu0 %3714
    %v3716 = vsel %vm761, %v3700, 0.0
    %3717 = vadd.xlane.f32.xlu0 %v3716
    %v3718 = vpop.xlane.xlu0 %3717
    %v3719 = vrcp.pop %v3703
    %v3720 = vrcp.pop %v3706
    %v3721 = vrcp.pop %v3709
    %v3722 = vrcp.pop %v3712
    %v3723 = vrcp.pop %v3715
    %v3724 = vrcp.pop %v3718
    %v3725 = vmul.f32 %v3690, %v3719
    %v3726 = vmul.f32 %v3692, %v3720
    %v3727 = vmul.f32 %v3694, %v3721
    %v3728 = vmul.f32 %v3696, %v3722
    %v3729 = vmul.f32 %v3698, %v3723
    %v3730 = vmul.f32 %v3700, %v3724
    %v3731 = vpack.c.bf16 %v3726, %v3725
    %v3732 = vpack.c.bf16 %v3727, %v3727
    %v3733 = vpack.c.bf16 %v3729, %v3728
    %v3734 = vpack.c.bf16 %v3730, %v3730
    %3735 = vrot.lane.b32.xlu0 %v2839, 96
    %v3736 = vpop.permute.xlu0 %3735
    %3737 = vrot.lane.b32.xlu0 %v2840, 96
    %v3738 = vpop.permute.xlu0 %3737
    %v3741 = vsel %vm761, %v3731, 0
    %v3744 = vsel %vm761, %v3732, 0
    %v3747 = vsel %vm838, %v3738, 0
    %3749 = vmatprep.subr.bf16.mxu0 0
    %3750 = vmatpush1.bf16.msra.mxu0 %v3736
    %3751 = vmatprep.subr.bf16.mxu0 0
    %3752 = vmatpush1.bf16.msra.mxu0 %v3747
    %3753 = vmatprep.subr.bf16.mxu0 0
    %3754 = vmatpush1.bf16.msra.mxu0 0
    %3755 = vmatprep.subr.bf16.mxu0 0
    %3756 = vmatpush1.bf16.msra.mxu0 0
    %3757 = vmatprep.subr.bf16.mxu0 0
    %3758 = vmatpush1.bf16.msra.mxu0 0
    %3759 = vmatprep.subr.bf16.mxu0 0
    %3760 = vmatpush1.bf16.msra.mxu0 0
    %3761 = vmatprep.subr.bf16.mxu0 0
    %3762 = vmatpush1.bf16.msra.mxu0 0
    %3763 = vmatprep.subr.bf16.mxu0 0
    %3764 = vmatpush1.bf16.msra.mxu0 0
    %3765 = vmatprep.subr.bf16.mxu0 0
    %3766 = vmatpush1.bf16.msra.mxu0 0
    %3767 = vmatprep.subr.bf16.mxu0 0
    %3768 = vmatpush1.bf16.msra.mxu0 0
    %3769 = vmatprep.subr.bf16.mxu0 0
    %3770 = vmatpush1.bf16.msra.mxu0 0
    %3771 = vmatprep.subr.bf16.mxu0 0
    %3772 = vmatpush1.bf16.msra.mxu0 0
    %3773 = vmatprep.subr.bf16.mxu0 0
    %3774 = vmatpush1.bf16.msra.mxu0 0
    %3775 = vmatprep.subr.bf16.mxu0 0
    %3776 = vmatpush1.bf16.msra.mxu0 0
    %3777 = vmatprep.subr.bf16.mxu0 0
    %3778 = vmatpush1.bf16.msra.mxu0 0
    %3779 = vmatprep.subr.bf16.mxu0 0
    %3780 = vmatpush1.bf16.msra.mxu0 0
    %3781 = vmatprep.mubr.bf16.mxu0 0
    %3782 = vmatmul.mubr.bf16.gmra.mrb[0].mxu0 %v3741
    %v3783 = vpop.f32.mrb[0].mxu0
    %v3784 = vadd.f32 0.0, %v3783
    %v3785 = vpop.f32.mrb[0].mxu0
    %v3786 = vpop.f32.mrb[0].mxu0
    %v3787 = vadd.f32 0.0, %v3786
    %v3788 = vpop.f32.mrb[0].mxu0
    %3789 = vmatprep.mubr.bf16.mxu0 0
    %3790 = vmatmul.mubr.bf16.gmra.mrb[0].mxu0 %v3744
    %v3791 = vpop.f32.mrb[0].mxu0
    %v3792 = vadd.f32 0.0, %v3791
    %v3793 = vpop.f32.mrb[0].mxu0
    %v3794 = vpop.f32.mrb[0].mxu0
    %v3795 = vpop.f32.mrb[0].mxu0
    %3796 = vdwg.mxu0
    %3797 = vrot.lane.b32.xlu0 %v2841, 96
    %v3798 = vpop.permute.xlu0 %3797
    %3799 = vrot.lane.b32.xlu0 %v2842, 96
    %v3800 = vpop.permute.xlu0 %3799
    %v3803 = vsel %vm761, %v3733, 0
    %v3806 = vsel %vm761, %v3734, 0
    %v3809 = vsel %vm838, %v3800, 0
    %3811 = vmatprep.subr.bf16.mxu0 0
    %3812 = vmatpush1.bf16.msra.mxu0 %v3798
    %3813 = vmatprep.subr.bf16.mxu0 0
    %3814 = vmatpush1.bf16.msra.mxu0 %v3809
    %3815 = vmatprep.subr.bf16.mxu0 0
    %3816 = vmatpush1.bf16.msra.mxu0 0
    %3817 = vmatprep.subr.bf16.mxu0 0
    %3818 = vmatpush1.bf16.msra.mxu0 0
    %3819 = vmatprep.subr.bf16.mxu0 0
    %3820 = vmatpush1.bf16.msra.mxu0 0
    %3821 = vmatprep.subr.bf16.mxu0 0
    %3822 = vmatpush1.bf16.msra.mxu0 0
    %3823 = vmatprep.subr.bf16.mxu0 0
    %3824 = vmatpush1.bf16.msra.mxu0 0
    %3825 = vmatprep.subr.bf16.mxu0 0
    %3826 = vmatpush1.bf16.msra.mxu0 0
    %3827 = vmatprep.subr.bf16.mxu0 0
    %3828 = vmatpush1.bf16.msra.mxu0 0
    %3829 = vmatprep.subr.bf16.mxu0 0
    %3830 = vmatpush1.bf16.msra.mxu0 0
    %3831 = vmatprep.subr.bf16.mxu0 0
    %3832 = vmatpush1.bf16.msra.mxu0 0
    %3833 = vmatprep.subr.bf16.mxu0 0
    %3834 = vmatpush1.bf16.msra.mxu0 0
    %3835 = vmatprep.subr.bf16.mxu0 0
    %3836 = vmatpush1.bf16.msra.mxu0 0
    %3837 = vmatprep.subr.bf16.mxu0 0
    %3838 = vmatpush1.bf16.msra.mxu0 0
    %3839 = vmatprep.subr.bf16.mxu0 0
    %3840 = vmatpush1.bf16.msra.mxu0 0
    %3841 = vmatprep.subr.bf16.mxu0 0
    %3842 = vmatpush1.bf16.msra.mxu0 0
    %3843 = vmatprep.mubr.bf16.mxu0 0
    %3844 = vmatmul.mubr.bf16.gmra.mrb[0].mxu0 %v3803
    %v3845 = vpop.f32.mrb[0].mxu0
    %v3846 = vadd.f32 0.0, %v3845
    %v3847 = vpop.f32.mrb[0].mxu0
    %v3848 = vpop.f32.mrb[0].mxu0
    %v3849 = vadd.f32 0.0, %v3848
    %v3850 = vpop.f32.mrb[0].mxu0
    %3851 = vmatprep.mubr.bf16.mxu0 0
    %3852 = vmatmul.mubr.bf16.gmra.mrb[0].mxu0 %v3806
    %v3853 = vpop.f32.mrb[0].mxu0
    %v3854 = vadd.f32 0.0, %v3853
    %v3855 = vpop.f32.mrb[0].mxu0
    %v3856 = vpop.f32.mrb[0].mxu0
    %v3857 = vpop.f32.mrb[0].mxu0
    %3858 = vdwg.mxu0
    %3859 = vrot.lane.b32.xlu0 %v2835, 80
    %v3860 = vpop.permute.xlu0 %3859
    %3861 = vrot.lane.b32.xlu0 %v2836, 80
    %v3862 = vpop.permute.xlu0 %3861
    %3863 = vrot.lane.b32.xlu0 %v2835, 16
    %v3864 = vpop.permute.xlu0 %3863
    %3865 = vrot.lane.b32.xlu0 %v2836, 16
    %v3866 = vpop.permute.xlu0 %3865
    %v3868 = vsel %vm622, %v3860, 0
    %v3871 = vsel %vm622, %v3862, 0
    %v3874 = vsel %vm622, %v3864, 0
    %v3877 = vsel %vm622, %v3866, 0
    %3879 = vmatprep.subr.bf16.mxu0 0
    %3880 = vmatpush1.bf16.xpose.msra.mxu0 %v3874
    %3881 = vmatprep.subr.bf16.mxu0 0
    %3882 = vmatpush1.bf16.xpose.msra.mxu0 %v3877
    %3883 = vmatprep.subr.bf16.mxu0 0
    %3884 = vmatpush1.bf16.xpose.msra.mxu0 0
    %3885 = vmatprep.subr.bf16.mxu0 0
    %3886 = vmatpush1.bf16.xpose.msra.mxu0 0
    %3887 = vmatprep.subr.bf16.mxu0 0
    %3888 = vmatpush1.bf16.xpose.msra.mxu0 0
    %3889 = vmatprep.subr.bf16.mxu0 0
    %3890 = vmatpush1.bf16.xpose.msra.mxu0 0
    %3891 = vmatprep.subr.bf16.mxu0 0
    %3892 = vmatpush1.bf16.xpose.msra.mxu0 0
    %3893 = vmatprep.subr.bf16.mxu0 0
    %3894 = vmatpush1.bf16.xpose.msra.mxu0 0
    %3895 = vmatprep.subr.bf16.mxu0 0
    %3896 = vmatpush1.bf16.xpose.msra.mxu0 0
    %3897 = vmatprep.subr.bf16.mxu0 0
    %3898 = vmatpush1.bf16.xpose.msra.mxu0 0
    %3899 = vmatprep.subr.bf16.mxu0 0
    %3900 = vmatpush1.bf16.xpose.msra.mxu0 0
    %3901 = vmatprep.subr.bf16.mxu0 0
    %3902 = vmatpush1.bf16.xpose.msra.mxu0 0
    %3903 = vmatprep.subr.bf16.mxu0 0
    %3904 = vmatpush1.bf16.xpose.msra.mxu0 0
    %3905 = vmatprep.subr.bf16.mxu0 0
    %3906 = vmatpush1.bf16.xpose.msra.mxu0 0
    %3907 = vmatprep.subr.bf16.mxu0 0
    %3908 = vmatpush1.bf16.xpose.msra.mxu0 0
    %3909 = vmatprep.subr.bf16.mxu0 0
    %3910 = vmatpush1.bf16.xpose.msra.mxu0 0
    %3911 = vmatprep.mubr.bf16.mxu0 0
    %3912 = vmatmul.mubr.bf16.gmra.mrb[0].mxu0 %v3868
    %v3913 = vpop.f32.mrb[0].mxu0
    %v3914 = vadd.f32 0.0, %v3913
    %v3915 = vpop.f32.mrb[0].mxu0
    %v3916 = vpop.f32.mrb[0].mxu0
    %v3917 = vadd.f32 0.0, %v3916
    %v3918 = vpop.f32.mrb[0].mxu0
    %3919 = vmatprep.mubr.bf16.mxu0 0
    %3920 = vmatmul.mubr.bf16.gmra.mrb[0].mxu0 %v3871
    %v3921 = vpop.f32.mrb[0].mxu0
    %v3922 = vadd.f32 0.0, %v3921
    %v3923 = vpop.f32.mrb[0].mxu0
    %v3924 = vpop.f32.mrb[0].mxu0
    %v3925 = vpop.f32.mrb[0].mxu0
    %3926 = vdwg.mxu0
    %3927 = vrot.lane.b32.xlu0 %v2837, 80
    %v3928 = vpop.permute.xlu0 %3927
    %3929 = vrot.lane.b32.xlu0 %v2838, 80
    %v3930 = vpop.permute.xlu0 %3929
    %3931 = vrot.lane.b32.xlu0 %v2837, 16
    %v3932 = vpop.permute.xlu0 %3931
    %3933 = vrot.lane.b32.xlu0 %v2838, 16
    %v3934 = vpop.permute.xlu0 %3933
    %v3936 = vsel %vm622, %v3928, 0
    %v3939 = vsel %vm622, %v3930, 0
    %v3942 = vsel %vm622, %v3932, 0
    %v3945 = vsel %vm622, %v3934, 0
    %3947 = vmatprep.subr.bf16.mxu0 0
    %3948 = vmatpush1.bf16.xpose.msra.mxu0 %v3942
    %3949 = vmatprep.subr.bf16.mxu0 0
    %3950 = vmatpush1.bf16.xpose.msra.mxu0 %v3945
    %3951 = vmatprep.subr.bf16.mxu0 0
    %3952 = vmatpush1.bf16.xpose.msra.mxu0 0
    %3953 = vmatprep.subr.bf16.mxu0 0
    %3954 = vmatpush1.bf16.xpose.msra.mxu0 0
    %3955 = vmatprep.subr.bf16.mxu0 0
    %3956 = vmatpush1.bf16.xpose.msra.mxu0 0
    %3957 = vmatprep.subr.bf16.mxu0 0
    %3958 = vmatpush1.bf16.xpose.msra.mxu0 0
    %3959 = vmatprep.subr.bf16.mxu0 0
    %3960 = vmatpush1.bf16.xpose.msra.mxu0 0
    %3961 = vmatprep.subr.bf16.mxu0 0
    %3962 = vmatpush1.bf16.xpose.msra.mxu0 0
    %3963 = vmatprep.subr.bf16.mxu0 0
    %3964 = vmatpush1.bf16.xpose.msra.mxu0 0
    %3965 = vmatprep.subr.bf16.mxu0 0
    %3966 = vmatpush1.bf16.xpose.msra.mxu0 0
    %3967 = vmatprep.subr.bf16.mxu0 0
    %3968 = vmatpush1.bf16.xpose.msra.mxu0 0
    %3969 = vmatprep.subr.bf16.mxu0 0
    %3970 = vmatpush1.bf16.xpose.msra.mxu0 0
    %3971 = vmatprep.subr.bf16.mxu0 0
    %3972 = vmatpush1.bf16.xpose.msra.mxu0 0
    %3973 = vmatprep.subr.bf16.mxu0 0
    %3974 = vmatpush1.bf16.xpose.msra.mxu0 0
    %3975 = vmatprep.subr.bf16.mxu0 0
    %3976 = vmatpush1.bf16.xpose.msra.mxu0 0
    %3977 = vmatprep.subr.bf16.mxu0 0
    %3978 = vmatpush1.bf16.xpose.msra.mxu0 0
    %3979 = vmatprep.mubr.bf16.mxu0 0
    %3980 = vmatmul.mubr.bf16.gmra.mrb[0].mxu0 %v3936
    %v3981 = vpop.f32.mrb[0].mxu0
    %v3982 = vadd.f32 0.0, %v3981
    %v3983 = vpop.f32.mrb[0].mxu0
    %v3984 = vpop.f32.mrb[0].mxu0
    %v3985 = vadd.f32 0.0, %v3984
    %v3986 = vpop.f32.mrb[0].mxu0
    %3987 = vmatprep.mubr.bf16.mxu0 0
    %3988 = vmatmul.mubr.bf16.gmra.mrb[0].mxu0 %v3939
    %v3989 = vpop.f32.mrb[0].mxu0
    %v3990 = vadd.f32 0.0, %v3989
    %v3991 = vpop.f32.mrb[0].mxu0
    %v3992 = vpop.f32.mrb[0].mxu0
    %v3993 = vpop.f32.mrb[0].mxu0
    %3994 = vdwg.mxu0
    %v3995 = vmul.f32 %v3914, 0.25
    %v3996 = vmul.f32 %v3917, 0.25
    %v3997 = vmul.f32 %v3922, 0.25
    %v3998 = vmul.f32 %v3982, 0.25
    %v3999 = vmul.f32 %v3985, 0.25
    %v4000 = vmul.f32 %v3990, 0.25
    %v4001 = vadd.f32 %v3995, %v368
    %v4002 = vadd.f32 %v3996, %v368
    %v4003 = vadd.f32 %v3997, %v368
    %v4004 = vadd.f32 %v3998, %v368
    %v4005 = vadd.f32 %v3999, %v368
    %v4006 = vadd.f32 %v4000, %v368
    %v4007 = vsel %vm761, %v4001, -inf
    %4008 = vmax.xlane.f32.xlu0 %v4007
    %v4009 = vpop.xlane.xlu0 %4008
    %v4010 = vsel %vm761, %v4002, -inf
    %4011 = vmax.xlane.f32.xlu0 %v4010
    %v4012 = vpop.xlane.xlu0 %4011
    %v4013 = vsel %vm761, %v4003, -inf
    %4014 = vmax.xlane.f32.xlu0 %v4013
    %v4015 = vpop.xlane.xlu0 %4014
    %v4016 = vsel %vm761, %v4004, -inf
    %4017 = vmax.xlane.f32.xlu0 %v4016
    %v4018 = vpop.xlane.xlu0 %4017
    %v4019 = vsel %vm761, %v4005, -inf
    %4020 = vmax.xlane.f32.xlu0 %v4019
    %v4021 = vpop.xlane.xlu0 %4020
    %v4022 = vsel %vm761, %v4006, -inf
    %4023 = vmax.xlane.f32.xlu0 %v4022
    %v4024 = vpop.xlane.xlu0 %4023
    %v4025 = vsub.f32 %v4001, %v4009
    %v4026 = vsub.f32 %v4002, %v4012
    %v4027 = vsub.f32 %v4003, %v4015
    %v4028 = vsub.f32 %v4004, %v4018
    %v4029 = vsub.f32 %v4005, %v4021
    %v4030 = vsub.f32 %v4006, %v4024
    %v4031 = vmul.f32 %v4025, 1.442695
    %v4032 = vpow.pop %v4031
    %v4033 = vmul.f32 %v4026, 1.442695
    %v4034 = vpow.pop %v4033
    %v4035 = vmul.f32 %v4027, 1.442695
    %v4036 = vpow.pop %v4035
    %v4037 = vmul.f32 %v4028, 1.442695
    %v4038 = vpow.pop %v4037
    %v4039 = vmul.f32 %v4029, 1.442695
    %v4040 = vpow.pop %v4039
    %v4041 = vmul.f32 %v4030, 1.442695
    %v4042 = vpow.pop %v4041
    %v4043 = vsel %vm761, %v4032, 0.0
    %4044 = vadd.xlane.f32.xlu0 %v4043
    %v4045 = vpop.xlane.xlu0 %4044
    %v4046 = vsel %vm761, %v4034, 0.0
    %4047 = vadd.xlane.f32.xlu0 %v4046
    %v4048 = vpop.xlane.xlu0 %4047
    %v4049 = vsel %vm761, %v4036, 0.0
    %4050 = vadd.xlane.f32.xlu0 %v4049
    %v4051 = vpop.xlane.xlu0 %4050
    %v4052 = vsel %vm761, %v4038, 0.0
    %4053 = vadd.xlane.f32.xlu0 %v4052
    %v4054 = vpop.xlane.xlu0 %4053
    %v4055 = vsel %vm761, %v4040, 0.0
    %4056 = vadd.xlane.f32.xlu0 %v4055
    %v4057 = vpop.xlane.xlu0 %4056
    %v4058 = vsel %vm761, %v4042, 0.0
    %4059 = vadd.xlane.f32.xlu0 %v4058
    %v4060 = vpop.xlane.xlu0 %4059
    %v4061 = vrcp.pop %v4045
    %v4062 = vrcp.pop %v4048
    %v4063 = vrcp.pop %v4051
    %v4064 = vrcp.pop %v4054
    %v4065 = vrcp.pop %v4057
    %v4066 = vrcp.pop %v4060
    %v4067 = vmul.f32 %v4032, %v4061
    %v4068 = vmul.f32 %v4034, %v4062
    %v4069 = vmul.f32 %v4036, %v4063
    %v4070 = vmul.f32 %v4038, %v4064
    %v4071 = vmul.f32 %v4040, %v4065
    %v4072 = vmul.f32 %v4042, %v4066
    %v4073 = vpack.c.bf16 %v4068, %v4067
    %v4074 = vpack.c.bf16 %v4069, %v4069
    %v4075 = vpack.c.bf16 %v4071, %v4070
    %v4076 = vpack.c.bf16 %v4072, %v4072
    %4077 = vrot.lane.b32.xlu0 %v2839, 80
    %v4078 = vpop.permute.xlu0 %4077
    %4079 = vrot.lane.b32.xlu0 %v2840, 80
    %v4080 = vpop.permute.xlu0 %4079
    %v4083 = vsel %vm761, %v4073, 0
    %v4086 = vsel %vm761, %v4074, 0
    %v4089 = vsel %vm838, %v4080, 0
    %4091 = vmatprep.subr.bf16.mxu0 0
    %4092 = vmatpush1.bf16.msra.mxu0 %v4078
    %4093 = vmatprep.subr.bf16.mxu0 0
    %4094 = vmatpush1.bf16.msra.mxu0 %v4089
    %4095 = vmatprep.subr.bf16.mxu0 0
    %4096 = vmatpush1.bf16.msra.mxu0 0
    %4097 = vmatprep.subr.bf16.mxu0 0
    %4098 = vmatpush1.bf16.msra.mxu0 0
    %4099 = vmatprep.subr.bf16.mxu0 0
    %4100 = vmatpush1.bf16.msra.mxu0 0
    %4101 = vmatprep.subr.bf16.mxu0 0
    %4102 = vmatpush1.bf16.msra.mxu0 0
    %4103 = vmatprep.subr.bf16.mxu0 0
    %4104 = vmatpush1.bf16.msra.mxu0 0
    %4105 = vmatprep.subr.bf16.mxu0 0
    %4106 = vmatpush1.bf16.msra.mxu0 0
    %4107 = vmatprep.subr.bf16.mxu0 0
    %4108 = vmatpush1.bf16.msra.mxu0 0
    %4109 = vmatprep.subr.bf16.mxu0 0
    %4110 = vmatpush1.bf16.msra.mxu0 0
    %4111 = vmatprep.subr.bf16.mxu0 0
    %4112 = vmatpush1.bf16.msra.mxu0 0
    %4113 = vmatprep.subr.bf16.mxu0 0
    %4114 = vmatpush1.bf16.msra.mxu0 0
    %4115 = vmatprep.subr.bf16.mxu0 0
    %4116 = vmatpush1.bf16.msra.mxu0 0
    %4117 = vmatprep.subr.bf16.mxu0 0
    %4118 = vmatpush1.bf16.msra.mxu0 0
    %4119 = vmatprep.subr.bf16.mxu0 0
    %4120 = vmatpush1.bf16.msra.mxu0 0
    %4121 = vmatprep.subr.bf16.mxu0 0
    %4122 = vmatpush1.bf16.msra.mxu0 0
    %4123 = vmatprep.mubr.bf16.mxu0 0
    %4124 = vmatmul.mubr.bf16.gmra.mrb[0].mxu0 %v4083
    %v4125 = vpop.f32.mrb[0].mxu0
    %v4126 = vadd.f32 0.0, %v4125
    %v4127 = vpop.f32.mrb[0].mxu0
    %v4128 = vpop.f32.mrb[0].mxu0
    %v4129 = vadd.f32 0.0, %v4128
    %v4130 = vpop.f32.mrb[0].mxu0
    %4131 = vmatprep.mubr.bf16.mxu0 0
    %4132 = vmatmul.mubr.bf16.gmra.mrb[0].mxu0 %v4086
    %v4133 = vpop.f32.mrb[0].mxu0
    %v4134 = vadd.f32 0.0, %v4133
    %v4135 = vpop.f32.mrb[0].mxu0
    %v4136 = vpop.f32.mrb[0].mxu0
    %v4137 = vpop.f32.mrb[0].mxu0
    %4138 = vdwg.mxu0
    %4139 = vrot.lane.b32.xlu0 %v2841, 80
    %v4140 = vpop.permute.xlu0 %4139
    %4141 = vrot.lane.b32.xlu0 %v2842, 80
    %v4142 = vpop.permute.xlu0 %4141
    %v4145 = vsel %vm761, %v4075, 0
    %v4148 = vsel %vm761, %v4076, 0
    %v4151 = vsel %vm838, %v4142, 0
    %4153 = vmatprep.subr.bf16.mxu0 0
    %4154 = vmatpush1.bf16.msra.mxu0 %v4140
    %4155 = vmatprep.subr.bf16.mxu0 0
    %4156 = vmatpush1.bf16.msra.mxu0 %v4151
    %4157 = vmatprep.subr.bf16.mxu0 0
    %4158 = vmatpush1.bf16.msra.mxu0 0
    %4159 = vmatprep.subr.bf16.mxu0 0
    %4160 = vmatpush1.bf16.msra.mxu0 0
    %4161 = vmatprep.subr.bf16.mxu0 0
    %4162 = vmatpush1.bf16.msra.mxu0 0
    %4163 = vmatprep.subr.bf16.mxu0 0
    %4164 = vmatpush1.bf16.msra.mxu0 0
    %4165 = vmatprep.subr.bf16.mxu0 0
    %4166 = vmatpush1.bf16.msra.mxu0 0
    %4167 = vmatprep.subr.bf16.mxu0 0
    %4168 = vmatpush1.bf16.msra.mxu0 0
    %4169 = vmatprep.subr.bf16.mxu0 0
    %4170 = vmatpush1.bf16.msra.mxu0 0
    %4171 = vmatprep.subr.bf16.mxu0 0
    %4172 = vmatpush1.bf16.msra.mxu0 0
    %4173 = vmatprep.subr.bf16.mxu0 0
    %4174 = vmatpush1.bf16.msra.mxu0 0
    %4175 = vmatprep.subr.bf16.mxu0 0
    %4176 = vmatpush1.bf16.msra.mxu0 0
    %4177 = vmatprep.subr.bf16.mxu0 0
    %4178 = vmatpush1.bf16.msra.mxu0 0
    %4179 = vmatprep.subr.bf16.mxu0 0
    %4180 = vmatpush1.bf16.msra.mxu0 0
    %4181 = vmatprep.subr.bf16.mxu0 0
    %4182 = vmatpush1.bf16.msra.mxu0 0
    %4183 = vmatprep.subr.bf16.mxu0 0
    %4184 = vmatpush1.bf16.msra.mxu0 0
    %4185 = vmatprep.mubr.bf16.mxu0 0
    %4186 = vmatmul.mubr.bf16.gmra.mrb[0].mxu0 %v4145
    %v4187 = vpop.f32.mrb[0].mxu0
    %v4188 = vadd.f32 0.0, %v4187
    %v4189 = vpop.f32.mrb[0].mxu0
    %v4190 = vpop.f32.mrb[0].mxu0
    %v4191 = vadd.f32 0.0, %v4190
    %v4192 = vpop.f32.mrb[0].mxu0
    %4193 = vmatprep.mubr.bf16.mxu0 0
    %4194 = vmatmul.mubr.bf16.gmra.mrb[0].mxu0 %v4148
    %v4195 = vpop.f32.mrb[0].mxu0
    %v4196 = vadd.f32 0.0, %v4195
    %v4197 = vpop.f32.mrb[0].mxu0
    %v4198 = vpop.f32.mrb[0].mxu0
    %v4199 = vpop.f32.mrb[0].mxu0
    %4200 = vdwg.mxu0
    %4207 = vrot.lane.b32.xlu0 %v3440, 16
    %v4208 = vpop.permute.xlu0 %4207
    %4209 = vrot.lane.b32.xlu0 %v3443, 16
    %v4210 = vpop.permute.xlu0 %4209
    %4211 = vrot.lane.b32.xlu0 %v3448, 16
    %v4212 = vpop.permute.xlu0 %4211
    %4213 = vrot.lane.b32.xlu0 %v3504, 16
    %v4214 = vpop.permute.xlu0 %4213
    %4215 = vrot.lane.b32.xlu0 %v3507, 16
    %v4216 = vpop.permute.xlu0 %4215
    %4217 = vrot.lane.b32.xlu0 %v3512, 16
    %v4218 = vpop.permute.xlu0 %4217
    %4231 = vrot.lane.b32.xlu0 %v3784, 32
    %v4232 = vpop.permute.xlu0 %4231
    %4233 = vrot.lane.b32.xlu0 %v3787, 32
    %v4234 = vpop.permute.xlu0 %4233
    %4235 = vrot.lane.b32.xlu0 %v3792, 32
    %v4236 = vpop.permute.xlu0 %4235
    %4237 = vrot.lane.b32.xlu0 %v3846, 32
    %v4238 = vpop.permute.xlu0 %4237
    %4239 = vrot.lane.b32.xlu0 %v3849, 32
    %v4240 = vpop.permute.xlu0 %4239
    %4241 = vrot.lane.b32.xlu0 %v3854, 32
    %v4242 = vpop.permute.xlu0 %4241
    %4255 = vrot.lane.b32.xlu0 %v4126, 48
    %v4256 = vpop.permute.xlu0 %4255
    %4257 = vrot.lane.b32.xlu0 %v4129, 48
    %v4258 = vpop.permute.xlu0 %4257
    %4259 = vrot.lane.b32.xlu0 %v4134, 48
    %v4260 = vpop.permute.xlu0 %4259
    %4261 = vrot.lane.b32.xlu0 %v4188, 48
    %v4262 = vpop.permute.xlu0 %4261
    %4263 = vrot.lane.b32.xlu0 %v4191, 48
    %v4264 = vpop.permute.xlu0 %4263
    %4265 = vrot.lane.b32.xlu0 %v4196, 48
    %v4266 = vpop.permute.xlu0 %4265
    %v4273 = vsel %vm622, %v3101, %v4208
    %v4274 = vsel %vm622, %v3104, %v4210
    %v4275 = vsel %vm622, %v3109, %v4212
    %v4276 = vsel %vm622, %v3158, %v4214
    %v4277 = vsel %vm622, %v3161, %v4216
    %v4278 = vsel %vm622, %v3166, %v4218
    %v4279 = vsel %vm2055, %v4273, %v4232
    %v4280 = vsel %vm2055, %v4274, %v4234
    %v4281 = vsel %vm2055, %v4275, %v4236
    %v4282 = vsel %vm2055, %v4276, %v4238
    %v4283 = vsel %vm2055, %v4277, %v4240
    %v4284 = vsel %vm2055, %v4278, %v4242
    %v4285 = vsel %vm2062, %v4279, %v4256
    %v4286 = vsel %vm2062, %v4280, %v4258
    %v4287 = vsel %vm2062, %v4281, %v4260
    %v4288 = vsel %vm2062, %v4282, %v4262
    %v4289 = vsel %vm2062, %v4283, %v4264
    %v4290 = vsel %vm2062, %v4284, %v4266
    %s4291 = scalar_lea.vmem %s9, 32
    %v4292 = vld [vmem:[%s4291] sm:$0xf]
    %v4293 = vld [vmem:[%s4291 + $0x4] sm:$0xf]
    %v4294 = vld [vmem:[%s4291 + $0x8] sm:$0xf]
    %v4295 = vld [vmem:[%s4291 + $0xc] sm:$0xf]
    %v4296 = vld [vmem:[%s4291 + $0x10] sm:$0xf]
    %v4297 = vld [vmem:[%s4291 + $0x14] sm:$0xf]
    %v4298 = vld [vmem:[%s4291 + $0x18] sm:$0xf]
    %v4299 = vld [vmem:[%s4291 + $0x1c] sm:$0xf]
    %v4300 = vpack.c.bf16 %v4286, %v4285
    %v4301 = vpack.c.bf16 %v4288, %v4287
    %v4302 = vpack.c.bf16 %v4290, %v4289
    %v4311 = vunpack.c.l.b16 %v4292
    %v4312 = vunpack.c.l.b16 %v4293
    %v4313 = vunpack.c.l.b16 %v4294
    %v4314 = vunpack.c.l.b16 %v4295
    %v4315 = vunpack.c.l.b16 %v4296
    %v4316 = vunpack.c.l.b16 %v4297
    %v4317 = vunpack.c.l.b16 %v4298
    %v4318 = vunpack.c.l.b16 %v4299
    %v4319 = vpack.c.b16 %v4312, %v4311
    %v4320 = vpack.c.b16 %v4314, %v4313
    %v4321 = vpack.c.b16 %v4316, %v4315
    %v4322 = vpack.c.b16 %v4318, %v4317
    %v4328 = vsel %vm178, %v4300, 0
    %v4331 = vsel %vm178, %v4301, 0
    %v4334 = vsel %vm178, %v4302, 0
    %4336 = vmatprep.subr.bf16.mxu0 0
    %4337 = vmatpush1.bf16.msra.mxu0 %v4319
    %4338 = vmatprep.subr.bf16.mxu0 0
    %4339 = vmatpush1.bf16.msra.mxu0 %v4320
    %4340 = vmatprep.subr.bf16.mxu0 0
    %4341 = vmatpush1.bf16.msra.mxu0 %v4321
    %4342 = vmatprep.subr.bf16.mxu0 0
    %4343 = vmatpush1.bf16.msra.mxu0 %v4322
    %4344 = vmatprep.subr.bf16.mxu0 0
    %4345 = vmatpush1.bf16.msra.mxu0 0
    %4346 = vmatprep.subr.bf16.mxu0 0
    %4347 = vmatpush1.bf16.msra.mxu0 0
    %4348 = vmatprep.subr.bf16.mxu0 0
    %4349 = vmatpush1.bf16.msra.mxu0 0
    %4350 = vmatprep.subr.bf16.mxu0 0
    %4351 = vmatpush1.bf16.msra.mxu0 0
    %4352 = vmatprep.subr.bf16.mxu0 0
    %4353 = vmatpush1.bf16.msra.mxu0 0
    %4354 = vmatprep.subr.bf16.mxu0 0
    %4355 = vmatpush1.bf16.msra.mxu0 0
    %4356 = vmatprep.subr.bf16.mxu0 0
    %4357 = vmatpush1.bf16.msra.mxu0 0
    %4358 = vmatprep.subr.bf16.mxu0 0
    %4359 = vmatpush1.bf16.msra.mxu0 0
    %4360 = vmatprep.subr.bf16.mxu0 0
    %4361 = vmatpush1.bf16.msra.mxu0 0
    %4362 = vmatprep.subr.bf16.mxu0 0
    %4363 = vmatpush1.bf16.msra.mxu0 0
    %4364 = vmatprep.subr.bf16.mxu0 0
    %4365 = vmatpush1.bf16.msra.mxu0 0
    %4366 = vmatprep.subr.bf16.mxu0 0
    %4367 = vmatpush1.bf16.msra.mxu0 0
    %4368 = vmatprep.mubr.bf16.mxu0 0
    %4369 = vmatmul.mubr.bf16.gmra.mrb[0].mxu0 %v4328
    %v4370 = vpop.f32.mrb[0].mxu0
    %v4371 = vadd.f32 0.0, %v4370
    %v4372 = vpop.f32.mrb[0].mxu0
    %v4373 = vpop.f32.mrb[0].mxu0
    %v4374 = vadd.f32 0.0, %v4373
    %v4375 = vpop.f32.mrb[0].mxu0
    %4376 = vmatprep.mubr.bf16.mxu0 0
    %4377 = vmatmul.mubr.bf16.gmra.mrb[0].mxu0 %v4331
    %v4378 = vpop.f32.mrb[0].mxu0
    %v4379 = vadd.f32 0.0, %v4378
    %v4380 = vpop.f32.mrb[0].mxu0
    %v4381 = vpop.f32.mrb[0].mxu0
    %v4382 = vadd.f32 0.0, %v4381
    %v4383 = vpop.f32.mrb[0].mxu0
    %4384 = vmatprep.mubr.bf16.mxu0 0
    %4385 = vmatmul.mubr.bf16.gmra.mrb[0].mxu0 %v4334
    %v4386 = vpop.f32.mrb[0].mxu0
    %v4387 = vadd.f32 0.0, %v4386
    %v4388 = vpop.f32.mrb[0].mxu0
    %v4389 = vpop.f32.mrb[0].mxu0
    %v4390 = vadd.f32 0.0, %v4389
    %v4391 = vpop.f32.mrb[0].mxu0
    %4392 = vdwg.mxu0
    %v4393 = vadd.f32 %v2586, %v4371
    %v4394 = vadd.f32 %v2587, %v4374
    %v4395 = vadd.f32 %v2588, %v4379
    %v4396 = vadd.f32 %v2589, %v4382
    %v4397 = vadd.f32 %v2590, %v4387
    %v4398 = vadd.f32 %v2591, %v4390
    %s4399 = scalar_lea.vmem %s10, 1
    %v4400 = vld [vmem:[%s4399] sm:$0x1]
    %v4402 = vlaneseq
    %v4403 = vshrl.u32 %v4402, 7
    %v4404 = vsub.s32 0, %v4403
    %v4405 = vrot.slane %v4400, %v4404
    %v4407 = vadd.f32 %v4393, %v4405
    %v4408 = vadd.f32 %v4394, %v4405
    %v4409 = vadd.f32 %v4395, %v4405
    %v4410 = vadd.f32 %v4396, %v4405
    %v4411 = vadd.f32 %v4397, %v4405
    %v4412 = vadd.f32 %v4398, %v4405
    %s4413 = scalar_lea.vmem %s11, 1
    %v4414 = vld [vmem:[%s4413] sm:$0x1]
    %s4415 = scalar_lea.vmem %s12, 1
    %v4416 = vld [vmem:[%s4415] sm:$0x1]
    %v4417 = vsel %vm178, %v4407, 0.0
    %4418 = vadd.xlane.f32.xlu0 %v4417
    %v4419 = vpop.xlane.xlu0 %4418
    %v4420 = vsel %vm178, %v4408, 0.0
    %4421 = vadd.xlane.f32.xlu0 %v4420
    %v4422 = vpop.xlane.xlu0 %4421
    %v4423 = vsel %vm178, %v4409, 0.0
    %4424 = vadd.xlane.f32.xlu0 %v4423
    %v4425 = vpop.xlane.xlu0 %4424
    %v4426 = vsel %vm178, %v4410, 0.0
    %4427 = vadd.xlane.f32.xlu0 %v4426
    %v4428 = vpop.xlane.xlu0 %4427
    %v4429 = vsel %vm178, %v4411, 0.0
    %4430 = vadd.xlane.f32.xlu0 %v4429
    %v4431 = vpop.xlane.xlu0 %4430
    %v4432 = vsel %vm178, %v4412, 0.0
    %4433 = vadd.xlane.f32.xlu0 %v4432
    %v4434 = vpop.xlane.xlu0 %4433
    %v4435 = vmul.f32 %v4419, %v280
    %v4436 = vmul.f32 %v4422, %v280
    %v4437 = vmul.f32 %v4425, %v280
    %v4438 = vmul.f32 %v4428, %v280
    %v4439 = vmul.f32 %v4431, %v280
    %v4440 = vmul.f32 %v4434, %v280
    %v4441 = vsub.f32 %v4407, %v4435
    %v4442 = vsub.f32 %v4408, %v4436
    %v4443 = vsub.f32 %v4409, %v4437
    %v4444 = vsub.f32 %v4410, %v4438
    %v4445 = vsub.f32 %v4411, %v4439
    %v4446 = vsub.f32 %v4412, %v4440
    %v4447 = vmul.f32 %v4441, %v4441
    %v4448 = vmul.f32 %v4442, %v4442
    %v4449 = vmul.f32 %v4443, %v4443
    %v4450 = vmul.f32 %v4444, %v4444
    %v4451 = vmul.f32 %v4445, %v4445
    %v4452 = vmul.f32 %v4446, %v4446
    %v4453 = vsel %vm178, %v4447, 0.0
    %4454 = vadd.xlane.f32.xlu0 %v4453
    %v4455 = vpop.xlane.xlu0 %4454
    %v4456 = vsel %vm178, %v4448, 0.0
    %4457 = vadd.xlane.f32.xlu0 %v4456
    %v4458 = vpop.xlane.xlu0 %4457
    %v4459 = vsel %vm178, %v4449, 0.0
    %4460 = vadd.xlane.f32.xlu0 %v4459
    %v4461 = vpop.xlane.xlu0 %4460
    %v4462 = vsel %vm178, %v4450, 0.0
    %4463 = vadd.xlane.f32.xlu0 %v4462
    %v4464 = vpop.xlane.xlu0 %4463
    %v4465 = vsel %vm178, %v4451, 0.0
    %4466 = vadd.xlane.f32.xlu0 %v4465
    %v4467 = vpop.xlane.xlu0 %4466
    %v4468 = vsel %vm178, %v4452, 0.0
    %4469 = vadd.xlane.f32.xlu0 %v4468
    %v4470 = vpop.xlane.xlu0 %4469
    %v4471 = vmul.f32 %v4455, %v280
    %v4472 = vmul.f32 %v4458, %v280
    %v4473 = vmul.f32 %v4461, %v280
    %v4474 = vmul.f32 %v4464, %v280
    %v4475 = vmul.f32 %v4467, %v280
    %v4476 = vmul.f32 %v4470, %v280
    %v4477 = vadd.f32 %v4471, 1e-05
    %v4478 = vadd.f32 %v4472, 1e-05
    %v4479 = vadd.f32 %v4473, 1e-05
    %v4480 = vadd.f32 %v4474, 1e-05
    %v4481 = vadd.f32 %v4475, 1e-05
    %v4482 = vadd.f32 %v4476, 1e-05
    %v4483 = vrsqrt.pop %v4477
    %v4484 = vrsqrt.pop %v4478
    %v4485 = vrsqrt.pop %v4479
    %v4486 = vrsqrt.pop %v4480
    %v4487 = vrsqrt.pop %v4481
    %v4488 = vrsqrt.pop %v4482
    %v4489 = vmul.f32 %v4441, %v4483
    %v4490 = vmul.f32 %v4442, %v4484
    %v4491 = vmul.f32 %v4443, %v4485
    %v4492 = vmul.f32 %v4444, %v4486
    %v4493 = vmul.f32 %v4445, %v4487
    %v4494 = vmul.f32 %v4446, %v4488
    %v4496 = vlaneseq
    %v4497 = vshrl.u32 %v4496, 7
    %v4498 = vsub.s32 0, %v4497
    %v4499 = vrot.slane %v4414, %v4498
    %v4501 = vmul.f32 %v4489, %v4499
    %v4502 = vmul.f32 %v4490, %v4499
    %v4503 = vmul.f32 %v4491, %v4499
    %v4504 = vmul.f32 %v4492, %v4499
    %v4505 = vmul.f32 %v4493, %v4499
    %v4506 = vmul.f32 %v4494, %v4499
    %v4508 = vlaneseq
    %v4509 = vshrl.u32 %v4508, 7
    %v4510 = vsub.s32 0, %v4509
    %v4511 = vrot.slane %v4416, %v4510
    %v4513 = vadd.f32 %v4501, %v4511
    %v4514 = vadd.f32 %v4502, %v4511
    %v4515 = vadd.f32 %v4503, %v4511
    %v4516 = vadd.f32 %v4504, %v4511
    %v4517 = vadd.f32 %v4505, %v4511
    %v4518 = vadd.f32 %v4506, %v4511
    %s4519 = scalar_lea.vmem %s13, 32
    %v4520 = vld [vmem:[%s4519] sm:$0xf]
    %v4521 = vld [vmem:[%s4519 + $0x4] sm:$0xf]
    %v4522 = vld [vmem:[%s4519 + $0x8] sm:$0xf]
    %v4523 = vld [vmem:[%s4519 + $0xc] sm:$0xf]
    %v4524 = vld [vmem:[%s4519 + $0x10] sm:$0xf]
    %v4525 = vld [vmem:[%s4519 + $0x14] sm:$0xf]
    %v4526 = vld [vmem:[%s4519 + $0x18] sm:$0xf]
    %v4527 = vld [vmem:[%s4519 + $0x1c] sm:$0xf]
    %v4528 = vpack.c.bf16 %v4514, %v4513
    %v4529 = vpack.c.bf16 %v4516, %v4515
    %v4530 = vpack.c.bf16 %v4518, %v4517
    %s4531 = scalar_lea.vmem %s14, 1
    %v4532 = vld [vmem:[%s4531] sm:$0x1]
    %v4534 = vlaneseq
    %v4535 = vshrl.u32 %v4534, 7
    %v4536 = vsub.s32 0, %v4535
    %v4537 = vrot.slane %v4532, %v4536
    %v4547 = vunpack.c.l.b16 %v4520
    %v4548 = vunpack.c.l.b16 %v4521
    %v4549 = vunpack.c.l.b16 %v4522
    %v4550 = vunpack.c.l.b16 %v4523
    %v4551 = vunpack.c.l.b16 %v4524
    %v4552 = vunpack.c.l.b16 %v4525
    %v4553 = vunpack.c.l.b16 %v4526
    %v4554 = vunpack.c.l.b16 %v4527
    %v4555 = vpack.c.b16 %v4548, %v4547
    %v4556 = vpack.c.b16 %v4550, %v4549
    %v4557 = vpack.c.b16 %v4552, %v4551
    %v4558 = vpack.c.b16 %v4554, %v4553
    %v4564 = vsel %vm178, %v4528, 0
    %v4567 = vsel %vm178, %v4529, 0
    %v4570 = vsel %vm178, %v4530, 0
    %4572 = vmatprep.subr.bf16.mxu0 0
    %4573 = vmatpush1.bf16.msra.mxu0 %v4555
    %4574 = vmatprep.subr.bf16.mxu0 0
    %4575 = vmatpush1.bf16.msra.mxu0 %v4556
    %4576 = vmatprep.subr.bf16.mxu0 0
    %4577 = vmatpush1.bf16.msra.mxu0 %v4557
    %4578 = vmatprep.subr.bf16.mxu0 0
    %4579 = vmatpush1.bf16.msra.mxu0 %v4558
    %4580 = vmatprep.subr.bf16.mxu0 0
    %4581 = vmatpush1.bf16.msra.mxu0 0
    %4582 = vmatprep.subr.bf16.mxu0 0
    %4583 = vmatpush1.bf16.msra.mxu0 0
    %4584 = vmatprep.subr.bf16.mxu0 0
    %4585 = vmatpush1.bf16.msra.mxu0 0
    %4586 = vmatprep.subr.bf16.mxu0 0
    %4587 = vmatpush1.bf16.msra.mxu0 0
    %4588 = vmatprep.subr.bf16.mxu0 0
    %4589 = vmatpush1.bf16.msra.mxu0 0
    %4590 = vmatprep.subr.bf16.mxu0 0
    %4591 = vmatpush1.bf16.msra.mxu0 0
    %4592 = vmatprep.subr.bf16.mxu0 0
    %4593 = vmatpush1.bf16.msra.mxu0 0
    %4594 = vmatprep.subr.bf16.mxu0 0
    %4595 = vmatpush1.bf16.msra.mxu0 0
    %4596 = vmatprep.subr.bf16.mxu0 0
    %4597 = vmatpush1.bf16.msra.mxu0 0
    %4598 = vmatprep.subr.bf16.mxu0 0
    %4599 = vmatpush1.bf16.msra.mxu0 0
    %4600 = vmatprep.subr.bf16.mxu0 0
    %4601 = vmatpush1.bf16.msra.mxu0 0
    %4602 = vmatprep.subr.bf16.mxu0 0
    %4603 = vmatpush1.bf16.msra.mxu0 0
    %4604 = vmatprep.mubr.bf16.mxu0 0
    %4605 = vmatmul.mubr.bf16.gmra.mrb[0].mxu0 %v4564
    %v4606 = vpop.f32.mrb[0].mxu0
    %v4607 = vadd.f32 %v4537, %v4606
    %v4608 = vpop.f32.mrb[0].mxu0
    %v4609 = vpop.f32.mrb[0].mxu0
    %v4610 = vadd.f32 %v4537, %v4609
    %v4611 = vpop.f32.mrb[0].mxu0
    %4612 = vmatprep.mubr.bf16.mxu0 0
    %4613 = vmatmul.mubr.bf16.gmra.mrb[0].mxu0 %v4567
    %v4614 = vpop.f32.mrb[0].mxu0
    %v4615 = vadd.f32 %v4537, %v4614
    %v4616 = vpop.f32.mrb[0].mxu0
    %v4617 = vpop.f32.mrb[0].mxu0
    %v4618 = vadd.f32 %v4537, %v4617
    %v4619 = vpop.f32.mrb[0].mxu0
    %4620 = vmatprep.mubr.bf16.mxu0 0
    %4621 = vmatmul.mubr.bf16.gmra.mrb[0].mxu0 %v4570
    %v4622 = vpop.f32.mrb[0].mxu0
    %v4623 = vadd.f32 %v4537, %v4622
    %v4624 = vpop.f32.mrb[0].mxu0
    %v4625 = vpop.f32.mrb[0].mxu0
    %v4626 = vadd.f32 %v4537, %v4625
    %v4627 = vpop.f32.mrb[0].mxu0
    %4628 = vdwg.mxu0
    %v4629 = vmul.f32 %v4607, 1.702
    %v4630 = vmul.f32 %v4610, 1.702
    %v4631 = vmul.f32 %v4615, 1.702
    %v4632 = vmul.f32 %v4618, 1.702
    %v4633 = vmul.f32 %v4623, 1.702
    %v4634 = vmul.f32 %v4626, 1.702
    %v4635 = vxor.u32 %v4629, 2147483648
    %v4636 = vxor.u32 %v4630, 2147483648
    %v4637 = vxor.u32 %v4631, 2147483648
    %v4638 = vxor.u32 %v4632, 2147483648
    %v4639 = vxor.u32 %v4633, 2147483648
    %v4640 = vxor.u32 %v4634, 2147483648
    %v4641 = vmul.f32 %v4635, 1.442695
    %v4642 = vpow.pop %v4641
    %v4643 = vmul.f32 %v4636, 1.442695
    %v4644 = vpow.pop %v4643
    %v4645 = vmul.f32 %v4637, 1.442695
    %v4646 = vpow.pop %v4645
    %v4647 = vmul.f32 %v4638, 1.442695
    %v4648 = vpow.pop %v4647
    %v4649 = vmul.f32 %v4639, 1.442695
    %v4650 = vpow.pop %v4649
    %v4651 = vmul.f32 %v4640, 1.442695
    %v4652 = vpow.pop %v4651
    %v4653 = vadd.f32 %v4642, 1.0
    %v4654 = vadd.f32 %v4644, 1.0
    %v4655 = vadd.f32 %v4646, 1.0
    %v4656 = vadd.f32 %v4648, 1.0
    %v4657 = vadd.f32 %v4650, 1.0
    %v4658 = vadd.f32 %v4652, 1.0
    %v4659 = vrcp.pop %v4653
    %v4660 = vmul.f32 1.0, %v4659
    %v4661 = vrcp.pop %v4654
    %v4662 = vmul.f32 1.0, %v4661
    %v4663 = vrcp.pop %v4655
    %v4664 = vmul.f32 1.0, %v4663
    %v4665 = vrcp.pop %v4656
    %v4666 = vmul.f32 1.0, %v4665
    %v4667 = vrcp.pop %v4657
    %v4668 = vmul.f32 1.0, %v4667
    %v4669 = vrcp.pop %v4658
    %v4670 = vmul.f32 1.0, %v4669
    %v4671 = vmul.f32 %v4607, %v4660
    %v4672 = vmul.f32 %v4610, %v4662
    %v4673 = vmul.f32 %v4615, %v4664
    %v4674 = vmul.f32 %v4618, %v4666
    %v4675 = vmul.f32 %v4623, %v4668
    %v4676 = vmul.f32 %v4626, %v4670
    %s4677 = scalar_lea.vmem %s15, 64
    %v4678 = vld [vmem:[%s4677] sm:$0xf]
    %v4679 = vld [vmem:[%s4677 + $0x4] sm:$0xf]
    %v4680 = vld [vmem:[%s4677 + $0x8] sm:$0xf]
    %v4681 = vld [vmem:[%s4677 + $0xc] sm:$0xf]
    %v4682 = vld [vmem:[%s4677 + $0x10] sm:$0xf]
    %v4683 = vld [vmem:[%s4677 + $0x14] sm:$0xf]
    %v4684 = vld [vmem:[%s4677 + $0x18] sm:$0xf]
    %v4685 = vld [vmem:[%s4677 + $0x1c] sm:$0xf]
    %v4686 = vld [vmem:[%s4677 + $0x20] sm:$0xf]
    %v4687 = vld [vmem:[%s4677 + $0x24] sm:$0xf]
    %v4688 = vld [vmem:[%s4677 + $0x28] sm:$0xf]
    %v4689 = vld [vmem:[%s4677 + $0x2c] sm:$0xf]
    %v4690 = vld [vmem:[%s4677 + $0x30] sm:$0xf]
    %v4691 = vld [vmem:[%s4677 + $0x34] sm:$0xf]
    %v4692 = vld [vmem:[%s4677 + $0x38] sm:$0xf]
    %v4693 = vld [vmem:[%s4677 + $0x3c] sm:$0xf]
    %v4694 = vpack.c.bf16 %v4672, %v4671
    %v4695 = vpack.c.bf16 %v4674, %v4673
    %v4696 = vpack.c.bf16 %v4676, %v4675
    %v4713 = vunpack.c.l.b16 %v4678
    %v4714 = vunpack.c.l.b16 %v4679
    %v4715 = vunpack.c.l.b16 %v4680
    %v4716 = vunpack.c.l.b16 %v4681
    %v4717 = vunpack.c.l.b16 %v4682
    %v4718 = vunpack.c.l.b16 %v4683
    %v4719 = vunpack.c.l.b16 %v4684
    %v4720 = vunpack.c.l.b16 %v4685
    %v4721 = vunpack.c.l.b16 %v4686
    %v4722 = vunpack.c.l.b16 %v4687
    %v4723 = vunpack.c.l.b16 %v4688
    %v4724 = vunpack.c.l.b16 %v4689
    %v4725 = vunpack.c.l.b16 %v4690
    %v4726 = vunpack.c.l.b16 %v4691
    %v4727 = vunpack.c.l.b16 %v4692
    %v4728 = vunpack.c.l.b16 %v4693
    %v4729 = vpack.c.b16 %v4714, %v4713
    %v4730 = vpack.c.b16 %v4716, %v4715
    %v4731 = vpack.c.b16 %v4718, %v4717
    %v4732 = vpack.c.b16 %v4720, %v4719
    %v4733 = vpack.c.b16 %v4722, %v4721
    %v4734 = vpack.c.b16 %v4724, %v4723
    %v4735 = vpack.c.b16 %v4726, %v4725
    %v4736 = vpack.c.b16 %v4728, %v4727
    %4745 = vmatprep.subr.bf16.mxu0 0
    %4746 = vmatpush1.bf16.msra.mxu0 %v4729
    %4747 = vmatprep.subr.bf16.mxu0 0
    %4748 = vmatpush1.bf16.msra.mxu0 %v4730
    %4749 = vmatprep.subr.bf16.mxu0 0
    %4750 = vmatpush1.bf16.msra.mxu0 %v4731
    %4751 = vmatprep.subr.bf16.mxu0 0
    %4752 = vmatpush1.bf16.msra.mxu0 %v4732
    %4753 = vmatprep.subr.bf16.mxu0 0
    %4754 = vmatpush1.bf16.msra.mxu0 %v4733
    %4755 = vmatprep.subr.bf16.mxu0 0
    %4756 = vmatpush1.bf16.msra.mxu0 %v4734
    %4757 = vmatprep.subr.bf16.mxu0 0
    %4758 = vmatpush1.bf16.msra.mxu0 %v4735
    %4759 = vmatprep.subr.bf16.mxu0 0
    %4760 = vmatpush1.bf16.msra.mxu0 %v4736
    %4761 = vmatprep.subr.bf16.mxu0 0
    %4762 = vmatpush1.bf16.msra.mxu0 0
    %4763 = vmatprep.subr.bf16.mxu0 0
    %4764 = vmatpush1.bf16.msra.mxu0 0
    %4765 = vmatprep.subr.bf16.mxu0 0
    %4766 = vmatpush1.bf16.msra.mxu0 0
    %4767 = vmatprep.subr.bf16.mxu0 0
    %4768 = vmatpush1.bf16.msra.mxu0 0
    %4769 = vmatprep.subr.bf16.mxu0 0
    %4770 = vmatpush1.bf16.msra.mxu0 0
    %4771 = vmatprep.subr.bf16.mxu0 0
    %4772 = vmatpush1.bf16.msra.mxu0 0
    %4773 = vmatprep.subr.bf16.mxu0 0
    %4774 = vmatpush1.bf16.msra.mxu0 0
    %4775 = vmatprep.subr.bf16.mxu0 0
    %4776 = vmatpush1.bf16.msra.mxu0 0
    %4777 = vmatprep.mubr.bf16.mxu0 0
    %4778 = vmatmul.mubr.bf16.gmra.mrb[0].mxu0 %v4694
    %v4779 = vpop.f32.mrb[0].mxu0
    %v4780 = vadd.f32 0.0, %v4779
    %v4781 = vpop.f32.mrb[0].mxu0
    %v4782 = vpop.f32.mrb[0].mxu0
    %v4783 = vadd.f32 0.0, %v4782
    %v4784 = vpop.f32.mrb[0].mxu0
    %4785 = vmatprep.mubr.bf16.mxu0 0
    %4786 = vmatmul.mubr.bf16.gmra.mrb[0].mxu0 %v4695
    %v4787 = vpop.f32.mrb[0].mxu0
    %v4788 = vadd.f32 0.0, %v4787
    %v4789 = vpop.f32.mrb[0].mxu0
    %v4790 = vpop.f32.mrb[0].mxu0
    %v4791 = vadd.f32 0.0, %v4790
    %v4792 = vpop.f32.mrb[0].mxu0
    %4793 = vmatprep.mubr.bf16.mxu0 0
    %4794 = vmatmul.mubr.bf16.gmra.mrb[0].mxu0 %v4696
    %v4795 = vpop.f32.mrb[0].mxu0
    %v4796 = vadd.f32 0.0, %v4795
    %v4797 = vpop.f32.mrb[0].mxu0
    %v4798 = vpop.f32.mrb[0].mxu0
    %v4799 = vadd.f32 0.0, %v4798
    %v4800 = vpop.f32.mrb[0].mxu0
    %4801 = vdwg.mxu0
    %v4802 = vadd.f32 %v4407, %v4780
    %v4803 = vadd.f32 %v4408, %v4783
    %v4804 = vadd.f32 %v4409, %v4788
    %v4805 = vadd.f32 %v4410, %v4791
    %v4806 = vadd.f32 %v4411, %v4796
    %v4807 = vadd.f32 %v4412, %v4799
    %s4808 = scalar_lea.vmem %s16, 1
    %v4809 = vld [vmem:[%s4808] sm:$0x1]
    %v4811 = vlaneseq
    %v4812 = vshrl.u32 %v4811, 7
    %v4813 = vsub.s32 0, %v4812
    %v4814 = vrot.slane %v4809, %v4813
    %v4816 = vadd.f32 %v4802, %v4814
    %v4817 = vadd.f32 %v4803, %v4814
    %v4818 = vadd.f32 %v4804, %v4814
    %v4819 = vadd.f32 %v4805, %v4814
    %v4820 = vadd.f32 %v4806, %v4814
    %v4821 = vadd.f32 %v4807, %v4814
    %4822 = vst.msk [vmem:[#allocation2] sm:$0xff] %vm178, %v4816
    %4823 = vst.msk [vmem:[#allocation2 + $0x8] sm:$0xff] %vm178, %v4817
    %4824 = vst.msk [vmem:[#allocation2 + $0x10] sm:$0xff] %vm178, %v4818
    %4825 = vst.msk [vmem:[#allocation2 + $0x18] sm:$0xff] %vm178, %v4819
    %4826 = vst.msk [vmem:[#allocation2 + $0x20] sm:$0xff] %vm178, %v4820
    %4827 = vst.msk [vmem:[#allocation2 + $0x28] sm:$0xff] %vm178, %v4821
    %v4828 = vld [vmem:[#allocation2] ss:$24 sm:$0x3]
    %v4829 = vld [vmem:[%s17] sm:$0x1]
    %v4830 = vld [vmem:[%s18] sm:$0x1]
    %vm4831 = vcmask 517120
    %v4832 = vsel %vm4831, %v4828, 0.0
    %4833 = vadd.xlane.f32.xlu0 %v4832
    %v4834 = vpop.xlane.xlu0 %4833
    %v4835 = vmul.f32 %v4834, %v280
    %v4836 = vsub.f32 %v4828, %v4835
    %v4837 = vmul.f32 %v4836, %v4836
    %v4838 = vsel %vm4831, %v4837, 0.0
    %4839 = vadd.xlane.f32.xlu0 %v4838
    %v4840 = vpop.xlane.xlu0 %4839
    %v4841 = vmul.f32 %v4840, %v280
    %v4842 = vadd.f32 %v4841, 1e-05
    %v4843 = vrsqrt.pop %v4842
    %v4844 = vmul.f32 %v4836, %v4843
    %v4846 = vlaneseq
    %v4847 = vshrl.u32 %v4846, 7
    %v4848 = vsub.s32 0, %v4847
    %v4849 = vrot.slane %v4829, %v4848
    %v4851 = vmul.f32 %v4844, %v4849
    %v4853 = vlaneseq
    %v4854 = vshrl.u32 %v4853, 7
    %v4855 = vsub.s32 0, %v4854
    %v4856 = vrot.slane %v4830, %v4855
    %v4858 = vadd.f32 %v4851, %v4856
    %v4859 = vld [vmem:[%s19] sm:$0xf]
    %v4860 = vld [vmem:[%s19 + $0x4] sm:$0xf]
    %v4861 = vld [vmem:[%s19 + $0x8] sm:$0xf]
    %v4862 = vld [vmem:[%s19 + $0xc] sm:$0xf]
    %v4863 = vld [vmem:[%s19 + $0x10] sm:$0xf]
    %v4864 = vld [vmem:[%s19 + $0x14] sm:$0xf]
    %v4865 = vld [vmem:[%s19 + $0x18] sm:$0xf]
    %v4866 = vld [vmem:[%s19 + $0x1c] sm:$0xf]
    %v4867 = vpack.c.bf16 %v4858, %v4858
    %v4868 = vld [vmem:[%s20] sm:$0x1]
    %v4870 = vlaneseq
    %v4871 = vshrl.u32 %v4870, 7
    %v4872 = vsub.s32 0, %v4871
    %v4873 = vrot.slane %v4868, %v4872
    %v4883 = vunpack.c.l.b16 %v4859
    %v4884 = vunpack.c.l.b16 %v4860
    %v4885 = vunpack.c.l.b16 %v4861
    %v4886 = vunpack.c.l.b16 %v4862
    %v4887 = vunpack.c.l.b16 %v4863
    %v4888 = vunpack.c.l.b16 %v4864
    %v4889 = vunpack.c.l.b16 %v4865
    %v4890 = vunpack.c.l.b16 %v4866
    %v4891 = vpack.c.b16 %v4884, %v4883
    %v4892 = vpack.c.b16 %v4886, %v4885
    %v4893 = vpack.c.b16 %v4888, %v4887
    %v4894 = vpack.c.b16 %v4890, %v4889
    %v4900 = vsel %vm178, %v4867, 0
    %4902 = vmatprep.subr.bf16.mxu0 0
    %4903 = vmatpush1.bf16.msra.mxu0 %v4891
    %4904 = vmatprep.subr.bf16.mxu0 0
    %4905 = vmatpush1.bf16.msra.mxu0 %v4892
    %4906 = vmatprep.subr.bf16.mxu0 0
    %4907 = vmatpush1.bf16.msra.mxu0 %v4893
    %4908 = vmatprep.subr.bf16.mxu0 0
    %4909 = vmatpush1.bf16.msra.mxu0 %v4894
    %4910 = vmatprep.subr.bf16.mxu0 0
    %4911 = vmatpush1.bf16.msra.mxu0 0
    %4912 = vmatprep.subr.bf16.mxu0 0
    %4913 = vmatpush1.bf16.msra.mxu0 0
    %4914 = vmatprep.subr.bf16.mxu0 0
    %4915 = vmatpush1.bf16.msra.mxu0 0
    %4916 = vmatprep.subr.bf16.mxu0 0
    %4917 = vmatpush1.bf16.msra.mxu0 0
    %4918 = vmatprep.subr.bf16.mxu0 0
    %4919 = vmatpush1.bf16.msra.mxu0 0
    %4920 = vmatprep.subr.bf16.mxu0 0
    %4921 = vmatpush1.bf16.msra.mxu0 0
    %4922 = vmatprep.subr.bf16.mxu0 0
    %4923 = vmatpush1.bf16.msra.mxu0 0
    %4924 = vmatprep.subr.bf16.mxu0 0
    %4925 = vmatpush1.bf16.msra.mxu0 0
    %4926 = vmatprep.subr.bf16.mxu0 0
    %4927 = vmatpush1.bf16.msra.mxu0 0
    %4928 = vmatprep.subr.bf16.mxu0 0
    %4929 = vmatpush1.bf16.msra.mxu0 0
    %4930 = vmatprep.subr.bf16.mxu0 0
    %4931 = vmatpush1.bf16.msra.mxu0 0
    %4932 = vmatprep.subr.bf16.mxu0 0
    %4933 = vmatpush1.bf16.msra.mxu0 0
    %4934 = vmatprep.mubr.bf16.mxu0 0
    %4935 = vmatmul.mubr.bf16.gmra.mrb[0].mxu0 %v4900
    %v4936 = vpop.f32.mrb[0].mxu0
    %v4937 = vadd.f32 %v4873, %v4936
    %v4938 = vpop.f32.mrb[0].mxu0
    %v4939 = vpop.f32.mrb[0].mxu0
    %v4940 = vpop.f32.mrb[0].mxu0
    %4941 = vdwg.mxu0
    %vm4942 = vcmask 1041408
    %v4943 = vsel %vm4942, %v4937, -inf
    %4944 = vmax.xlane.f32.xlu0 %v4943
    %v4945 = vpop.xlane.xlu0 %4944
    %v4946 = vsub.f32 %v4937, %v4945
    %v4947 = vmul.f32 %v4946, 1.442695
    %v4948 = vpow.pop %v4947
    %v4949 = vsel %vm4942, %v4948, 0.0
    %4950 = vadd.xlane.f32.xlu0 %v4949
    %v4951 = vpop.xlane.xlu0 %4950
    %v4952 = vrcp.pop %v4951
    %v4953 = vmul.f32 %v4948, %v4952
    %4954 = vst [vmem:[#allocation3] sm:$0x3] %v4953
    // Predicated region
    $region86: #{aesclip_forward.1} parent=1 // pred_check
      _
    $region87: #{aesclip_forward.1} parent=1 // pred_check_branch
      %4956 = sbr.rel (0) target = $region89
    $region88: #{aesclip_forward.1} parent=1 // pred_region
      %s4958 = ssub.s32 32, 32
      %4959 = vsyncadd [#allocation4], %s4958
      %s4961 = sshll.u32 [#allocation3], 4
      %s4962 = int_to_ptr.vmem [resolvable:$true] %s4961
      %4964 = dma.vmem_to_hbm [thread:$0]  %s4962, 32, %s21, [#allocation4]
    $region89: #{aesclip_forward.1} parent=1 // pred_fallthru
      _
    // Predicated region
    $region90: #{aesclip_forward.1} parent=1 // pred_check
      _
    $region91: #{aesclip_forward.1} parent=1 // pred_check_branch
      %4966 = sbr.rel (0) target = $region93
    $region92: #{aesclip_forward.1} parent=1 // pred_region
      %4967 = dma.done [#allocation4], 32
    $region93: #{aesclip_forward.1} parent=1 // pred_fallthru
      _
    %4968 = vsyncpa [#allocation4], 1

</llo_original>
